<compile_context>
chip_gen: v5e
topology: v5e:2x2
jax: 0.10.0
libtpu: 0.0.40
codegen_flags: <defaults>
</compile_context>

<pallas_src>
import jax
import jax.numpy as jnp
from jax import lax
from jax.experimental import pallas as pl
from jax.experimental.pallas import tpu as pltpu

# ----------------------------- sizes ---------------------------------------
B = 2          # batch
I = 16         # input_dims
H = 32         # hidden_dims[0] (all layers share this)
O = 16         # output_dims
N_SLOTS = 8    # NumMemSlots
D_SLOT = 16    # MemSlotDims
T = 8          # sequence length (number of recurrent Controller.forward steps)
NUM_LAYERS = 2
# split_dict = {'Key': D_SLOT, 'Beta': 1, 'Gate': 1}

KHR = H + D_SLOT                   # 48 : per-cell recurrent contraction [h | read]
IFW = D_SLOT + 2                   # 18 : key | beta | gate
OW = 2 * O                         # 32 : [LinearY pre | LinearR pre]
STATE_W = H + D_SLOT + N_SLOTS     # 56 : packed initial state [h | read | w]
OUT_W = O + D_SLOT + H + N_SLOTS   # 72 : packed per-step output [y | read | h | w]
OUT_PAD = 128                      # lane-dense output width


# ----------------------------- kernel ---------------------------------------
def controller_seq_kernel(
    x_ref,       # (T*B, I)           all inputs, flattened over time
    state0_ref,  # (B, STATE_W)       initial [h_prev | read_prev | w_prev]
    mem_ref,     # (N_SLOTS, D_SLOT)  memory (constant across the sequence)
    wxc_ref,     # (I, 2H)            [Wx0 | Wx1]
    bxc_ref,     # (1, 2H)            [b0  | b1 ]
    whr_ref,     # (2, KHR, H)        per cell: [Wh ; Wr]
    wif_ref,     # (H, IFW)           interface weights (Key|Beta|Gate)
    bif_ref,     # (1, IFW)
    wout_ref,    # (KHR, OW)          block-diag [Wy | Wr_out]
    bout_ref,    # (1, OW)
    out_ref,     # (T, B, OUT_PAD)    packed per-step outputs (lane-dense)
):
    f32 = jnp.float32
    b = state0_ref.shape[0]
    t_steps = out_ref.shape[0]

    # ---- prologue: sequence-invariant work, paid once --------------------
    mem = mem_ref[...]
    inv = lax.rsqrt(jnp.sum(mem * mem, axis=-1, keepdims=True) + 1e-12)
    memn_t = (mem * inv).T                                               # (D, N) transposed once

    # input projections for every step in one MXU push (+ bias once)
    xproj = jnp.dot(x_ref[...], wxc_ref[...],
                    preferred_element_type=f32) + bxc_ref[...]           # (T*B, 2H)

    whr0 = whr_ref[0]                                                    # (KHR, H)
    whr1 = whr_ref[1]                                                    # (KHR, H)
    wif = wif_ref[...]
    wout = wout_ref[...]
    # hoisted bias broadcasts (JAX does not CSE broadcast_in_dim)
    bif_b = jnp.broadcast_to(bif_ref[...], (b, IFW))
    bout_b = jnp.broadcast_to(bout_ref[...], (b, OW))
    pad_z = jnp.zeros((b, OUT_PAD - OUT_W), f32)

    s0 = state0_ref[...]
    h_prev = s0[:, :H]
    read_prev = s0[:, H:H + D_SLOT]
    w_prev = s0[:, H + D_SLOT:]

    # ---- statically unrolled recurrence (T is small & static) ------------
    for t in range(t_steps):
        xp = xproj[t * b:(t + 1) * b, :]                                 # (B, 2H) static slice

        # stacked MRNN cells: per-cell fused [Wh; Wr] matmul, x-part precomputed
        pre0 = xp[:, :H] + jnp.dot(jnp.concatenate([h_prev, read_prev], axis=1),
                                   whr0, preferred_element_type=f32)
        h0 = jnp.tanh(pre0)                                              # (B, H)
        pre1 = xp[:, H:] + jnp.dot(jnp.concatenate([h0, read_prev], axis=1),
                                   whr1, preferred_element_type=f32)
        h_t = jnp.tanh(pre1)                                             # (B, H)

        # interface layers (Key / Beta / Gate) in a single matmul
        iface = jnp.dot(h_t, wif, preferred_element_type=f32) + bif_b    # (B, IFW)
        key = iface[:, :D_SLOT]                                          # (B, D)
        beta = jax.nn.softplus(iface[:, D_SLOT:D_SLOT + 1])              # (B, 1)
        gate = jax.nn.sigmoid(iface[:, D_SLOT + 1:D_SLOT + 2])           # (B, 1)

        # HEADOPS: cosine content addressing on pre-normalized (transposed) memory
        sim_n = jnp.dot(key, memn_t, preferred_element_type=f32)         # (B, N) = <k, m/|m|>
        key_inv = lax.rsqrt(jnp.sum(key * key, axis=-1, keepdims=True) + 1e-12)
        logits = (beta * key_inv) * sim_n                                # beta * cos (bounded)
        e = jnp.exp(logits)                                              # no max-sub: |logits| ~< 1
        w_c = e * pl.reciprocal(jnp.sum(e, axis=-1, keepdims=True), approx=True)
        w_t = gate * w_c + (1.0 - gate) * w_prev                         # (B, N)

        # MEMORYUNIT: read
        read_t = jnp.dot(w_t, mem, preferred_element_type=f32)           # (B, D)

        # output head: block-diagonal matmul, then the double sigmoid
        head = jnp.dot(jnp.concatenate([h_t, read_t], axis=1), wout,
                       preferred_element_type=f32) + bout_b              # (B, 2O)
        y = jax.nn.sigmoid(jax.nn.sigmoid(head[:, :O]) + jax.nn.sigmoid(head[:, O:]))

        # lane-dense packed per-step store (single writeback DMA at the end)
        out_ref[t] = jnp.concatenate([y, read_t, h_t, w_t, pad_z], axis=1)

        h_prev, read_prev, w_prev = h_t, read_t, w_t


# ----------------------------- wrapper ---------------------------------------
def pack_params(p):
    f32 = jnp.float32
    wxc = jnp.concatenate([p["wx0"], p["wx1"]], axis=1).astype(f32)             # (I, 2H)
    bxc = jnp.concatenate([p["b0"], p["b1"]], axis=1).astype(f32)               # (1, 2H)
    whr = jnp.stack([
        jnp.concatenate([p["wh0"], p["wr0"]], axis=0),
        jnp.concatenate([p["wh1"], p["wr1"]], axis=0),
    ], axis=0).astype(f32)                                                      # (2, KHR, H)
    wif = jnp.concatenate([p["wkey"], p["wbeta"].T, p["wgate"].T], axis=1).astype(f32)  # (H, IFW)
    bif = jnp.concatenate([p["bkey"], p["bbeta"], p["bgate"]], axis=1).astype(f32)      # (1, IFW)
    wout = jnp.concatenate([
        jnp.concatenate([p["wy"], jnp.zeros((H, O), f32)], axis=1),             # (H, 2O)
        jnp.concatenate([jnp.zeros((D_SLOT, O), f32), p["wrd"]], axis=1),       # (D, 2O)
    ], axis=0).astype(f32)                                                      # (KHR, 2O)
    bout = jnp.concatenate([p["by"], p["brd"]], axis=1).astype(f32)             # (1, 2O)
    return wxc, bxc, whr, wif, bif, wout, bout, p["memory"].astype(f32)


def controller_forward_sequence(x_seq, init_state, params):
    """Applies Controller.forward recurrently over x_seq (T, B, I) in one kernel."""
    t_steps = x_seq.shape[0]
    wxc, bxc, whr, wif, bif, wout, bout, mem = pack_params(params)
    state0 = jnp.concatenate(
        [init_state["h_prev"], init_state["read_prev"], init_state["w_prev"]],
        axis=1).astype(jnp.float32)                                             # (B, STATE_W)
    x2d = x_seq.reshape(t_steps * B, I).astype(jnp.float32)                     # (T*B, I)

    out = pl.pallas_call(
        controller_seq_kernel,
        out_shape=jax.ShapeDtypeStruct((t_steps, B, OUT_PAD), jnp.float32),
    )(x2d, state0, mem, wxc, bxc, whr, wif, bif, wout, bout)

    y = out[:, :, :O]
    read_t = out[:, :, O:O + D_SLOT]
    h_t = out[:, :, O + D_SLOT:O + D_SLOT + H]
    w_t = out[:, :, O + D_SLOT + H:OUT_W]
    return y, read_t, h_t, w_t


# ----------------------------- pure-JAX reference ----------------------------
def controller_step_reference(x, h_prev, read_prev, w_prev, p):
    mem = p["memory"]
    h0 = jnp.tanh(x @ p["wx0"] + h_prev @ p["wh0"] + read_prev @ p["wr0"] + p["b0"])
    h_t = jnp.tanh(x @ p["wx1"] + h0 @ p["wh1"] + read_prev @ p["wr1"] + p["b1"])
    key = h_t @ p["wkey"] + p["bkey"]
    beta = jax.nn.softplus(jnp.sum(h_t * p["wbeta"], -1, keepdims=True) + p["bbeta"])
    gate = jax.nn.sigmoid(jnp.sum(h_t * p["wgate"], -1, keepdims=True) + p["bgate"])
    sim = key @ mem.T
    cos = sim / (jnp.linalg.norm(key, axis=-1, keepdims=True)
                 * jnp.linalg.norm(mem, axis=-1)[None, :] + 1e-8)
    w_c = jax.nn.softmax(beta * cos, axis=-1)
    w_t = gate * w_c + (1.0 - gate) * w_prev
    read_t = w_t @ mem
    y = jax.nn.sigmoid(jax.nn.sigmoid(h_t @ p["wy"] + p["by"])
                       + jax.nn.sigmoid(read_t @ p["wrd"] + p["brd"]))
    return y, read_t, h_t, w_t


def controller_reference_sequence(x_seq, init_state, p):
    h, r, w = init_state["h_prev"], init_state["read_prev"], init_state["w_prev"]
    ys, rs, hs, ws = [], [], [], []
    for t in range(x_seq.shape[0]):
        y, r, h, w = controller_step_reference(x_seq[t], h, r, w, p)
        ys.append(y); rs.append(r); hs.append(h); ws.append(w)
    return jnp.stack(ys), jnp.stack(rs), jnp.stack(hs), jnp.stack(ws)


# ----------------------------- main ------------------------------------------
if __name__ == "__main__":
    key = jax.random.PRNGKey(0)
    ks = jax.random.split(key, 32)

    def rnd(k, shape, scale=0.1):
        return (scale * jax.random.normal(k, shape)).astype(jnp.float32)

    init_state = {
        "h_prev": rnd(ks[1], (B, H), 1.0),
        "read_prev": rnd(ks[2], (B, D_SLOT), 1.0),
        "w_prev": jnp.full((B, N_SLOTS), 1.0 / N_SLOTS, jnp.float32),
    }
    x_seq = rnd(ks[0], (T, B, I), 1.0)

    params = {
        "memory": rnd(ks[3], (N_SLOTS, D_SLOT), 1.0),
        # MRNN cell 0
        "wx0": rnd(ks[4], (I, H)), "wh0": rnd(ks[5], (H, H)),
        "wr0": rnd(ks[6], (D_SLOT, H)), "b0": rnd(ks[7], (1, H)),
        # MRNN cell 1
        "wx1": rnd(ks[8], (I, H)), "wh1": rnd(ks[9], (H, H)),
        "wr1": rnd(ks[10], (D_SLOT, H)), "b1": rnd(ks[11], (1, H)),
        # interface: Key / Beta / Gate
        "wkey": rnd(ks[12], (H, D_SLOT)), "bkey": rnd(ks[13], (1, D_SLOT)),
        "wbeta": rnd(ks[14], (1, H)), "bbeta": rnd(ks[15], (1, 1)),
        "wgate": rnd(ks[16], (1, H)), "bgate": rnd(ks[17], (1, 1)),
        # LinearY / LinearR
        "wy": rnd(ks[18], (H, O)), "by": rnd(ks[19], (1, O)),
        "wrd": rnd(ks[20], (D_SLOT, O)), "brd": rnd(ks[21], (1, O)),
    }

    out = controller_forward_sequence(x_seq, init_state, params)
    out = jax.block_until_ready(out)
    ref = controller_reference_sequence(x_seq, init_state, params)

    # Tolerance loosened (2e-4 -> 3e-3) for the approx EUP reciprocal in the
    # softmax denominator and the dropped max-subtraction, per perf review.
    for a, b in zip(out, ref):
        assert a.shape == b.shape, f"shape mismatch: {a.shape} vs {b.shape}"
        assert jnp.allclose(a, b, atol=3e-3, rtol=3e-3), (
            f"value mismatch, max abs err = {jnp.max(jnp.abs(a - b))}")

    print("KERNEL_OK")
</pallas_src>

<mosaic_0001>
module attributes {stable_mosaic.version = 11 : i64} {
  func.func @controller_seq_kernel(%arg0: memref<16x16xf32, #tpu.memory_space<vmem>>, %arg1: memref<2x56xf32, #tpu.memory_space<vmem>>, %arg2: memref<8x16xf32, #tpu.memory_space<vmem>>, %arg3: memref<16x64xf32, #tpu.memory_space<vmem>>, %arg4: memref<1x64xf32, #tpu.memory_space<vmem>>, %arg5: memref<2x48x32xf32, #tpu.memory_space<vmem>>, %arg6: memref<32x18xf32, #tpu.memory_space<vmem>>, %arg7: memref<1x18xf32, #tpu.memory_space<vmem>>, %arg8: memref<48x32xf32, #tpu.memory_space<vmem>>, %arg9: memref<1x32xf32, #tpu.memory_space<vmem>>, %arg10: memref<8x2x128xf32, #tpu.memory_space<vmem>>) attributes {dimension_semantics = [], scalar_prefetch = 0 : i64, scratch_operands = 0 : i64, tpu.core_type = #tpu.core_type<tc>} {
    %c0 = arith.constant 0 : index
    %c0_0 = arith.constant 0 : index
    %0 = vector.load %arg2[%c0, %c0_0] : memref<8x16xf32, #tpu.memory_space<vmem>>, vector<8x16xf32>
    %1 = arith.mulf %0, %0 : vector<8x16xf32>
    %cst = arith.constant dense<0.000000e+00> : vector<8xf32>
    %2 = vector.multi_reduction <add>, %1, %cst [1] : vector<8x16xf32> to vector<8xf32>
    %3 = vector.shape_cast %2 : vector<8xf32> to vector<8x1xf32>
    %cst_1 = arith.constant 9.99999996E-13 : f32
    %4 = vector.broadcast %cst_1 : f32 to vector<8x1xf32>
    %5 = arith.addf %3, %4 : vector<8x1xf32>
    %6 = math.rsqrt %5 : vector<8x1xf32>
    %7 = vector.broadcast %6 : vector<8x1xf32> to vector<8x16xf32>
    %8 = arith.mulf %0, %7 : vector<8x16xf32>
    %9 = tpu.transpose %8, [1, 0] : vector<8x16xf32> -> vector<16x8xf32>
    %c0_2 = arith.constant 0 : index
    %c0_3 = arith.constant 0 : index
    %10 = vector.load %arg0[%c0_2, %c0_3] : memref<16x16xf32, #tpu.memory_space<vmem>>, vector<16x16xf32>
    %c0_4 = arith.constant 0 : index
    %c0_5 = arith.constant 0 : index
    %11 = vector.load %arg3[%c0_4, %c0_5] : memref<16x64xf32, #tpu.memory_space<vmem>>, vector<16x64xf32>
    %cst_6 = arith.constant dense<0.000000e+00> : vector<16x64xf32>
    %12 = tpu.matmul %10, %11, %cst_6 {dimension_numbers = #tpu.dot_dimension_numbers<[1], [0], [0], [1], [0, 0, 1, 1], [], []>} : vector<16x16xf32>, vector<16x64xf32>, vector<16x64xf32> -> vector<16x64xf32>
    %c0_7 = arith.constant 0 : index
    %c0_8 = arith.constant 0 : index
    %13 = vector.load %arg4[%c0_7, %c0_8] : memref<1x64xf32, #tpu.memory_space<vmem>>, vector<1x64xf32>
    %14 = vector.broadcast %13 : vector<1x64xf32> to vector<16x64xf32>
    %15 = arith.addf %12, %14 : vector<16x64xf32>
    %c0_9 = arith.constant 0 : index
    %c0_10 = arith.constant 0 : index
    %c0_11 = arith.constant 0 : index
    %16 = vector.load %arg5[%c0_9, %c0_10, %c0_11] : memref<2x48x32xf32, #tpu.memory_space<vmem>>, vector<1x48x32xf32>
    %17 = vector.shape_cast %16 : vector<1x48x32xf32> to vector<48x32xf32>
    %c1 = arith.constant 1 : index
    %c0_12 = arith.constant 0 : index
    %c0_13 = arith.constant 0 : index
    %18 = vector.load %arg5[%c1, %c0_12, %c0_13] : memref<2x48x32xf32, #tpu.memory_space<vmem>>, vector<1x48x32xf32>
    %19 = vector.shape_cast %18 : vector<1x48x32xf32> to vector<48x32xf32>
    %c0_14 = arith.constant 0 : index
    %c0_15 = arith.constant 0 : index
    %20 = vector.load %arg6[%c0_14, %c0_15] : memref<32x18xf32, #tpu.memory_space<vmem>>, vector<32x18xf32>
    %c0_16 = arith.constant 0 : index
    %c0_17 = arith.constant 0 : index
    %21 = vector.load %arg8[%c0_16, %c0_17] : memref<48x32xf32, #tpu.memory_space<vmem>>, vector<48x32xf32>
    %c0_18 = arith.constant 0 : index
    %c0_19 = arith.constant 0 : index
    %22 = vector.load %arg7[%c0_18, %c0_19] : memref<1x18xf32, #tpu.memory_space<vmem>>, vector<1x18xf32>
    %23 = vector.shape_cast %22 : vector<1x18xf32> to vector<1x18xf32>
    %24 = vector.broadcast %23 : vector<1x18xf32> to vector<2x18xf32>
    %c0_20 = arith.constant 0 : index
    %c0_21 = arith.constant 0 : index
    %25 = vector.load %arg9[%c0_20, %c0_21] : memref<1x32xf32, #tpu.memory_space<vmem>>, vector<1x32xf32>
    %26 = vector.shape_cast %25 : vector<1x32xf32> to vector<1x32xf32>
    %27 = vector.broadcast %26 : vector<1x32xf32> to vector<2x32xf32>
    %cst_22 = arith.constant 0.000000e+00 : f32
    %28 = vector.broadcast %cst_22 : f32 to vector<2x56xf32>
    %c0_23 = arith.constant 0 : index
    %c0_24 = arith.constant 0 : index
    %29 = vector.load %arg1[%c0_23, %c0_24] : memref<2x56xf32, #tpu.memory_space<vmem>>, vector<2x56xf32>
    %30 = vector.extract_strided_slice %29 {offsets = [0, 0], sizes = [2, 32], strides = [1, 1]} : vector<2x56xf32> to vector<2x32xf32>
    %31 = vector.extract_strided_slice %29 {offsets = [0, 32], sizes = [2, 16], strides = [1, 1]} : vector<2x56xf32> to vector<2x16xf32>
    %32 = vector.extract_strided_slice %29 {offsets = [0, 48], sizes = [2, 8], strides = [1, 1]} : vector<2x56xf32> to vector<2x8xf32>
    %33 = vector.extract_strided_slice %15 {offsets = [0, 0], sizes = [2, 64], strides = [1, 1]} : vector<16x64xf32> to vector<2x64xf32>
    %34 = vector.extract_strided_slice %33 {offsets = [0, 0], sizes = [2, 32], strides = [1, 1]} : vector<2x64xf32> to vector<2x32xf32>
    %35 = tpu.concatenate %30, %31 in 1 : vector<2x32xf32>, vector<2x16xf32> -> vector<2x48xf32>
    %cst_25 = arith.constant dense<0.000000e+00> : vector<2x32xf32>
    %36 = tpu.matmul %35, %17, %cst_25 {dimension_numbers = #tpu.dot_dimension_numbers<[1], [0], [0], [1], [0, 0, 1, 1], [], []>} : vector<2x48xf32>, vector<48x32xf32>, vector<2x32xf32> -> vector<2x32xf32>
    %37 = arith.addf %34, %36 : vector<2x32xf32>
    %38 = math.tanh %37 : vector<2x32xf32>
    %39 = vector.extract_strided_slice %33 {offsets = [0, 32], sizes = [2, 32], strides = [1, 1]} : vector<2x64xf32> to vector<2x32xf32>
    %40 = tpu.concatenate %38, %31 in 1 : vector<2x32xf32>, vector<2x16xf32> -> vector<2x48xf32>
    %cst_26 = arith.constant dense<0.000000e+00> : vector<2x32xf32>
    %41 = tpu.matmul %40, %19, %cst_26 {dimension_numbers = #tpu.dot_dimension_numbers<[1], [0], [0], [1], [0, 0, 1, 1], [], []>} : vector<2x48xf32>, vector<48x32xf32>, vector<2x32xf32> -> vector<2x32xf32>
    %42 = arith.addf %39, %41 : vector<2x32xf32>
    %43 = math.tanh %42 : vector<2x32xf32>
    %cst_27 = arith.constant dense<0.000000e+00> : vector<2x18xf32>
    %44 = tpu.matmul %43, %20, %cst_27 {dimension_numbers = #tpu.dot_dimension_numbers<[1], [0], [0], [1], [0, 0, 1, 1], [], []>} : vector<2x32xf32>, vector<32x18xf32>, vector<2x18xf32> -> vector<2x18xf32>
    %45 = arith.addf %44, %24 : vector<2x18xf32>
    %46 = vector.extract_strided_slice %45 {offsets = [0, 0], sizes = [2, 16], strides = [1, 1]} : vector<2x18xf32> to vector<2x16xf32>
    %47 = vector.extract_strided_slice %45 {offsets = [0, 16], sizes = [2, 1], strides = [1, 1]} : vector<2x18xf32> to vector<2x1xf32>
    %cst_28 = arith.constant 0.000000e+00 : f32
    %48 = vector.broadcast %cst_28 : f32 to vector<2x1xf32>
    %49 = arith.maximumf %47, %48 : vector<2x1xf32>
    %50 = vector.broadcast %cst_28 : f32 to vector<2x1xf32>
    %51 = arith.subf %47, %50 : vector<2x1xf32>
    %52 = arith.cmpf one, %51, %51 : vector<2x1xf32>
    %53 = vector.broadcast %cst_28 : f32 to vector<2x1xf32>
    %54 = arith.addf %47, %53 : vector<2x1xf32>
    %55 = math.absf %51 : vector<2x1xf32>
    %cst_29 = arith.constant 0.000000e+00 : f32
    %56 = vector.broadcast %cst_29 : f32 to vector<2x1xf32>
    %57 = arith.subf %56, %55 : vector<2x1xf32>
    %58 = math.exp %57 : vector<2x1xf32>
    %59 = math.log1p %58 : vector<2x1xf32>
    %60 = arith.addf %49, %59 : vector<2x1xf32>
    %61 = arith.select %52, %54, %60 : vector<2x1xi1>, vector<2x1xf32>
    %62 = vector.extract_strided_slice %45 {offsets = [0, 17], sizes = [2, 1], strides = [1, 1]} : vector<2x18xf32> to vector<2x1xf32>
    %63 = arith.negf %62 : vector<2x1xf32>
    %64 = math.exp %63 : vector<2x1xf32>
    %cst_30 = arith.constant 1.000000e+00 : f32
    %65 = vector.broadcast %cst_30 : f32 to vector<2x1xf32>
    %66 = arith.addf %65, %64 : vector<2x1xf32>
    %67 = arith.divf %65, %66 : vector<2x1xf32>
    %cst_31 = arith.constant dense<0.000000e+00> : vector<2x8xf32>
    %68 = tpu.matmul %46, %9, %cst_31 {dimension_numbers = #tpu.dot_dimension_numbers<[1], [0], [0], [1], [0, 0, 1, 1], [], []>} : vector<2x16xf32>, vector<16x8xf32>, vector<2x8xf32> -> vector<2x8xf32>
    %69 = arith.mulf %46, %46 : vector<2x16xf32>
    %cst_32 = arith.constant dense<0.000000e+00> : vector<2xf32>
    %70 = vector.multi_reduction <add>, %69, %cst_32 [1] : vector<2x16xf32> to vector<2xf32>
    %71 = vector.shape_cast %70 : vector<2xf32> to vector<2x1xf32>
    %cst_33 = arith.constant 9.99999996E-13 : f32
    %72 = vector.broadcast %cst_33 : f32 to vector<2x1xf32>
    %73 = arith.addf %71, %72 : vector<2x1xf32>
    %74 = math.rsqrt %73 : vector<2x1xf32>
    %75 = arith.mulf %61, %74 : vector<2x1xf32>
    %76 = vector.broadcast %75 : vector<2x1xf32> to vector<2x8xf32>
    %77 = arith.mulf %76, %68 : vector<2x8xf32>
    %78 = math.exp %77 : vector<2x8xf32>
    %cst_34 = arith.constant dense<0.000000e+00> : vector<2xf32>
    %79 = vector.multi_reduction <add>, %78, %cst_34 [1] : vector<2x8xf32> to vector<2xf32>
    %80 = vector.shape_cast %79 : vector<2xf32> to vector<2x1xf32>
    %81 = tpu.reciprocal %80 {approx = true} : vector<2x1xf32> -> vector<2x1xf32>
    %82 = vector.broadcast %81 : vector<2x1xf32> to vector<2x8xf32>
    %83 = arith.mulf %78, %82 : vector<2x8xf32>
    %84 = vector.broadcast %67 : vector<2x1xf32> to vector<2x8xf32>
    %85 = arith.mulf %84, %83 : vector<2x8xf32>
    %cst_35 = arith.constant 1.000000e+00 : f32
    %86 = vector.broadcast %cst_35 : f32 to vector<2x1xf32>
    %87 = arith.subf %86, %67 : vector<2x1xf32>
    %88 = vector.broadcast %87 : vector<2x1xf32> to vector<2x8xf32>
    %89 = arith.mulf %88, %32 : vector<2x8xf32>
    %90 = arith.addf %85, %89 : vector<2x8xf32>
    %cst_36 = arith.constant dense<0.000000e+00> : vector<2x16xf32>
    %91 = tpu.matmul %90, %0, %cst_36 {dimension_numbers = #tpu.dot_dimension_numbers<[1], [0], [0], [1], [0, 0, 1, 1], [], []>} : vector<2x8xf32>, vector<8x16xf32>, vector<2x16xf32> -> vector<2x16xf32>
    %92 = tpu.concatenate %43, %91 in 1 : vector<2x32xf32>, vector<2x16xf32> -> vector<2x48xf32>
    %cst_37 = arith.constant dense<0.000000e+00> : vector<2x32xf32>
    %93 = tpu.matmul %92, %21, %cst_37 {dimension_numbers = #tpu.dot_dimension_numbers<[1], [0], [0], [1], [0, 0, 1, 1], [], []>} : vector<2x48xf32>, vector<48x32xf32>, vector<2x32xf32> -> vector<2x32xf32>
    %94 = arith.addf %93, %27 : vector<2x32xf32>
    %95 = vector.extract_strided_slice %94 {offsets = [0, 0], sizes = [2, 16], strides = [1, 1]} : vector<2x32xf32> to vector<2x16xf32>
    %96 = arith.negf %95 : vector<2x16xf32>
    %97 = math.exp %96 : vector<2x16xf32>
    %cst_38 = arith.constant 1.000000e+00 : f32
    %98 = vector.broadcast %cst_38 : f32 to vector<2x16xf32>
    %99 = arith.addf %98, %97 : vector<2x16xf32>
    %100 = arith.divf %98, %99 : vector<2x16xf32>
    %101 = vector.extract_strided_slice %94 {offsets = [0, 16], sizes = [2, 16], strides = [1, 1]} : vector<2x32xf32> to vector<2x16xf32>
    %102 = arith.negf %101 : vector<2x16xf32>
    %103 = math.exp %102 : vector<2x16xf32>
    %cst_39 = arith.constant 1.000000e+00 : f32
    %104 = vector.broadcast %cst_39 : f32 to vector<2x16xf32>
    %105 = arith.addf %104, %103 : vector<2x16xf32>
    %106 = arith.divf %104, %105 : vector<2x16xf32>
    %107 = arith.addf %100, %106 : vector<2x16xf32>
    %108 = arith.negf %107 : vector<2x16xf32>
    %109 = math.exp %108 : vector<2x16xf32>
    %cst_40 = arith.constant 1.000000e+00 : f32
    %110 = vector.broadcast %cst_40 : f32 to vector<2x16xf32>
    %111 = arith.addf %110, %109 : vector<2x16xf32>
    %112 = arith.divf %110, %111 : vector<2x16xf32>
    %113 = tpu.concatenate %112, %91, %43, %90, %28 in 1 : vector<2x16xf32>, vector<2x16xf32>, vector<2x32xf32>, vector<2x8xf32>, vector<2x56xf32> -> vector<2x128xf32>
    %c0_41 = arith.constant 0 : index
    %c0_42 = arith.constant 0 : index
    %c0_43 = arith.constant 0 : index
    %114 = vector.load %arg10[%c0_41, %c0_42, %c0_43] : memref<8x2x128xf32, #tpu.memory_space<vmem>>, vector<1x2x128xf32>
    %115 = vector.shape_cast %114 : vector<1x2x128xf32> to vector<2x128xf32>
    %116 = vector.shape_cast %113 : vector<2x128xf32> to vector<1x2x128xf32>
    tpu.vector_store %arg10[%c0_41, %c0_42, %c0_43], %116 {strides = array<i32>} : memref<8x2x128xf32, #tpu.memory_space<vmem>>, vector<1x2x128xf32>,
    %117 = vector.extract_strided_slice %15 {offsets = [2, 0], sizes = [2, 64], strides = [1, 1]} : vector<16x64xf32> to vector<2x64xf32>
    %118 = vector.extract_strided_slice %117 {offsets = [0, 0], sizes = [2, 32], strides = [1, 1]} : vector<2x64xf32> to vector<2x32xf32>
    %119 = tpu.concatenate %43, %91 in 1 : vector<2x32xf32>, vector<2x16xf32> -> vector<2x48xf32>
    %cst_44 = arith.constant dense<0.000000e+00> : vector<2x32xf32>
    %120 = tpu.matmul %119, %17, %cst_44 {dimension_numbers = #tpu.dot_dimension_numbers<[1], [0], [0], [1], [0, 0, 1, 1], [], []>} : vector<2x48xf32>, vector<48x32xf32>, vector<2x32xf32> -> vector<2x32xf32>
    %121 = arith.addf %118, %120 : vector<2x32xf32>
    %122 = math.tanh %121 : vector<2x32xf32>
    %123 = vector.extract_strided_slice %117 {offsets = [0, 32], sizes = [2, 32], strides = [1, 1]} : vector<2x64xf32> to vector<2x32xf32>
    %124 = tpu.concatenate %122, %91 in 1 : vector<2x32xf32>, vector<2x16xf32> -> vector<2x48xf32>
    %cst_45 = arith.constant dense<0.000000e+00> : vector<2x32xf32>
    %125 = tpu.matmul %124, %19, %cst_45 {dimension_numbers = #tpu.dot_dimension_numbers<[1], [0], [0], [1], [0, 0, 1, 1], [], []>} : vector<2x48xf32>, vector<48x32xf32>, vector<2x32xf32> -> vector<2x32xf32>
    %126 = arith.addf %123, %125 : vector<2x32xf32>
    %127 = math.tanh %126 : vector<2x32xf32>
    %cst_46 = arith.constant dense<0.000000e+00> : vector<2x18xf32>
    %128 = tpu.matmul %127, %20, %cst_46 {dimension_numbers = #tpu.dot_dimension_numbers<[1], [0], [0], [1], [0, 0, 1, 1], [], []>} : vector<2x32xf32>, vector<32x18xf32>, vector<2x18xf32> -> vector<2x18xf32>
    %129 = arith.addf %128, %24 : vector<2x18xf32>
    %130 = vector.extract_strided_slice %129 {offsets = [0, 0], sizes = [2, 16], strides = [1, 1]} : vector<2x18xf32> to vector<2x16xf32>
    %131 = vector.extract_strided_slice %129 {offsets = [0, 16], sizes = [2, 1], strides = [1, 1]} : vector<2x18xf32> to vector<2x1xf32>
    %cst_47 = arith.constant 0.000000e+00 : f32
    %132 = vector.broadcast %cst_47 : f32 to vector<2x1xf32>
    %133 = arith.maximumf %131, %132 : vector<2x1xf32>
    %134 = vector.broadcast %cst_47 : f32 to vector<2x1xf32>
    %135 = arith.subf %131, %134 : vector<2x1xf32>
    %136 = arith.cmpf one, %135, %135 : vector<2x1xf32>
    %137 = vector.broadcast %cst_47 : f32 to vector<2x1xf32>
    %138 = arith.addf %131, %137 : vector<2x1xf32>
    %139 = math.absf %135 : vector<2x1xf32>
    %cst_48 = arith.constant 0.000000e+00 : f32
    %140 = vector.broadcast %cst_48 : f32 to vector<2x1xf32>
    %141 = arith.subf %140, %139 : vector<2x1xf32>
    %142 = math.exp %141 : vector<2x1xf32>
    %143 = math.log1p %142 : vector<2x1xf32>
    %144 = arith.addf %133, %143 : vector<2x1xf32>
    %145 = arith.select %136, %138, %144 : vector<2x1xi1>, vector<2x1xf32>
    %146 = vector.extract_strided_slice %129 {offsets = [0, 17], sizes = [2, 1], strides = [1, 1]} : vector<2x18xf32> to vector<2x1xf32>
    %147 = arith.negf %146 : vector<2x1xf32>
    %148 = math.exp %147 : vector<2x1xf32>
    %cst_49 = arith.constant 1.000000e+00 : f32
    %149 = vector.broadcast %cst_49 : f32 to vector<2x1xf32>
    %150 = arith.addf %149, %148 : vector<2x1xf32>
    %151 = arith.divf %149, %150 : vector<2x1xf32>
    %cst_50 = arith.constant dense<0.000000e+00> : vector<2x8xf32>
    %152 = tpu.matmul %130, %9, %cst_50 {dimension_numbers = #tpu.dot_dimension_numbers<[1], [0], [0], [1], [0, 0, 1, 1], [], []>} : vector<2x16xf32>, vector<16x8xf32>, vector<2x8xf32> -> vector<2x8xf32>
    %153 = arith.mulf %130, %130 : vector<2x16xf32>
    %cst_51 = arith.constant dense<0.000000e+00> : vector<2xf32>
    %154 = vector.multi_reduction <add>, %153, %cst_51 [1] : vector<2x16xf32> to vector<2xf32>
    %155 = vector.shape_cast %154 : vector<2xf32> to vector<2x1xf32>
    %cst_52 = arith.constant 9.99999996E-13 : f32
    %156 = vector.broadcast %cst_52 : f32 to vector<2x1xf32>
    %157 = arith.addf %155, %156 : vector<2x1xf32>
    %158 = math.rsqrt %157 : vector<2x1xf32>
    %159 = arith.mulf %145, %158 : vector<2x1xf32>
    %160 = vector.broadcast %159 : vector<2x1xf32> to vector<2x8xf32>
    %161 = arith.mulf %160, %152 : vector<2x8xf32>
    %162 = math.exp %161 : vector<2x8xf32>
    %cst_53 = arith.constant dense<0.000000e+00> : vector<2xf32>
    %163 = vector.multi_reduction <add>, %162, %cst_53 [1] : vector<2x8xf32> to vector<2xf32>
    %164 = vector.shape_cast %163 : vector<2xf32> to vector<2x1xf32>
    %165 = tpu.reciprocal %164 {approx = true} : vector<2x1xf32> -> vector<2x1xf32>
    %166 = vector.broadcast %165 : vector<2x1xf32> to vector<2x8xf32>
    %167 = arith.mulf %162, %166 : vector<2x8xf32>
    %168 = vector.broadcast %151 : vector<2x1xf32> to vector<2x8xf32>
    %169 = arith.mulf %168, %167 : vector<2x8xf32>
    %cst_54 = arith.constant 1.000000e+00 : f32
    %170 = vector.broadcast %cst_54 : f32 to vector<2x1xf32>
    %171 = arith.subf %170, %151 : vector<2x1xf32>
    %172 = vector.broadcast %171 : vector<2x1xf32> to vector<2x8xf32>
    %173 = arith.mulf %172, %90 : vector<2x8xf32>
    %174 = arith.addf %169, %173 : vector<2x8xf32>
    %cst_55 = arith.constant dense<0.000000e+00> : vector<2x16xf32>
    %175 = tpu.matmul %174, %0, %cst_55 {dimension_numbers = #tpu.dot_dimension_numbers<[1], [0], [0], [1], [0, 0, 1, 1], [], []>} : vector<2x8xf32>, vector<8x16xf32>, vector<2x16xf32> -> vector<2x16xf32>
    %176 = tpu.concatenate %127, %175 in 1 : vector<2x32xf32>, vector<2x16xf32> -> vector<2x48xf32>
    %cst_56 = arith.constant dense<0.000000e+00> : vector<2x32xf32>
    %177 = tpu.matmul %176, %21, %cst_56 {dimension_numbers = #tpu.dot_dimension_numbers<[1], [0], [0], [1], [0, 0, 1, 1], [], []>} : vector<2x48xf32>, vector<48x32xf32>, vector<2x32xf32> -> vector<2x32xf32>
    %178 = arith.addf %177, %27 : vector<2x32xf32>
    %179 = vector.extract_strided_slice %178 {offsets = [0, 0], sizes = [2, 16], strides = [1, 1]} : vector<2x32xf32> to vector<2x16xf32>
    %180 = arith.negf %179 : vector<2x16xf32>
    %181 = math.exp %180 : vector<2x16xf32>
    %cst_57 = arith.constant 1.000000e+00 : f32
    %182 = vector.broadcast %cst_57 : f32 to vector<2x16xf32>
    %183 = arith.addf %182, %181 : vector<2x16xf32>
    %184 = arith.divf %182, %183 : vector<2x16xf32>
    %185 = vector.extract_strided_slice %178 {offsets = [0, 16], sizes = [2, 16], strides = [1, 1]} : vector<2x32xf32> to vector<2x16xf32>
    %186 = arith.negf %185 : vector<2x16xf32>
    %187 = math.exp %186 : vector<2x16xf32>
    %cst_58 = arith.constant 1.000000e+00 : f32
    %188 = vector.broadcast %cst_58 : f32 to vector<2x16xf32>
    %189 = arith.addf %188, %187 : vector<2x16xf32>
    %190 = arith.divf %188, %189 : vector<2x16xf32>
    %191 = arith.addf %184, %190 : vector<2x16xf32>
    %192 = arith.negf %191 : vector<2x16xf32>
    %193 = math.exp %192 : vector<2x16xf32>
    %cst_59 = arith.constant 1.000000e+00 : f32
    %194 = vector.broadcast %cst_59 : f32 to vector<2x16xf32>
    %195 = arith.addf %194, %193 : vector<2x16xf32>
    %196 = arith.divf %194, %195 : vector<2x16xf32>
    %197 = tpu.concatenate %196, %175, %127, %174, %28 in 1 : vector<2x16xf32>, vector<2x16xf32>, vector<2x32xf32>, vector<2x8xf32>, vector<2x56xf32> -> vector<2x128xf32>
    %c1_60 = arith.constant 1 : index
    %c0_61 = arith.constant 0 : index
    %c0_62 = arith.constant 0 : index
    %198 = vector.load %arg10[%c1_60, %c0_61, %c0_62] : memref<8x2x128xf32, #tpu.memory_space<vmem>>, vector<1x2x128xf32>
    %199 = vector.shape_cast %198 : vector<1x2x128xf32> to vector<2x128xf32>
    %200 = vector.shape_cast %197 : vector<2x128xf32> to vector<1x2x128xf32>
    tpu.vector_store %arg10[%c1_60, %c0_61, %c0_62], %200 {strides = array<i32>} : memref<8x2x128xf32, #tpu.memory_space<vmem>>, vector<1x2x128xf32>,
    %201 = vector.extract_strided_slice %15 {offsets = [4, 0], sizes = [2, 64], strides = [1, 1]} : vector<16x64xf32> to vector<2x64xf32>
    %202 = vector.extract_strided_slice %201 {offsets = [0, 0], sizes = [2, 32], strides = [1, 1]} : vector<2x64xf32> to vector<2x32xf32>
    %203 = tpu.concatenate %127, %175 in 1 : vector<2x32xf32>, vector<2x16xf32> -> vector<2x48xf32>
    %cst_63 = arith.constant dense<0.000000e+00> : vector<2x32xf32>
    %204 = tpu.matmul %203, %17, %cst_63 {dimension_numbers = #tpu.dot_dimension_numbers<[1], [0], [0], [1], [0, 0, 1, 1], [], []>} : vector<2x48xf32>, vector<48x32xf32>, vector<2x32xf32> -> vector<2x32xf32>
    %205 = arith.addf %202, %204 : vector<2x32xf32>
    %206 = math.tanh %205 : vector<2x32xf32>
    %207 = vector.extract_strided_slice %201 {offsets = [0, 32], sizes = [2, 32], strides = [1, 1]} : vector<2x64xf32> to vector<2x32xf32>
    %208 = tpu.concatenate %206, %175 in 1 : vector<2x32xf32>, vector<2x16xf32> -> vector<2x48xf32>
    %cst_64 = arith.constant dense<0.000000e+00> : vector<2x32xf32>
    %209 = tpu.matmul %208, %19, %cst_64 {dimension_numbers = #tpu.dot_dimension_numbers<[1], [0], [0], [1], [0, 0, 1, 1], [], []>} : vector<2x48xf32>, vector<48x32xf32>, vector<2x32xf32> -> vector<2x32xf32>
    %210 = arith.addf %207, %209 : vector<2x32xf32>
    %211 = math.tanh %210 : vector<2x32xf32>
    %cst_65 = arith.constant dense<0.000000e+00> : vector<2x18xf32>
    %212 = tpu.matmul %211, %20, %cst_65 {dimension_numbers = #tpu.dot_dimension_numbers<[1], [0], [0], [1], [0, 0, 1, 1], [], []>} : vector<2x32xf32>, vector<32x18xf32>, vector<2x18xf32> -> vector<2x18xf32>
    %213 = arith.addf %212, %24 : vector<2x18xf32>
    %214 = vector.extract_strided_slice %213 {offsets = [0, 0], sizes = [2, 16], strides = [1, 1]} : vector<2x18xf32> to vector<2x16xf32>
    %215 = vector.extract_strided_slice %213 {offsets = [0, 16], sizes = [2, 1], strides = [1, 1]} : vector<2x18xf32> to vector<2x1xf32>
    %cst_66 = arith.constant 0.000000e+00 : f32
    %216 = vector.broadcast %cst_66 : f32 to vector<2x1xf32>
    %217 = arith.maximumf %215, %216 : vector<2x1xf32>
    %218 = vector.broadcast %cst_66 : f32 to vector<2x1xf32>
    %219 = arith.subf %215, %218 : vector<2x1xf32>
    %220 = arith.cmpf one, %219, %219 : vector<2x1xf32>
    %221 = vector.broadcast %cst_66 : f32 to vector<2x1xf32>
    %222 = arith.addf %215, %221 : vector<2x1xf32>
    %223 = math.absf %219 : vector<2x1xf32>
    %cst_67 = arith.constant 0.000000e+00 : f32
    %224 = vector.broadcast %cst_67 : f32 to vector<2x1xf32>
    %225 = arith.subf %224, %223 : vector<2x1xf32>
    %226 = math.exp %225 : vector<2x1xf32>
    %227 = math.log1p %226 : vector<2x1xf32>
    %228 = arith.addf %217, %227 : vector<2x1xf32>
    %229 = arith.select %220, %222, %228 : vector<2x1xi1>, vector<2x1xf32>
    %230 = vector.extract_strided_slice %213 {offsets = [0, 17], sizes = [2, 1], strides = [1, 1]} : vector<2x18xf32> to vector<2x1xf32>
    %231 = arith.negf %230 : vector<2x1xf32>
    %232 = math.exp %231 : vector<2x1xf32>
    %cst_68 = arith.constant 1.000000e+00 : f32
    %233 = vector.broadcast %cst_68 : f32 to vector<2x1xf32>
    %234 = arith.addf %233, %232 : vector<2x1xf32>
    %235 = arith.divf %233, %234 : vector<2x1xf32>
    %cst_69 = arith.constant dense<0.000000e+00> : vector<2x8xf32>
    %236 = tpu.matmul %214, %9, %cst_69 {dimension_numbers = #tpu.dot_dimension_numbers<[1], [0], [0], [1], [0, 0, 1, 1], [], []>} : vector<2x16xf32>, vector<16x8xf32>, vector<2x8xf32> -> vector<2x8xf32>
    %237 = arith.mulf %214, %214 : vector<2x16xf32>
    %cst_70 = arith.constant dense<0.000000e+00> : vector<2xf32>
    %238 = vector.multi_reduction <add>, %237, %cst_70 [1] : vector<2x16xf32> to vector<2xf32>
    %239 = vector.shape_cast %238 : vector<2xf32> to vector<2x1xf32>
    %cst_71 = arith.constant 9.99999996E-13 : f32
    %240 = vector.broadcast %cst_71 : f32 to vector<2x1xf32>
    %241 = arith.addf %239, %240 : vector<2x1xf32>
    %242 = math.rsqrt %241 : vector<2x1xf32>
    %243 = arith.mulf %229, %242 : vector<2x1xf32>
    %244 = vector.broadcast %243 : vector<2x1xf32> to vector<2x8xf32>
    %245 = arith.mulf %244, %236 : vector<2x8xf32>
    %246 = math.exp %245 : vector<2x8xf32>
    %cst_72 = arith.constant dense<0.000000e+00> : vector<2xf32>
    %247 = vector.multi_reduction <add>, %246, %cst_72 [1] : vector<2x8xf32> to vector<2xf32>
    %248 = vector.shape_cast %247 : vector<2xf32> to vector<2x1xf32>
    %249 = tpu.reciprocal %248 {approx = true} : vector<2x1xf32> -> vector<2x1xf32>
    %250 = vector.broadcast %249 : vector<2x1xf32> to vector<2x8xf32>
    %251 = arith.mulf %246, %250 : vector<2x8xf32>
    %252 = vector.broadcast %235 : vector<2x1xf32> to vector<2x8xf32>
    %253 = arith.mulf %252, %251 : vector<2x8xf32>
    %cst_73 = arith.constant 1.000000e+00 : f32
    %254 = vector.broadcast %cst_73 : f32 to vector<2x1xf32>
    %255 = arith.subf %254, %235 : vector<2x1xf32>
    %256 = vector.broadcast %255 : vector<2x1xf32> to vector<2x8xf32>
    %257 = arith.mulf %256, %174 : vector<2x8xf32>
    %258 = arith.addf %253, %257 : vector<2x8xf32>
    %cst_74 = arith.constant dense<0.000000e+00> : vector<2x16xf32>
    %259 = tpu.matmul %258, %0, %cst_74 {dimension_numbers = #tpu.dot_dimension_numbers<[1], [0], [0], [1], [0, 0, 1, 1], [], []>} : vector<2x8xf32>, vector<8x16xf32>, vector<2x16xf32> -> vector<2x16xf32>
    %260 = tpu.concatenate %211, %259 in 1 : vector<2x32xf32>, vector<2x16xf32> -> vector<2x48xf32>
    %cst_75 = arith.constant dense<0.000000e+00> : vector<2x32xf32>
    %261 = tpu.matmul %260, %21, %cst_75 {dimension_numbers = #tpu.dot_dimension_numbers<[1], [0], [0], [1], [0, 0, 1, 1], [], []>} : vector<2x48xf32>, vector<48x32xf32>, vector<2x32xf32> -> vector<2x32xf32>
    %262 = arith.addf %261, %27 : vector<2x32xf32>
    %263 = vector.extract_strided_slice %262 {offsets = [0, 0], sizes = [2, 16], strides = [1, 1]} : vector<2x32xf32> to vector<2x16xf32>
    %264 = arith.negf %263 : vector<2x16xf32>
    %265 = math.exp %264 : vector<2x16xf32>
    %cst_76 = arith.constant 1.000000e+00 : f32
    %266 = vector.broadcast %cst_76 : f32 to vector<2x16xf32>
    %267 = arith.addf %266, %265 : vector<2x16xf32>
    %268 = arith.divf %266, %267 : vector<2x16xf32>
    %269 = vector.extract_strided_slice %262 {offsets = [0, 16], sizes = [2, 16], strides = [1, 1]} : vector<2x32xf32> to vector<2x16xf32>
    %270 = arith.negf %269 : vector<2x16xf32>
    %271 = math.exp %270 : vector<2x16xf32>
    %cst_77 = arith.constant 1.000000e+00 : f32
    %272 = vector.broadcast %cst_77 : f32 to vector<2x16xf32>
    %273 = arith.addf %272, %271 : vector<2x16xf32>
    %274 = arith.divf %272, %273 : vector<2x16xf32>
    %275 = arith.addf %268, %274 : vector<2x16xf32>
    %276 = arith.negf %275 : vector<2x16xf32>
    %277 = math.exp %276 : vector<2x16xf32>
    %cst_78 = arith.constant 1.000000e+00 : f32
    %278 = vector.broadcast %cst_78 : f32 to vector<2x16xf32>
    %279 = arith.addf %278, %277 : vector<2x16xf32>
    %280 = arith.divf %278, %279 : vector<2x16xf32>
    %281 = tpu.concatenate %280, %259, %211, %258, %28 in 1 : vector<2x16xf32>, vector<2x16xf32>, vector<2x32xf32>, vector<2x8xf32>, vector<2x56xf32> -> vector<2x128xf32>
    %c2 = arith.constant 2 : index
    %c0_79 = arith.constant 0 : index
    %c0_80 = arith.constant 0 : index
    %282 = vector.load %arg10[%c2, %c0_79, %c0_80] : memref<8x2x128xf32, #tpu.memory_space<vmem>>, vector<1x2x128xf32>
    %283 = vector.shape_cast %282 : vector<1x2x128xf32> to vector<2x128xf32>
    %284 = vector.shape_cast %281 : vector<2x128xf32> to vector<1x2x128xf32>
    tpu.vector_store %arg10[%c2, %c0_79, %c0_80], %284 {strides = array<i32>} : memref<8x2x128xf32, #tpu.memory_space<vmem>>, vector<1x2x128xf32>,
    %285 = vector.extract_strided_slice %15 {offsets = [6, 0], sizes = [2, 64], strides = [1, 1]} : vector<16x64xf32> to vector<2x64xf32>
    %286 = vector.extract_strided_slice %285 {offsets = [0, 0], sizes = [2, 32], strides = [1, 1]} : vector<2x64xf32> to vector<2x32xf32>
    %287 = tpu.concatenate %211, %259 in 1 : vector<2x32xf32>, vector<2x16xf32> -> vector<2x48xf32>
    %cst_81 = arith.constant dense<0.000000e+00> : vector<2x32xf32>
    %288 = tpu.matmul %287, %17, %cst_81 {dimension_numbers = #tpu.dot_dimension_numbers<[1], [0], [0], [1], [0, 0, 1, 1], [], []>} : vector<2x48xf32>, vector<48x32xf32>, vector<2x32xf32> -> vector<2x32xf32>
    %289 = arith.addf %286, %288 : vector<2x32xf32>
    %290 = math.tanh %289 : vector<2x32xf32>
    %291 = vector.extract_strided_slice %285 {offsets = [0, 32], sizes = [2, 32], strides = [1, 1]} : vector<2x64xf32> to vector<2x32xf32>
    %292 = tpu.concatenate %290, %259 in 1 : vector<2x32xf32>, vector<2x16xf32> -> vector<2x48xf32>
    %cst_82 = arith.constant dense<0.000000e+00> : vector<2x32xf32>
    %293 = tpu.matmul %292, %19, %cst_82 {dimension_numbers = #tpu.dot_dimension_numbers<[1], [0], [0], [1], [0, 0, 1, 1], [], []>} : vector<2x48xf32>, vector<48x32xf32>, vector<2x32xf32> -> vector<2x32xf32>
    %294 = arith.addf %291, %293 : vector<2x32xf32>
    %295 = math.tanh %294 : vector<2x32xf32>
    %cst_83 = arith.constant dense<0.000000e+00> : vector<2x18xf32>
    %296 = tpu.matmul %295, %20, %cst_83 {dimension_numbers = #tpu.dot_dimension_numbers<[1], [0], [0], [1], [0, 0, 1, 1], [], []>} : vector<2x32xf32>, vector<32x18xf32>, vector<2x18xf32> -> vector<2x18xf32>
    %297 = arith.addf %296, %24 : vector<2x18xf32>
    %298 = vector.extract_strided_slice %297 {offsets = [0, 0], sizes = [2, 16], strides = [1, 1]} : vector<2x18xf32> to vector<2x16xf32>
    %299 = vector.extract_strided_slice %297 {offsets = [0, 16], sizes = [2, 1], strides = [1, 1]} : vector<2x18xf32> to vector<2x1xf32>
    %cst_84 = arith.constant 0.000000e+00 : f32
    %300 = vector.broadcast %cst_84 : f32 to vector<2x1xf32>
    %301 = arith.maximumf %299, %300 : vector<2x1xf32>
    %302 = vector.broadcast %cst_84 : f32 to vector<2x1xf32>
    %303 = arith.subf %299, %302 : vector<2x1xf32>
    %304 = arith.cmpf one, %303, %303 : vector<2x1xf32>
    %305 = vector.broadcast %cst_84 : f32 to vector<2x1xf32>
    %306 = arith.addf %299, %305 : vector<2x1xf32>
    %307 = math.absf %303 : vector<2x1xf32>
    %cst_85 = arith.constant 0.000000e+00 : f32
    %308 = vector.broadcast %cst_85 : f32 to vector<2x1xf32>
    %309 = arith.subf %308, %307 : vector<2x1xf32>
    %310 = math.exp %309 : vector<2x1xf32>
    %311 = math.log1p %310 : vector<2x1xf32>
    %312 = arith.addf %301, %311 : vector<2x1xf32>
    %313 = arith.select %304, %306, %312 : vector<2x1xi1>, vector<2x1xf32>
    %314 = vector.extract_strided_slice %297 {offsets = [0, 17], sizes = [2, 1], strides = [1, 1]} : vector<2x18xf32> to vector<2x1xf32>
    %315 = arith.negf %314 : vector<2x1xf32>
    %316 = math.exp %315 : vector<2x1xf32>
    %cst_86 = arith.constant 1.000000e+00 : f32
    %317 = vector.broadcast %cst_86 : f32 to vector<2x1xf32>
    %318 = arith.addf %317, %316 : vector<2x1xf32>
    %319 = arith.divf %317, %318 : vector<2x1xf32>
    %cst_87 = arith.constant dense<0.000000e+00> : vector<2x8xf32>
    %320 = tpu.matmul %298, %9, %cst_87 {dimension_numbers = #tpu.dot_dimension_numbers<[1], [0], [0], [1], [0, 0, 1, 1], [], []>} : vector<2x16xf32>, vector<16x8xf32>, vector<2x8xf32> -> vector<2x8xf32>
    %321 = arith.mulf %298, %298 : vector<2x16xf32>
    %cst_88 = arith.constant dense<0.000000e+00> : vector<2xf32>
    %322 = vector.multi_reduction <add>, %321, %cst_88 [1] : vector<2x16xf32> to vector<2xf32>
    %323 = vector.shape_cast %322 : vector<2xf32> to vector<2x1xf32>
    %cst_89 = arith.constant 9.99999996E-13 : f32
    %324 = vector.broadcast %cst_89 : f32 to vector<2x1xf32>
    %325 = arith.addf %323, %324 : vector<2x1xf32>
    %326 = math.rsqrt %325 : vector<2x1xf32>
    %327 = arith.mulf %313, %326 : vector<2x1xf32>
    %328 = vector.broadcast %327 : vector<2x1xf32> to vector<2x8xf32>
    %329 = arith.mulf %328, %320 : vector<2x8xf32>
    %330 = math.exp %329 : vector<2x8xf32>
    %cst_90 = arith.constant dense<0.000000e+00> : vector<2xf32>
    %331 = vector.multi_reduction <add>, %330, %cst_90 [1] : vector<2x8xf32> to vector<2xf32>
    %332 = vector.shape_cast %331 : vector<2xf32> to vector<2x1xf32>
    %333 = tpu.reciprocal %332 {approx = true} : vector<2x1xf32> -> vector<2x1xf32>
    %334 = vector.broadcast %333 : vector<2x1xf32> to vector<2x8xf32>
    %335 = arith.mulf %330, %334 : vector<2x8xf32>
    %336 = vector.broadcast %319 : vector<2x1xf32> to vector<2x8xf32>
    %337 = arith.mulf %336, %335 : vector<2x8xf32>
    %cst_91 = arith.constant 1.000000e+00 : f32
    %338 = vector.broadcast %cst_91 : f32 to vector<2x1xf32>
    %339 = arith.subf %338, %319 : vector<2x1xf32>
    %340 = vector.broadcast %339 : vector<2x1xf32> to vector<2x8xf32>
    %341 = arith.mulf %340, %258 : vector<2x8xf32>
    %342 = arith.addf %337, %341 : vector<2x8xf32>
    %cst_92 = arith.constant dense<0.000000e+00> : vector<2x16xf32>
    %343 = tpu.matmul %342, %0, %cst_92 {dimension_numbers = #tpu.dot_dimension_numbers<[1], [0], [0], [1], [0, 0, 1, 1], [], []>} : vector<2x8xf32>, vector<8x16xf32>, vector<2x16xf32> -> vector<2x16xf32>
    %344 = tpu.concatenate %295, %343 in 1 : vector<2x32xf32>, vector<2x16xf32> -> vector<2x48xf32>
    %cst_93 = arith.constant dense<0.000000e+00> : vector<2x32xf32>
    %345 = tpu.matmul %344, %21, %cst_93 {dimension_numbers = #tpu.dot_dimension_numbers<[1], [0], [0], [1], [0, 0, 1, 1], [], []>} : vector<2x48xf32>, vector<48x32xf32>, vector<2x32xf32> -> vector<2x32xf32>
    %346 = arith.addf %345, %27 : vector<2x32xf32>
    %347 = vector.extract_strided_slice %346 {offsets = [0, 0], sizes = [2, 16], strides = [1, 1]} : vector<2x32xf32> to vector<2x16xf32>
    %348 = arith.negf %347 : vector<2x16xf32>
    %349 = math.exp %348 : vector<2x16xf32>
    %cst_94 = arith.constant 1.000000e+00 : f32
    %350 = vector.broadcast %cst_94 : f32 to vector<2x16xf32>
    %351 = arith.addf %350, %349 : vector<2x16xf32>
    %352 = arith.divf %350, %351 : vector<2x16xf32>
    %353 = vector.extract_strided_slice %346 {offsets = [0, 16], sizes = [2, 16], strides = [1, 1]} : vector<2x32xf32> to vector<2x16xf32>
    %354 = arith.negf %353 : vector<2x16xf32>
    %355 = math.exp %354 : vector<2x16xf32>
    %cst_95 = arith.constant 1.000000e+00 : f32
    %356 = vector.broadcast %cst_95 : f32 to vector<2x16xf32>
    %357 = arith.addf %356, %355 : vector<2x16xf32>
    %358 = arith.divf %356, %357 : vector<2x16xf32>
    %359 = arith.addf %352, %358 : vector<2x16xf32>
    %360 = arith.negf %359 : vector<2x16xf32>
    %361 = math.exp %360 : vector<2x16xf32>
    %cst_96 = arith.constant 1.000000e+00 : f32
    %362 = vector.broadcast %cst_96 : f32 to vector<2x16xf32>
    %363 = arith.addf %362, %361 : vector<2x16xf32>
    %364 = arith.divf %362, %363 : vector<2x16xf32>
    %365 = tpu.concatenate %364, %343, %295, %342, %28 in 1 : vector<2x16xf32>, vector<2x16xf32>, vector<2x32xf32>, vector<2x8xf32>, vector<2x56xf32> -> vector<2x128xf32>
    %c3 = arith.constant 3 : index
    %c0_97 = arith.constant 0 : index
    %c0_98 = arith.constant 0 : index
    %366 = vector.load %arg10[%c3, %c0_97, %c0_98] : memref<8x2x128xf32, #tpu.memory_space<vmem>>, vector<1x2x128xf32>
    %367 = vector.shape_cast %366 : vector<1x2x128xf32> to vector<2x128xf32>
    %368 = vector.shape_cast %365 : vector<2x128xf32> to vector<1x2x128xf32>
    tpu.vector_store %arg10[%c3, %c0_97, %c0_98], %368 {strides = array<i32>} : memref<8x2x128xf32, #tpu.memory_space<vmem>>, vector<1x2x128xf32>,
    %369 = vector.extract_strided_slice %15 {offsets = [8, 0], sizes = [2, 64], strides = [1, 1]} : vector<16x64xf32> to vector<2x64xf32>
    %370 = vector.extract_strided_slice %369 {offsets = [0, 0], sizes = [2, 32], strides = [1, 1]} : vector<2x64xf32> to vector<2x32xf32>
    %371 = tpu.concatenate %295, %343 in 1 : vector<2x32xf32>, vector<2x16xf32> -> vector<2x48xf32>
    %cst_99 = arith.constant dense<0.000000e+00> : vector<2x32xf32>
    %372 = tpu.matmul %371, %17, %cst_99 {dimension_numbers = #tpu.dot_dimension_numbers<[1], [0], [0], [1], [0, 0, 1, 1], [], []>} : vector<2x48xf32>, vector<48x32xf32>, vector<2x32xf32> -> vector<2x32xf32>
    %373 = arith.addf %370, %372 : vector<2x32xf32>
    %374 = math.tanh %373 : vector<2x32xf32>
    %375 = vector.extract_strided_slice %369 {offsets = [0, 32], sizes = [2, 32], strides = [1, 1]} : vector<2x64xf32> to vector<2x32xf32>
    %376 = tpu.concatenate %374, %343 in 1 : vector<2x32xf32>, vector<2x16xf32> -> vector<2x48xf32>
    %cst_100 = arith.constant dense<0.000000e+00> : vector<2x32xf32>
    %377 = tpu.matmul %376, %19, %cst_100 {dimension_numbers = #tpu.dot_dimension_numbers<[1], [0], [0], [1], [0, 0, 1, 1], [], []>} : vector<2x48xf32>, vector<48x32xf32>, vector<2x32xf32> -> vector<2x32xf32>
    %378 = arith.addf %375, %377 : vector<2x32xf32>
    %379 = math.tanh %378 : vector<2x32xf32>
    %cst_101 = arith.constant dense<0.000000e+00> : vector<2x18xf32>
    %380 = tpu.matmul %379, %20, %cst_101 {dimension_numbers = #tpu.dot_dimension_numbers<[1], [0], [0], [1], [0, 0, 1, 1], [], []>} : vector<2x32xf32>, vector<32x18xf32>, vector<2x18xf32> -> vector<2x18xf32>
    %381 = arith.addf %380, %24 : vector<2x18xf32>
    %382 = vector.extract_strided_slice %381 {offsets = [0, 0], sizes = [2, 16], strides = [1, 1]} : vector<2x18xf32> to vector<2x16xf32>
    %383 = vector.extract_strided_slice %381 {offsets = [0, 16], sizes = [2, 1], strides = [1, 1]} : vector<2x18xf32> to vector<2x1xf32>
    %cst_102 = arith.constant 0.000000e+00 : f32
    %384 = vector.broadcast %cst_102 : f32 to vector<2x1xf32>
    %385 = arith.maximumf %383, %384 : vector<2x1xf32>
    %386 = vector.broadcast %cst_102 : f32 to vector<2x1xf32>
    %387 = arith.subf %383, %386 : vector<2x1xf32>
    %388 = arith.cmpf one, %387, %387 : vector<2x1xf32>
    %389 = vector.broadcast %cst_102 : f32 to vector<2x1xf32>
    %390 = arith.addf %383, %389 : vector<2x1xf32>
    %391 = math.absf %387 : vector<2x1xf32>
    %cst_103 = arith.constant 0.000000e+00 : f32
    %392 = vector.broadcast %cst_103 : f32 to vector<2x1xf32>
    %393 = arith.subf %392, %391 : vector<2x1xf32>
    %394 = math.exp %393 : vector<2x1xf32>
    %395 = math.log1p %394 : vector<2x1xf32>
    %396 = arith.addf %385, %395 : vector<2x1xf32>
    %397 = arith.select %388, %390, %396 : vector<2x1xi1>, vector<2x1xf32>
    %398 = vector.extract_strided_slice %381 {offsets = [0, 17], sizes = [2, 1], strides = [1, 1]} : vector<2x18xf32> to vector<2x1xf32>
    %399 = arith.negf %398 : vector<2x1xf32>
    %400 = math.exp %399 : vector<2x1xf32>
    %cst_104 = arith.constant 1.000000e+00 : f32
    %401 = vector.broadcast %cst_104 : f32 to vector<2x1xf32>
    %402 = arith.addf %401, %400 : vector<2x1xf32>
    %403 = arith.divf %401, %402 : vector<2x1xf32>
    %cst_105 = arith.constant dense<0.000000e+00> : vector<2x8xf32>
    %404 = tpu.matmul %382, %9, %cst_105 {dimension_numbers = #tpu.dot_dimension_numbers<[1], [0], [0], [1], [0, 0, 1, 1], [], []>} : vector<2x16xf32>, vector<16x8xf32>, vector<2x8xf32> -> vector<2x8xf32>
    %405 = arith.mulf %382, %382 : vector<2x16xf32>
    %cst_106 = arith.constant dense<0.000000e+00> : vector<2xf32>
    %406 = vector.multi_reduction <add>, %405, %cst_106 [1] : vector<2x16xf32> to vector<2xf32>
    %407 = vector.shape_cast %406 : vector<2xf32> to vector<2x1xf32>
    %cst_107 = arith.constant 9.99999996E-13 : f32
    %408 = vector.broadcast %cst_107 : f32 to vector<2x1xf32>
    %409 = arith.addf %407, %408 : vector<2x1xf32>
    %410 = math.rsqrt %409 : vector<2x1xf32>
    %411 = arith.mulf %397, %410 : vector<2x1xf32>
    %412 = vector.broadcast %411 : vector<2x1xf32> to vector<2x8xf32>
    %413 = arith.mulf %412, %404 : vector<2x8xf32>
    %414 = math.exp %413 : vector<2x8xf32>
    %cst_108 = arith.constant dense<0.000000e+00> : vector<2xf32>
    %415 = vector.multi_reduction <add>, %414, %cst_108 [1] : vector<2x8xf32> to vector<2xf32>
    %416 = vector.shape_cast %415 : vector<2xf32> to vector<2x1xf32>
    %417 = tpu.reciprocal %416 {approx = true} : vector<2x1xf32> -> vector<2x1xf32>
    %418 = vector.broadcast %417 : vector<2x1xf32> to vector<2x8xf32>
    %419 = arith.mulf %414, %418 : vector<2x8xf32>
    %420 = vector.broadcast %403 : vector<2x1xf32> to vector<2x8xf32>
    %421 = arith.mulf %420, %419 : vector<2x8xf32>
    %cst_109 = arith.constant 1.000000e+00 : f32
    %422 = vector.broadcast %cst_109 : f32 to vector<2x1xf32>
    %423 = arith.subf %422, %403 : vector<2x1xf32>
    %424 = vector.broadcast %423 : vector<2x1xf32> to vector<2x8xf32>
    %425 = arith.mulf %424, %342 : vector<2x8xf32>
    %426 = arith.addf %421, %425 : vector<2x8xf32>
    %cst_110 = arith.constant dense<0.000000e+00> : vector<2x16xf32>
    %427 = tpu.matmul %426, %0, %cst_110 {dimension_numbers = #tpu.dot_dimension_numbers<[1], [0], [0], [1], [0, 0, 1, 1], [], []>} : vector<2x8xf32>, vector<8x16xf32>, vector<2x16xf32> -> vector<2x16xf32>
    %428 = tpu.concatenate %379, %427 in 1 : vector<2x32xf32>, vector<2x16xf32> -> vector<2x48xf32>
    %cst_111 = arith.constant dense<0.000000e+00> : vector<2x32xf32>
    %429 = tpu.matmul %428, %21, %cst_111 {dimension_numbers = #tpu.dot_dimension_numbers<[1], [0], [0], [1], [0, 0, 1, 1], [], []>} : vector<2x48xf32>, vector<48x32xf32>, vector<2x32xf32> -> vector<2x32xf32>
    %430 = arith.addf %429, %27 : vector<2x32xf32>
    %431 = vector.extract_strided_slice %430 {offsets = [0, 0], sizes = [2, 16], strides = [1, 1]} : vector<2x32xf32> to vector<2x16xf32>
    %432 = arith.negf %431 : vector<2x16xf32>
    %433 = math.exp %432 : vector<2x16xf32>
    %cst_112 = arith.constant 1.000000e+00 : f32
    %434 = vector.broadcast %cst_112 : f32 to vector<2x16xf32>
    %435 = arith.addf %434, %433 : vector<2x16xf32>
    %436 = arith.divf %434, %435 : vector<2x16xf32>
    %437 = vector.extract_strided_slice %430 {offsets = [0, 16], sizes = [2, 16], strides = [1, 1]} : vector<2x32xf32> to vector<2x16xf32>
    %438 = arith.negf %437 : vector<2x16xf32>
    %439 = math.exp %438 : vector<2x16xf32>
    %cst_113 = arith.constant 1.000000e+00 : f32
    %440 = vector.broadcast %cst_113 : f32 to vector<2x16xf32>
    %441 = arith.addf %440, %439 : vector<2x16xf32>
    %442 = arith.divf %440, %441 : vector<2x16xf32>
    %443 = arith.addf %436, %442 : vector<2x16xf32>
    %444 = arith.negf %443 : vector<2x16xf32>
    %445 = math.exp %444 : vector<2x16xf32>
    %cst_114 = arith.constant 1.000000e+00 : f32
    %446 = vector.broadcast %cst_114 : f32 to vector<2x16xf32>
    %447 = arith.addf %446, %445 : vector<2x16xf32>
    %448 = arith.divf %446, %447 : vector<2x16xf32>
    %449 = tpu.concatenate %448, %427, %379, %426, %28 in 1 : vector<2x16xf32>, vector<2x16xf32>, vector<2x32xf32>, vector<2x8xf32>, vector<2x56xf32> -> vector<2x128xf32>
    %c4 = arith.constant 4 : index
    %c0_115 = arith.constant 0 : index
    %c0_116 = arith.constant 0 : index
    %450 = vector.load %arg10[%c4, %c0_115, %c0_116] : memref<8x2x128xf32, #tpu.memory_space<vmem>>, vector<1x2x128xf32>
    %451 = vector.shape_cast %450 : vector<1x2x128xf32> to vector<2x128xf32>
    %452 = vector.shape_cast %449 : vector<2x128xf32> to vector<1x2x128xf32>
    tpu.vector_store %arg10[%c4, %c0_115, %c0_116], %452 {strides = array<i32>} : memref<8x2x128xf32, #tpu.memory_space<vmem>>, vector<1x2x128xf32>,
    %453 = vector.extract_strided_slice %15 {offsets = [10, 0], sizes = [2, 64], strides = [1, 1]} : vector<16x64xf32> to vector<2x64xf32>
    %454 = vector.extract_strided_slice %453 {offsets = [0, 0], sizes = [2, 32], strides = [1, 1]} : vector<2x64xf32> to vector<2x32xf32>
    %455 = tpu.concatenate %379, %427 in 1 : vector<2x32xf32>, vector<2x16xf32> -> vector<2x48xf32>
    %cst_117 = arith.constant dense<0.000000e+00> : vector<2x32xf32>
    %456 = tpu.matmul %455, %17, %cst_117 {dimension_numbers = #tpu.dot_dimension_numbers<[1], [0], [0], [1], [0, 0, 1, 1], [], []>} : vector<2x48xf32>, vector<48x32xf32>, vector<2x32xf32> -> vector<2x32xf32>
    %457 = arith.addf %454, %456 : vector<2x32xf32>
    %458 = math.tanh %457 : vector<2x32xf32>
    %459 = vector.extract_strided_slice %453 {offsets = [0, 32], sizes = [2, 32], strides = [1, 1]} : vector<2x64xf32> to vector<2x32xf32>
    %460 = tpu.concatenate %458, %427 in 1 : vector<2x32xf32>, vector<2x16xf32> -> vector<2x48xf32>
    %cst_118 = arith.constant dense<0.000000e+00> : vector<2x32xf32>
    %461 = tpu.matmul %460, %19, %cst_118 {dimension_numbers = #tpu.dot_dimension_numbers<[1], [0], [0], [1], [0, 0, 1, 1], [], []>} : vector<2x48xf32>, vector<48x32xf32>, vector<2x32xf32> -> vector<2x32xf32>
    %462 = arith.addf %459, %461 : vector<2x32xf32>
    %463 = math.tanh %462 : vector<2x32xf32>
    %cst_119 = arith.constant dense<0.000000e+00> : vector<2x18xf32>
    %464 = tpu.matmul %463, %20, %cst_119 {dimension_numbers = #tpu.dot_dimension_numbers<[1], [0], [0], [1], [0, 0, 1, 1], [], []>} : vector<2x32xf32>, vector<32x18xf32>, vector<2x18xf32> -> vector<2x18xf32>
    %465 = arith.addf %464, %24 : vector<2x18xf32>
    %466 = vector.extract_strided_slice %465 {offsets = [0, 0], sizes = [2, 16], strides = [1, 1]} : vector<2x18xf32> to vector<2x16xf32>
    %467 = vector.extract_strided_slice %465 {offsets = [0, 16], sizes = [2, 1], strides = [1, 1]} : vector<2x18xf32> to vector<2x1xf32>
    %cst_120 = arith.constant 0.000000e+00 : f32
    %468 = vector.broadcast %cst_120 : f32 to vector<2x1xf32>
    %469 = arith.maximumf %467, %468 : vector<2x1xf32>
    %470 = vector.broadcast %cst_120 : f32 to vector<2x1xf32>
    %471 = arith.subf %467, %470 : vector<2x1xf32>
    %472 = arith.cmpf one, %471, %471 : vector<2x1xf32>
    %473 = vector.broadcast %cst_120 : f32 to vector<2x1xf32>
    %474 = arith.addf %467, %473 : vector<2x1xf32>
    %475 = math.absf %471 : vector<2x1xf32>
    %cst_121 = arith.constant 0.000000e+00 : f32
    %476 = vector.broadcast %cst_121 : f32 to vector<2x1xf32>
    %477 = arith.subf %476, %475 : vector<2x1xf32>
    %478 = math.exp %477 : vector<2x1xf32>
    %479 = math.log1p %478 : vector<2x1xf32>
    %480 = arith.addf %469, %479 : vector<2x1xf32>
    %481 = arith.select %472, %474, %480 : vector<2x1xi1>, vector<2x1xf32>
    %482 = vector.extract_strided_slice %465 {offsets = [0, 17], sizes = [2, 1], strides = [1, 1]} : vector<2x18xf32> to vector<2x1xf32>
    %483 = arith.negf %482 : vector<2x1xf32>
    %484 = math.exp %483 : vector<2x1xf32>
    %cst_122 = arith.constant 1.000000e+00 : f32
    %485 = vector.broadcast %cst_122 : f32 to vector<2x1xf32>
    %486 = arith.addf %485, %484 : vector<2x1xf32>
    %487 = arith.divf %485, %486 : vector<2x1xf32>
    %cst_123 = arith.constant dense<0.000000e+00> : vector<2x8xf32>
    %488 = tpu.matmul %466, %9, %cst_123 {dimension_numbers = #tpu.dot_dimension_numbers<[1], [0], [0], [1], [0, 0, 1, 1], [], []>} : vector<2x16xf32>, vector<16x8xf32>, vector<2x8xf32> -> vector<2x8xf32>
    %489 = arith.mulf %466, %466 : vector<2x16xf32>
    %cst_124 = arith.constant dense<0.000000e+00> : vector<2xf32>
    %490 = vector.multi_reduction <add>, %489, %cst_124 [1] : vector<2x16xf32> to vector<2xf32>
    %491 = vector.shape_cast %490 : vector<2xf32> to vector<2x1xf32>
    %cst_125 = arith.constant 9.99999996E-13 : f32
    %492 = vector.broadcast %cst_125 : f32 to vector<2x1xf32>
    %493 = arith.addf %491, %492 : vector<2x1xf32>
    %494 = math.rsqrt %493 : vector<2x1xf32>
    %495 = arith.mulf %481, %494 : vector<2x1xf32>
    %496 = vector.broadcast %495 : vector<2x1xf32> to vector<2x8xf32>
    %497 = arith.mulf %496, %488 : vector<2x8xf32>
    %498 = math.exp %497 : vector<2x8xf32>
    %cst_126 = arith.constant dense<0.000000e+00> : vector<2xf32>
    %499 = vector.multi_reduction <add>, %498, %cst_126 [1] : vector<2x8xf32> to vector<2xf32>
    %500 = vector.shape_cast %499 : vector<2xf32> to vector<2x1xf32>
    %501 = tpu.reciprocal %500 {approx = true} : vector<2x1xf32> -> vector<2x1xf32>
    %502 = vector.broadcast %501 : vector<2x1xf32> to vector<2x8xf32>
    %503 = arith.mulf %498, %502 : vector<2x8xf32>
    %504 = vector.broadcast %487 : vector<2x1xf32> to vector<2x8xf32>
    %505 = arith.mulf %504, %503 : vector<2x8xf32>
    %cst_127 = arith.constant 1.000000e+00 : f32
    %506 = vector.broadcast %cst_127 : f32 to vector<2x1xf32>
    %507 = arith.subf %506, %487 : vector<2x1xf32>
    %508 = vector.broadcast %507 : vector<2x1xf32> to vector<2x8xf32>
    %509 = arith.mulf %508, %426 : vector<2x8xf32>
    %510 = arith.addf %505, %509 : vector<2x8xf32>
    %cst_128 = arith.constant dense<0.000000e+00> : vector<2x16xf32>
    %511 = tpu.matmul %510, %0, %cst_128 {dimension_numbers = #tpu.dot_dimension_numbers<[1], [0], [0], [1], [0, 0, 1, 1], [], []>} : vector<2x8xf32>, vector<8x16xf32>, vector<2x16xf32> -> vector<2x16xf32>
    %512 = tpu.concatenate %463, %511 in 1 : vector<2x32xf32>, vector<2x16xf32> -> vector<2x48xf32>
    %cst_129 = arith.constant dense<0.000000e+00> : vector<2x32xf32>
    %513 = tpu.matmul %512, %21, %cst_129 {dimension_numbers = #tpu.dot_dimension_numbers<[1], [0], [0], [1], [0, 0, 1, 1], [], []>} : vector<2x48xf32>, vector<48x32xf32>, vector<2x32xf32> -> vector<2x32xf32>
    %514 = arith.addf %513, %27 : vector<2x32xf32>
    %515 = vector.extract_strided_slice %514 {offsets = [0, 0], sizes = [2, 16], strides = [1, 1]} : vector<2x32xf32> to vector<2x16xf32>
    %516 = arith.negf %515 : vector<2x16xf32>
    %517 = math.exp %516 : vector<2x16xf32>
    %cst_130 = arith.constant 1.000000e+00 : f32
    %518 = vector.broadcast %cst_130 : f32 to vector<2x16xf32>
    %519 = arith.addf %518, %517 : vector<2x16xf32>
    %520 = arith.divf %518, %519 : vector<2x16xf32>
    %521 = vector.extract_strided_slice %514 {offsets = [0, 16], sizes = [2, 16], strides = [1, 1]} : vector<2x32xf32> to vector<2x16xf32>
    %522 = arith.negf %521 : vector<2x16xf32>
    %523 = math.exp %522 : vector<2x16xf32>
    %cst_131 = arith.constant 1.000000e+00 : f32
    %524 = vector.broadcast %cst_131 : f32 to vector<2x16xf32>
    %525 = arith.addf %524, %523 : vector<2x16xf32>
    %526 = arith.divf %524, %525 : vector<2x16xf32>
    %527 = arith.addf %520, %526 : vector<2x16xf32>
    %528 = arith.negf %527 : vector<2x16xf32>
    %529 = math.exp %528 : vector<2x16xf32>
    %cst_132 = arith.constant 1.000000e+00 : f32
    %530 = vector.broadcast %cst_132 : f32 to vector<2x16xf32>
    %531 = arith.addf %530, %529 : vector<2x16xf32>
    %532 = arith.divf %530, %531 : vector<2x16xf32>
    %533 = tpu.concatenate %532, %511, %463, %510, %28 in 1 : vector<2x16xf32>, vector<2x16xf32>, vector<2x32xf32>, vector<2x8xf32>, vector<2x56xf32> -> vector<2x128xf32>
    %c5 = arith.constant 5 : index
    %c0_133 = arith.constant 0 : index
    %c0_134 = arith.constant 0 : index
    %534 = vector.load %arg10[%c5, %c0_133, %c0_134] : memref<8x2x128xf32, #tpu.memory_space<vmem>>, vector<1x2x128xf32>
    %535 = vector.shape_cast %534 : vector<1x2x128xf32> to vector<2x128xf32>
    %536 = vector.shape_cast %533 : vector<2x128xf32> to vector<1x2x128xf32>
    tpu.vector_store %arg10[%c5, %c0_133, %c0_134], %536 {strides = array<i32>} : memref<8x2x128xf32, #tpu.memory_space<vmem>>, vector<1x2x128xf32>,
    %537 = vector.extract_strided_slice %15 {offsets = [12, 0], sizes = [2, 64], strides = [1, 1]} : vector<16x64xf32> to vector<2x64xf32>
    %538 = vector.extract_strided_slice %537 {offsets = [0, 0], sizes = [2, 32], strides = [1, 1]} : vector<2x64xf32> to vector<2x32xf32>
    %539 = tpu.concatenate %463, %511 in 1 : vector<2x32xf32>, vector<2x16xf32> -> vector<2x48xf32>
    %cst_135 = arith.constant dense<0.000000e+00> : vector<2x32xf32>
    %540 = tpu.matmul %539, %17, %cst_135 {dimension_numbers = #tpu.dot_dimension_numbers<[1], [0], [0], [1], [0, 0, 1, 1], [], []>} : vector<2x48xf32>, vector<48x32xf32>, vector<2x32xf32> -> vector<2x32xf32>
    %541 = arith.addf %538, %540 : vector<2x32xf32>
    %542 = math.tanh %541 : vector<2x32xf32>
    %543 = vector.extract_strided_slice %537 {offsets = [0, 32], sizes = [2, 32], strides = [1, 1]} : vector<2x64xf32> to vector<2x32xf32>
    %544 = tpu.concatenate %542, %511 in 1 : vector<2x32xf32>, vector<2x16xf32> -> vector<2x48xf32>
    %cst_136 = arith.constant dense<0.000000e+00> : vector<2x32xf32>
    %545 = tpu.matmul %544, %19, %cst_136 {dimension_numbers = #tpu.dot_dimension_numbers<[1], [0], [0], [1], [0, 0, 1, 1], [], []>} : vector<2x48xf32>, vector<48x32xf32>, vector<2x32xf32> -> vector<2x32xf32>
    %546 = arith.addf %543, %545 : vector<2x32xf32>
    %547 = math.tanh %546 : vector<2x32xf32>
    %cst_137 = arith.constant dense<0.000000e+00> : vector<2x18xf32>
    %548 = tpu.matmul %547, %20, %cst_137 {dimension_numbers = #tpu.dot_dimension_numbers<[1], [0], [0], [1], [0, 0, 1, 1], [], []>} : vector<2x32xf32>, vector<32x18xf32>, vector<2x18xf32> -> vector<2x18xf32>
    %549 = arith.addf %548, %24 : vector<2x18xf32>
    %550 = vector.extract_strided_slice %549 {offsets = [0, 0], sizes = [2, 16], strides = [1, 1]} : vector<2x18xf32> to vector<2x16xf32>
    %551 = vector.extract_strided_slice %549 {offsets = [0, 16], sizes = [2, 1], strides = [1, 1]} : vector<2x18xf32> to vector<2x1xf32>
    %cst_138 = arith.constant 0.000000e+00 : f32
    %552 = vector.broadcast %cst_138 : f32 to vector<2x1xf32>
    %553 = arith.maximumf %551, %552 : vector<2x1xf32>
    %554 = vector.broadcast %cst_138 : f32 to vector<2x1xf32>
    %555 = arith.subf %551, %554 : vector<2x1xf32>
    %556 = arith.cmpf one, %555, %555 : vector<2x1xf32>
    %557 = vector.broadcast %cst_138 : f32 to vector<2x1xf32>
    %558 = arith.addf %551, %557 : vector<2x1xf32>
    %559 = math.absf %555 : vector<2x1xf32>
    %cst_139 = arith.constant 0.000000e+00 : f32
    %560 = vector.broadcast %cst_139 : f32 to vector<2x1xf32>
    %561 = arith.subf %560, %559 : vector<2x1xf32>
    %562 = math.exp %561 : vector<2x1xf32>
    %563 = math.log1p %562 : vector<2x1xf32>
    %564 = arith.addf %553, %563 : vector<2x1xf32>
    %565 = arith.select %556, %558, %564 : vector<2x1xi1>, vector<2x1xf32>
    %566 = vector.extract_strided_slice %549 {offsets = [0, 17], sizes = [2, 1], strides = [1, 1]} : vector<2x18xf32> to vector<2x1xf32>
    %567 = arith.negf %566 : vector<2x1xf32>
    %568 = math.exp %567 : vector<2x1xf32>
    %cst_140 = arith.constant 1.000000e+00 : f32
    %569 = vector.broadcast %cst_140 : f32 to vector<2x1xf32>
    %570 = arith.addf %569, %568 : vector<2x1xf32>
    %571 = arith.divf %569, %570 : vector<2x1xf32>
    %cst_141 = arith.constant dense<0.000000e+00> : vector<2x8xf32>
    %572 = tpu.matmul %550, %9, %cst_141 {dimension_numbers = #tpu.dot_dimension_numbers<[1], [0], [0], [1], [0, 0, 1, 1], [], []>} : vector<2x16xf32>, vector<16x8xf32>, vector<2x8xf32> -> vector<2x8xf32>
    %573 = arith.mulf %550, %550 : vector<2x16xf32>
    %cst_142 = arith.constant dense<0.000000e+00> : vector<2xf32>
    %574 = vector.multi_reduction <add>, %573, %cst_142 [1] : vector<2x16xf32> to vector<2xf32>
    %575 = vector.shape_cast %574 : vector<2xf32> to vector<2x1xf32>
    %cst_143 = arith.constant 9.99999996E-13 : f32
    %576 = vector.broadcast %cst_143 : f32 to vector<2x1xf32>
    %577 = arith.addf %575, %576 : vector<2x1xf32>
    %578 = math.rsqrt %577 : vector<2x1xf32>
    %579 = arith.mulf %565, %578 : vector<2x1xf32>
    %580 = vector.broadcast %579 : vector<2x1xf32> to vector<2x8xf32>
    %581 = arith.mulf %580, %572 : vector<2x8xf32>
    %582 = math.exp %581 : vector<2x8xf32>
    %cst_144 = arith.constant dense<0.000000e+00> : vector<2xf32>
    %583 = vector.multi_reduction <add>, %582, %cst_144 [1] : vector<2x8xf32> to vector<2xf32>
    %584 = vector.shape_cast %583 : vector<2xf32> to vector<2x1xf32>
    %585 = tpu.reciprocal %584 {approx = true} : vector<2x1xf32> -> vector<2x1xf32>
    %586 = vector.broadcast %585 : vector<2x1xf32> to vector<2x8xf32>
    %587 = arith.mulf %582, %586 : vector<2x8xf32>
    %588 = vector.broadcast %571 : vector<2x1xf32> to vector<2x8xf32>
    %589 = arith.mulf %588, %587 : vector<2x8xf32>
    %cst_145 = arith.constant 1.000000e+00 : f32
    %590 = vector.broadcast %cst_145 : f32 to vector<2x1xf32>
    %591 = arith.subf %590, %571 : vector<2x1xf32>
    %592 = vector.broadcast %591 : vector<2x1xf32> to vector<2x8xf32>
    %593 = arith.mulf %592, %510 : vector<2x8xf32>
    %594 = arith.addf %589, %593 : vector<2x8xf32>
    %cst_146 = arith.constant dense<0.000000e+00> : vector<2x16xf32>
    %595 = tpu.matmul %594, %0, %cst_146 {dimension_numbers = #tpu.dot_dimension_numbers<[1], [0], [0], [1], [0, 0, 1, 1], [], []>} : vector<2x8xf32>, vector<8x16xf32>, vector<2x16xf32> -> vector<2x16xf32>
    %596 = tpu.concatenate %547, %595 in 1 : vector<2x32xf32>, vector<2x16xf32> -> vector<2x48xf32>
    %cst_147 = arith.constant dense<0.000000e+00> : vector<2x32xf32>
    %597 = tpu.matmul %596, %21, %cst_147 {dimension_numbers = #tpu.dot_dimension_numbers<[1], [0], [0], [1], [0, 0, 1, 1], [], []>} : vector<2x48xf32>, vector<48x32xf32>, vector<2x32xf32> -> vector<2x32xf32>
    %598 = arith.addf %597, %27 : vector<2x32xf32>
    %599 = vector.extract_strided_slice %598 {offsets = [0, 0], sizes = [2, 16], strides = [1, 1]} : vector<2x32xf32> to vector<2x16xf32>
    %600 = arith.negf %599 : vector<2x16xf32>
    %601 = math.exp %600 : vector<2x16xf32>
    %cst_148 = arith.constant 1.000000e+00 : f32
    %602 = vector.broadcast %cst_148 : f32 to vector<2x16xf32>
    %603 = arith.addf %602, %601 : vector<2x16xf32>
    %604 = arith.divf %602, %603 : vector<2x16xf32>
    %605 = vector.extract_strided_slice %598 {offsets = [0, 16], sizes = [2, 16], strides = [1, 1]} : vector<2x32xf32> to vector<2x16xf32>
    %606 = arith.negf %605 : vector<2x16xf32>
    %607 = math.exp %606 : vector<2x16xf32>
    %cst_149 = arith.constant 1.000000e+00 : f32
    %608 = vector.broadcast %cst_149 : f32 to vector<2x16xf32>
    %609 = arith.addf %608, %607 : vector<2x16xf32>
    %610 = arith.divf %608, %609 : vector<2x16xf32>
    %611 = arith.addf %604, %610 : vector<2x16xf32>
    %612 = arith.negf %611 : vector<2x16xf32>
    %613 = math.exp %612 : vector<2x16xf32>
    %cst_150 = arith.constant 1.000000e+00 : f32
    %614 = vector.broadcast %cst_150 : f32 to vector<2x16xf32>
    %615 = arith.addf %614, %613 : vector<2x16xf32>
    %616 = arith.divf %614, %615 : vector<2x16xf32>
    %617 = tpu.concatenate %616, %595, %547, %594, %28 in 1 : vector<2x16xf32>, vector<2x16xf32>, vector<2x32xf32>, vector<2x8xf32>, vector<2x56xf32> -> vector<2x128xf32>
    %c6 = arith.constant 6 : index
    %c0_151 = arith.constant 0 : index
    %c0_152 = arith.constant 0 : index
    %618 = vector.load %arg10[%c6, %c0_151, %c0_152] : memref<8x2x128xf32, #tpu.memory_space<vmem>>, vector<1x2x128xf32>
    %619 = vector.shape_cast %618 : vector<1x2x128xf32> to vector<2x128xf32>
    %620 = vector.shape_cast %617 : vector<2x128xf32> to vector<1x2x128xf32>
    tpu.vector_store %arg10[%c6, %c0_151, %c0_152], %620 {strides = array<i32>} : memref<8x2x128xf32, #tpu.memory_space<vmem>>, vector<1x2x128xf32>,
    %621 = vector.extract_strided_slice %15 {offsets = [14, 0], sizes = [2, 64], strides = [1, 1]} : vector<16x64xf32> to vector<2x64xf32>
    %622 = vector.extract_strided_slice %621 {offsets = [0, 0], sizes = [2, 32], strides = [1, 1]} : vector<2x64xf32> to vector<2x32xf32>
    %623 = tpu.concatenate %547, %595 in 1 : vector<2x32xf32>, vector<2x16xf32> -> vector<2x48xf32>
    %cst_153 = arith.constant dense<0.000000e+00> : vector<2x32xf32>
    %624 = tpu.matmul %623, %17, %cst_153 {dimension_numbers = #tpu.dot_dimension_numbers<[1], [0], [0], [1], [0, 0, 1, 1], [], []>} : vector<2x48xf32>, vector<48x32xf32>, vector<2x32xf32> -> vector<2x32xf32>
    %625 = arith.addf %622, %624 : vector<2x32xf32>
    %626 = math.tanh %625 : vector<2x32xf32>
    %627 = vector.extract_strided_slice %621 {offsets = [0, 32], sizes = [2, 32], strides = [1, 1]} : vector<2x64xf32> to vector<2x32xf32>
    %628 = tpu.concatenate %626, %595 in 1 : vector<2x32xf32>, vector<2x16xf32> -> vector<2x48xf32>
    %cst_154 = arith.constant dense<0.000000e+00> : vector<2x32xf32>
    %629 = tpu.matmul %628, %19, %cst_154 {dimension_numbers = #tpu.dot_dimension_numbers<[1], [0], [0], [1], [0, 0, 1, 1], [], []>} : vector<2x48xf32>, vector<48x32xf32>, vector<2x32xf32> -> vector<2x32xf32>
    %630 = arith.addf %627, %629 : vector<2x32xf32>
    %631 = math.tanh %630 : vector<2x32xf32>
    %cst_155 = arith.constant dense<0.000000e+00> : vector<2x18xf32>
    %632 = tpu.matmul %631, %20, %cst_155 {dimension_numbers = #tpu.dot_dimension_numbers<[1], [0], [0], [1], [0, 0, 1, 1], [], []>} : vector<2x32xf32>, vector<32x18xf32>, vector<2x18xf32> -> vector<2x18xf32>
    %633 = arith.addf %632, %24 : vector<2x18xf32>
    %634 = vector.extract_strided_slice %633 {offsets = [0, 0], sizes = [2, 16], strides = [1, 1]} : vector<2x18xf32> to vector<2x16xf32>
    %635 = vector.extract_strided_slice %633 {offsets = [0, 16], sizes = [2, 1], strides = [1, 1]} : vector<2x18xf32> to vector<2x1xf32>
    %cst_156 = arith.constant 0.000000e+00 : f32
    %636 = vector.broadcast %cst_156 : f32 to vector<2x1xf32>
    %637 = arith.maximumf %635, %636 : vector<2x1xf32>
    %638 = vector.broadcast %cst_156 : f32 to vector<2x1xf32>
    %639 = arith.subf %635, %638 : vector<2x1xf32>
    %640 = arith.cmpf one, %639, %639 : vector<2x1xf32>
    %641 = vector.broadcast %cst_156 : f32 to vector<2x1xf32>
    %642 = arith.addf %635, %641 : vector<2x1xf32>
    %643 = math.absf %639 : vector<2x1xf32>
    %cst_157 = arith.constant 0.000000e+00 : f32
    %644 = vector.broadcast %cst_157 : f32 to vector<2x1xf32>
    %645 = arith.subf %644, %643 : vector<2x1xf32>
    %646 = math.exp %645 : vector<2x1xf32>
    %647 = math.log1p %646 : vector<2x1xf32>
    %648 = arith.addf %637, %647 : vector<2x1xf32>
    %649 = arith.select %640, %642, %648 : vector<2x1xi1>, vector<2x1xf32>
    %650 = vector.extract_strided_slice %633 {offsets = [0, 17], sizes = [2, 1], strides = [1, 1]} : vector<2x18xf32> to vector<2x1xf32>
    %651 = arith.negf %650 : vector<2x1xf32>
    %652 = math.exp %651 : vector<2x1xf32>
    %cst_158 = arith.constant 1.000000e+00 : f32
    %653 = vector.broadcast %cst_158 : f32 to vector<2x1xf32>
    %654 = arith.addf %653, %652 : vector<2x1xf32>
    %655 = arith.divf %653, %654 : vector<2x1xf32>
    %cst_159 = arith.constant dense<0.000000e+00> : vector<2x8xf32>
    %656 = tpu.matmul %634, %9, %cst_159 {dimension_numbers = #tpu.dot_dimension_numbers<[1], [0], [0], [1], [0, 0, 1, 1], [], []>} : vector<2x16xf32>, vector<16x8xf32>, vector<2x8xf32> -> vector<2x8xf32>
    %657 = arith.mulf %634, %634 : vector<2x16xf32>
    %cst_160 = arith.constant dense<0.000000e+00> : vector<2xf32>
    %658 = vector.multi_reduction <add>, %657, %cst_160 [1] : vector<2x16xf32> to vector<2xf32>
    %659 = vector.shape_cast %658 : vector<2xf32> to vector<2x1xf32>
    %cst_161 = arith.constant 9.99999996E-13 : f32
    %660 = vector.broadcast %cst_161 : f32 to vector<2x1xf32>
    %661 = arith.addf %659, %660 : vector<2x1xf32>
    %662 = math.rsqrt %661 : vector<2x1xf32>
    %663 = arith.mulf %649, %662 : vector<2x1xf32>
    %664 = vector.broadcast %663 : vector<2x1xf32> to vector<2x8xf32>
    %665 = arith.mulf %664, %656 : vector<2x8xf32>
    %666 = math.exp %665 : vector<2x8xf32>
    %cst_162 = arith.constant dense<0.000000e+00> : vector<2xf32>
    %667 = vector.multi_reduction <add>, %666, %cst_162 [1] : vector<2x8xf32> to vector<2xf32>
    %668 = vector.shape_cast %667 : vector<2xf32> to vector<2x1xf32>
    %669 = tpu.reciprocal %668 {approx = true} : vector<2x1xf32> -> vector<2x1xf32>
    %670 = vector.broadcast %669 : vector<2x1xf32> to vector<2x8xf32>
    %671 = arith.mulf %666, %670 : vector<2x8xf32>
    %672 = vector.broadcast %655 : vector<2x1xf32> to vector<2x8xf32>
    %673 = arith.mulf %672, %671 : vector<2x8xf32>
    %cst_163 = arith.constant 1.000000e+00 : f32
    %674 = vector.broadcast %cst_163 : f32 to vector<2x1xf32>
    %675 = arith.subf %674, %655 : vector<2x1xf32>
    %676 = vector.broadcast %675 : vector<2x1xf32> to vector<2x8xf32>
    %677 = arith.mulf %676, %594 : vector<2x8xf32>
    %678 = arith.addf %673, %677 : vector<2x8xf32>
    %cst_164 = arith.constant dense<0.000000e+00> : vector<2x16xf32>
    %679 = tpu.matmul %678, %0, %cst_164 {dimension_numbers = #tpu.dot_dimension_numbers<[1], [0], [0], [1], [0, 0, 1, 1], [], []>} : vector<2x8xf32>, vector<8x16xf32>, vector<2x16xf32> -> vector<2x16xf32>
    %680 = tpu.concatenate %631, %679 in 1 : vector<2x32xf32>, vector<2x16xf32> -> vector<2x48xf32>
    %cst_165 = arith.constant dense<0.000000e+00> : vector<2x32xf32>
    %681 = tpu.matmul %680, %21, %cst_165 {dimension_numbers = #tpu.dot_dimension_numbers<[1], [0], [0], [1], [0, 0, 1, 1], [], []>} : vector<2x48xf32>, vector<48x32xf32>, vector<2x32xf32> -> vector<2x32xf32>
    %682 = arith.addf %681, %27 : vector<2x32xf32>
    %683 = vector.extract_strided_slice %682 {offsets = [0, 0], sizes = [2, 16], strides = [1, 1]} : vector<2x32xf32> to vector<2x16xf32>
    %684 = arith.negf %683 : vector<2x16xf32>
    %685 = math.exp %684 : vector<2x16xf32>
    %cst_166 = arith.constant 1.000000e+00 : f32
    %686 = vector.broadcast %cst_166 : f32 to vector<2x16xf32>
    %687 = arith.addf %686, %685 : vector<2x16xf32>
    %688 = arith.divf %686, %687 : vector<2x16xf32>
    %689 = vector.extract_strided_slice %682 {offsets = [0, 16], sizes = [2, 16], strides = [1, 1]} : vector<2x32xf32> to vector<2x16xf32>
    %690 = arith.negf %689 : vector<2x16xf32>
    %691 = math.exp %690 : vector<2x16xf32>
    %cst_167 = arith.constant 1.000000e+00 : f32
    %692 = vector.broadcast %cst_167 : f32 to vector<2x16xf32>
    %693 = arith.addf %692, %691 : vector<2x16xf32>
    %694 = arith.divf %692, %693 : vector<2x16xf32>
    %695 = arith.addf %688, %694 : vector<2x16xf32>
    %696 = arith.negf %695 : vector<2x16xf32>
    %697 = math.exp %696 : vector<2x16xf32>
    %cst_168 = arith.constant 1.000000e+00 : f32
    %698 = vector.broadcast %cst_168 : f32 to vector<2x16xf32>
    %699 = arith.addf %698, %697 : vector<2x16xf32>
    %700 = arith.divf %698, %699 : vector<2x16xf32>
    %701 = tpu.concatenate %700, %679, %631, %678, %28 in 1 : vector<2x16xf32>, vector<2x16xf32>, vector<2x32xf32>, vector<2x8xf32>, vector<2x56xf32> -> vector<2x128xf32>
    %c7 = arith.constant 7 : index
    %c0_169 = arith.constant 0 : index
    %c0_170 = arith.constant 0 : index
    %702 = vector.load %arg10[%c7, %c0_169, %c0_170] : memref<8x2x128xf32, #tpu.memory_space<vmem>>, vector<1x2x128xf32>
    %703 = vector.shape_cast %702 : vector<1x2x128xf32> to vector<2x128xf32>
    %704 = vector.shape_cast %701 : vector<2x128xf32> to vector<1x2x128xf32>
    tpu.vector_store %arg10[%c7, %c0_169, %c0_170], %704 {strides = array<i32>} : memref<8x2x128xf32, #tpu.memory_space<vmem>>, vector<1x2x128xf32>,
    return
  }
}

</mosaic_0001>

<llo_original>
// kernel: tpu_custom_call.1
$region0: #{tpu_custom_call.1}
  #allocation0 [shape = 'u32[]', space=smem, size = 0x4, offset = 0x4, fixed_abs, tag = 'smem constant byte address 0x4 - core index']
  #allocation1 [shape = 'u32[72,128]{1,0:T(1,128)}', space=vmem, size = 0x9000, scoped, tag = 'internal scratch']
  %s0 = inlined_call_operand.vmem [shape: f32[16,16], index: 0, kind: input, shape index: {}]
  %s1 = inlined_call_operand.vmem [shape: f32[2,56], index: 1, kind: input, shape index: {}]
  %s2 = inlined_call_operand.vmem [shape: f32[8,16], index: 2, kind: input, shape index: {}]
  %s3 = inlined_call_operand.vmem [shape: f32[16,64], index: 3, kind: input, shape index: {}]
  %s4 = inlined_call_operand.vmem [shape: f32[1,64], index: 4, kind: input, shape index: {}]
  %s5 = inlined_call_operand.vmem [shape: f32[2,48,32], index: 5, kind: input, shape index: {}]
  %s6 = inlined_call_operand.vmem [shape: f32[32,18], index: 6, kind: input, shape index: {}]
  %s7 = inlined_call_operand.vmem [shape: f32[1,18], index: 7, kind: input, shape index: {}]
  %s8 = inlined_call_operand.vmem [shape: f32[48,32], index: 8, kind: input, shape index: {}]
  %s9 = inlined_call_operand.vmem [shape: f32[1,32], index: 9, kind: input, shape index: {}]
  %s10 = inlined_call_operand.hbm [shape: f32[8,2,128], index: 10, kind: output, shape index: {}]
  %s11 = sld [smem:[#allocation0]]
  $region50: #{tpu_custom_call.1} parent=0
    _
  %s13 = ssub.s32 1, %s11
  %s14 = scalar_select 0, %s13, %s11
  $region1: #{tpu_custom_call.1} parent=0
    #allocation2 [shape = 'u8[8192]{0}', space=vmem, size = 0x2000, scoped, tag = 'output window, operand 0, single buffered']
    #allocation3 [shape = 's32[1]{0}', space=sflag, size = 0x4, scoped, tag = 'scoped memory for tpu_custom_call.1']
    %15 = vsyncpa [#allocation3], 0
    // Predicated region
    $region2: #{tpu_custom_call.1} parent=1 // pred_check
      _
    $region3: #{tpu_custom_call.1} parent=1 // pred_check_branch
      %17 = sbr.rel (0) target = $region5
    $region4: #{tpu_custom_call.1} parent=1 // pred_region
      _
    $region5: #{tpu_custom_call.1} parent=1 // pred_fallthru
      _
    // Predicated region
    $region6: #{tpu_custom_call.1} parent=1 // pred_check
      _
    $region7: #{tpu_custom_call.1} parent=1 // pred_check_branch
      %19 = sbr.rel (0) target = $region9
    $region8: #{tpu_custom_call.1} parent=1 // pred_region
      _
    $region9: #{tpu_custom_call.1} parent=1 // pred_fallthru
      _
    // Predicated region
    $region10: #{tpu_custom_call.1} parent=1 // pred_check
      _
    $region11: #{tpu_custom_call.1} parent=1 // pred_check_branch
      %21 = sbr.rel (0) target = $region13
    $region12: #{tpu_custom_call.1} parent=1 // pred_region
      _
    $region13: #{tpu_custom_call.1} parent=1 // pred_fallthru
      _
    // Predicated region
    $region14: #{tpu_custom_call.1} parent=1 // pred_check
      _
    $region15: #{tpu_custom_call.1} parent=1 // pred_check_branch
      %23 = sbr.rel (0) target = $region17
    $region16: #{tpu_custom_call.1} parent=1 // pred_region
      _
    $region17: #{tpu_custom_call.1} parent=1 // pred_fallthru
      _
    // Predicated region
    $region18: #{tpu_custom_call.1} parent=1 // pred_check
      _
    $region19: #{tpu_custom_call.1} parent=1 // pred_check_branch
      %25 = sbr.rel (0) target = $region21
    $region20: #{tpu_custom_call.1} parent=1 // pred_region
      _
    $region21: #{tpu_custom_call.1} parent=1 // pred_fallthru
      _
    // Predicated region
    $region22: #{tpu_custom_call.1} parent=1 // pred_check
      _
    $region23: #{tpu_custom_call.1} parent=1 // pred_check_branch
      %27 = sbr.rel (0) target = $region25
    $region24: #{tpu_custom_call.1} parent=1 // pred_region
      _
    $region25: #{tpu_custom_call.1} parent=1 // pred_fallthru
      _
    // Predicated region
    $region26: #{tpu_custom_call.1} parent=1 // pred_check
      _
    $region27: #{tpu_custom_call.1} parent=1 // pred_check_branch
      %29 = sbr.rel (0) target = $region29
    $region28: #{tpu_custom_call.1} parent=1 // pred_region
      _
    $region29: #{tpu_custom_call.1} parent=1 // pred_fallthru
      _
    // Predicated region
    $region30: #{tpu_custom_call.1} parent=1 // pred_check
      _
    $region31: #{tpu_custom_call.1} parent=1 // pred_check_branch
      %31 = sbr.rel (0) target = $region33
    $region32: #{tpu_custom_call.1} parent=1 // pred_region
      _
    $region33: #{tpu_custom_call.1} parent=1 // pred_fallthru
      _
    // Predicated region
    $region34: #{tpu_custom_call.1} parent=1 // pred_check
      _
    $region35: #{tpu_custom_call.1} parent=1 // pred_check_branch
      %33 = sbr.rel (0) target = $region37
    $region36: #{tpu_custom_call.1} parent=1 // pred_region
      _
    $region37: #{tpu_custom_call.1} parent=1 // pred_fallthru
      _
    // Predicated region
    $region38: #{tpu_custom_call.1} parent=1 // pred_check
      _
    $region39: #{tpu_custom_call.1} parent=1 // pred_check_branch
      %35 = sbr.rel (0) target = $region41
    $region40: #{tpu_custom_call.1} parent=1 // pred_region
      _
    $region41: #{tpu_custom_call.1} parent=1 // pred_fallthru
      _
    %v36 = vld [vmem:[%s2] sm:$0xff]
    %v37 = vmul.f32 %v36, %v36
    %vm38 = vcmask 130048
    %v39 = vsel %vm38, %v37, 0.0
    %40 = vadd.xlane.f32.xlu0 %v39
    %v41 = vpop.xlane.xlu0 %40
    %v42 = vadd.f32 %v41, 1e-12
    %v43 = vrsqrt.pop %v42
    %v44 = vmul.f32 %v43, %v42
    %v45 = vmul.f32 %v44, %v43
    %v46 = vmul.f32 0.5, %v45
    %v47 = vsub.f32 1.5, %v46
    %v48 = vmul.f32 %v43, %v47
    %vm49 = vweird.f32 %v42
    %vm50 = vweird.f32 %v43
    %vm51 = vmor %vm49, %vm50
    %v52 = vsel %vm51, %v43, %v48
    %v53 = vmul.f32 %v36, %v52
    %v54 = vld [vmem:[%s0] sm:$0xff]
    %v55 = vld [vmem:[%s0 + $0x8] sm:$0xff]
    %v56 = vld [vmem:[%s3] sm:$0xff]
    %v57 = vld [vmem:[%s3 + $0x8] sm:$0xff]
    %v58 = vld [vmem:[%s4] sm:$0x1]
    %v60 = vperm.slane %v58, 0
    %v63 = vsel %vm38, %v54, 0
    %v66 = vsel %vm38, %v55, 0
    %68 = vmatpush.msra.mxu0 0.0
    %69 = vmatpush.msra.mxu0 0.0
    %70 = vmatpush.msra.mxu0 0.0
    %71 = vmatpush.msra.mxu0 0.0
    %72 = vmatpush.msra.mxu0 0.0
    %73 = vmatpush.msra.mxu0 0.0
    %74 = vmatpush.msra.mxu0 0.0
    %75 = vmatpush.msra.mxu0 0.0
    %76 = vmatpush.msra.mxu0 0.0
    %77 = vmatpush.msra.mxu0 0.0
    %78 = vmatpush.msra.mxu0 0.0
    %79 = vmatpush.msra.mxu0 0.0
    %80 = vmatpush.msra.mxu0 0.0
    %81 = vmatpush.msra.mxu0 0.0
    %82 = vmatpush.msra.mxu0 %v57
    %83 = vmatpush.msra.mxu0 %v56
    %84 = vmatmul.f32.gmra.mxu0 %v63
    %v85 = vpop.f32.mrf.mxu0
    %v86 = vadd.f32 %v60, %v85
    %87 = vmatmul.f32.gmra.mxu0 %v66
    %v88 = vpop.f32.mrf.mxu0
    %v89 = vadd.f32 %v60, %v88
    %90 = vdwg.mxu0
    %v91 = vld [vmem:[%s5] sm:$0xff]
    %v92 = vld [vmem:[%s5 + $0x8] sm:$0xff]
    %v93 = vld [vmem:[%s5 + $0x10] sm:$0xff]
    %v94 = vld [vmem:[%s5 + $0x18] sm:$0xff]
    %v95 = vld [vmem:[%s5 + $0x20] sm:$0xff]
    %v96 = vld [vmem:[%s5 + $0x28] sm:$0xff]
    %s97 = scalar_lea.vmem %s5, 48
    %v98 = vld [vmem:[%s97] sm:$0xff]
    %v99 = vld [vmem:[%s97 + $0x8] sm:$0xff]
    %v100 = vld [vmem:[%s97 + $0x10] sm:$0xff]
    %v101 = vld [vmem:[%s97 + $0x18] sm:$0xff]
    %v102 = vld [vmem:[%s97 + $0x20] sm:$0xff]
    %v103 = vld [vmem:[%s97 + $0x28] sm:$0xff]
    %v104 = vld [vmem:[%s6] sm:$0xff]
    %v105 = vld [vmem:[%s6 + $0x8] sm:$0xff]
    %v106 = vld [vmem:[%s6 + $0x10] sm:$0xff]
    %v107 = vld [vmem:[%s6 + $0x18] sm:$0xff]
    %v108 = vld [vmem:[%s8] sm:$0xff]
    %v109 = vld [vmem:[%s8 + $0x8] sm:$0xff]
    %v110 = vld [vmem:[%s8 + $0x10] sm:$0xff]
    %v111 = vld [vmem:[%s8 + $0x18] sm:$0xff]
    %v112 = vld [vmem:[%s8 + $0x20] sm:$0xff]
    %v113 = vld [vmem:[%s8 + $0x28] sm:$0xff]
    %v114 = vld [vmem:[%s7] sm:$0x1]
    %v116 = vperm.slane %v114, 0
    %v118 = vld [vmem:[%s9] sm:$0x1]
    %v120 = vperm.slane %v118, 0
    %v122 = vld [vmem:[%s1] sm:$0x3]
    %vm123 = vcmask 392192
    %v125 = vsel %vm123, %v122, 0
    %127 = vmatpush.msra.mxu0 0.0
    %128 = vmatpush.msra.mxu0 0.0
    %129 = vmatpush.msra.mxu0 0.0
    %130 = vmatpush.msra.mxu0 0.0
    %131 = vmatpush.msra.mxu0 0.0
    %132 = vmatpush.msra.mxu0 0.0
    %133 = vmatpush.msra.mxu0 0.0
    %134 = vmatpush.msra.mxu0 0.0
    %135 = vmatpush.msra.mxu0 0.0
    %136 = vmatpush.msra.mxu0 0.0
    %137 = vmatpush.msra.mxu0 %v96
    %138 = vmatpush.msra.mxu0 %v95
    %139 = vmatpush.msra.mxu0 %v94
    %140 = vmatpush.msra.mxu0 %v93
    %141 = vmatpush.msra.mxu0 %v92
    %142 = vmatpush.msra.mxu0 %v91
    %143 = vmatmul.f32.gmra.mxu0 %v125
    %v144 = vpop.f32.mrf.mxu0
    %v145 = vadd.f32 0.0, %v144
    %146 = vdwg.mxu0
    %v147 = vadd.f32 %v86, %v145
    %v148 = vtanh.pop %v147
    %vm149 = vcmask 261120
    %v150 = vsel %vm149, %v148, %v122
    %v152 = vsel %vm123, %v150, 0
    %154 = vmatpush.msra.mxu0 0.0
    %155 = vmatpush.msra.mxu0 0.0
    %156 = vmatpush.msra.mxu0 0.0
    %157 = vmatpush.msra.mxu0 0.0
    %158 = vmatpush.msra.mxu0 0.0
    %159 = vmatpush.msra.mxu0 0.0
    %160 = vmatpush.msra.mxu0 0.0
    %161 = vmatpush.msra.mxu0 0.0
    %162 = vmatpush.msra.mxu0 0.0
    %163 = vmatpush.msra.mxu0 0.0
    %164 = vmatpush.msra.mxu0 %v103
    %165 = vmatpush.msra.mxu0 %v102
    %166 = vmatpush.msra.mxu0 %v101
    %167 = vmatpush.msra.mxu0 %v100
    %168 = vmatpush.msra.mxu0 %v99
    %169 = vmatpush.msra.mxu0 %v98
    %170 = vmatmul.f32.gmra.mxu0 %v152
    %v171 = vpop.f32.mrf.mxu0
    %v172 = vadd.f32 0.0, %v171
    %173 = vdwg.mxu0
    %175 = vrot.lane.b32.xlu0 %v172, 32
    %v176 = vpop.permute.xlu0 %175
    %v178 = vadd.f32 %v86, %v176
    %v179 = vtanh.pop %v178
    %181 = vrot.lane.b32.xlu0 %v179, 96
    %v182 = vpop.permute.xlu0 %181
    %v183 = vsel %vm149, %v182, 0
    %185 = vmatpush.msra.mxu0 0.0
    %186 = vmatpush.msra.mxu0 0.0
    %187 = vmatpush.msra.mxu0 0.0
    %188 = vmatpush.msra.mxu0 0.0
    %189 = vmatpush.msra.mxu0 0.0
    %190 = vmatpush.msra.mxu0 0.0
    %191 = vmatpush.msra.mxu0 0.0
    %192 = vmatpush.msra.mxu0 0.0
    %193 = vmatpush.msra.mxu0 0.0
    %194 = vmatpush.msra.mxu0 0.0
    %195 = vmatpush.msra.mxu0 0.0
    %196 = vmatpush.msra.mxu0 0.0
    %197 = vmatpush.msra.mxu0 %v107
    %198 = vmatpush.msra.mxu0 %v106
    %199 = vmatpush.msra.mxu0 %v105
    %200 = vmatpush.msra.mxu0 %v104
    %201 = vmatmul.f32.gmra.mxu0 %v183
    %v202 = vpop.f32.mrf.mxu0
    %v203 = vadd.f32 %v116, %v202
    %204 = vdwg.mxu0
    %v205 = vmax.f32 %v203, 0.0
    %vm206 = vcmp.ne.f32.partialorder %v203, %v203
    %v207 = vadd.f32 %v203, 0.0
    %v208 = vand.u32 2147483647, %v203
    %v209 = vsub.f32 0.0, %v208
    %v210 = vmul.f32 %v209, 1.442695
    %v211 = vpow.pop %v210
    %v212 = vadd.f32 %v211, 1.0
    %v213 = vlog2.pop %v212
    %v214 = vmul.f32 %v213, 0.6931472
    %v215 = vmul.f32 -0.5, %v211
    %v216 = vadd.f32 %v215, 1.0
    %v217 = vmul.f32 %v216, %v211
    %v218 = vand.u32 2147483647, %v211
    %vm219 = vcmp.lt.f32.partialorder %v218, 0.0004427343
    %v220 = vsel %vm219, %v217, %v214
    %v221 = vadd.f32 %v205, %v220
    %v222 = vsel %vm206, %v207, %v221
    %v223 = vxor.u32 %v203, 2147483648
    %v224 = vmul.f32 %v223, 1.442695
    %v225 = vpow.pop %v224
    %v226 = vadd.f32 %v225, 1.0
    %v227 = vrcp.pop %v226
    %v228 = vmul.f32 %v226, %v227
    %v229 = vsub.f32 1.0, %v228
    %v230 = vmul.f32 %v227, %v229
    %v231 = vadd.f32 %v227, %v230
    %vm232 = vweird.f32 %v226
    %vm233 = vweird.f32 %v227
    %vm234 = vmor %vm232, %vm233
    %v235 = vsel %vm234, %v227, %v231
    %v236 = vand.u32 2147483647, %v226
    %vm237 = vcmp.eq.f32.partialorder %v236, 8.507059e+37
    %v238 = vand.u32 %v226, 2147483648
    %v239 = vor.u32 1.1754944e-38, %v238
    %v240 = vsel %vm237, %v239, %v235
    %v241 = vmul.f32 1.0, %v240
    %v243 = vsel %vm38, %v203, 0
    %v246 = vsel %vm38, %v53, 0
    %248 = vmatpush.xpose.msra.mxu0 0.0
    %249 = vmatpush.xpose.msra.mxu0 0.0
    %250 = vmatpush.xpose.msra.mxu0 0.0
    %251 = vmatpush.xpose.msra.mxu0 0.0
    %252 = vmatpush.xpose.msra.mxu0 0.0
    %253 = vmatpush.xpose.msra.mxu0 0.0
    %254 = vmatpush.xpose.msra.mxu0 0.0
    %255 = vmatpush.xpose.msra.mxu0 0.0
    %256 = vmatpush.xpose.msra.mxu0 0.0
    %257 = vmatpush.xpose.msra.mxu0 0.0
    %258 = vmatpush.xpose.msra.mxu0 0.0
    %259 = vmatpush.xpose.msra.mxu0 0.0
    %260 = vmatpush.xpose.msra.mxu0 0.0
    %261 = vmatpush.xpose.msra.mxu0 0.0
    %262 = vmatpush.xpose.msra.mxu0 0.0
    %263 = vmatpush.xpose.msra.mxu0 %v246
    %264 = vmatmul.f32.gmra.mxu0 %v243
    %v265 = vpop.f32.mrf.mxu0
    %v266 = vadd.f32 0.0, %v265
    %267 = vdwg.mxu0
    %v268 = vmul.f32 %v203, %v203
    %vm269 = vcmask 123904
    %v270 = vsel %vm269, %v268, 0.0
    %271 = vadd.xlane.f32.xlu0 %v270
    %v272 = vpop.xlane.xlu0 %271
    %v273 = vadd.f32 %v272, 1e-12
    %v274 = vrsqrt.pop %v273
    %v275 = vmul.f32 %v274, %v273
    %v276 = vmul.f32 %v275, %v274
    %v277 = vmul.f32 0.5, %v276
    %v278 = vsub.f32 1.5, %v277
    %v279 = vmul.f32 %v274, %v278
    %vm280 = vweird.f32 %v273
    %vm281 = vweird.f32 %v274
    %vm282 = vmor %vm280, %vm281
    %v283 = vsel %vm282, %v274, %v279
    %v284 = vmul.f32 %v222, %v283
    %286 = vset.pattern.permute.xlu0 16
    %287 = vperm.xlu0 %286, %v284
    %v288 = vpop.permute.xlu0 %287
    %v290 = vmul.f32 %v288, %v266
    %v291 = vmul.f32 %v290, 1.442695
    %v292 = vpow.pop %v291
    %vm293 = vcmask 58368
    %v294 = vsel %vm293, %v292, 0.0
    %295 = vadd.xlane.f32.xlu0 %v294
    %v296 = vpop.xlane.xlu0 %295
    %v297 = vrcp.pop %v296
    %v298 = vmul.f32 %v292, %v297
    %300 = vset.pattern.permute.xlu0 17
    %301 = vperm.xlu0 %300, %v241
    %v302 = vpop.permute.xlu0 %301
    %v304 = vmul.f32 %v302, %v298
    %v305 = vsub.f32 1.0, %v241
    %307 = vset.pattern.permute.xlu0 17
    %308 = vperm.xlu0 %307, %v305
    %v309 = vpop.permute.xlu0 %308
    %v311 = vmul.f32 %v309, %v122
    %313 = vrot.lane.b32.xlu0 %v311, 80
    %v314 = vpop.permute.xlu0 %313
    %v316 = vadd.f32 %v304, %v314
    %vm317 = vcmask 64512
    %v319 = vsel %vm317, %v316, 0
    %321 = vmatpush.msra.mxu0 0.0
    %322 = vmatpush.msra.mxu0 0.0
    %323 = vmatpush.msra.mxu0 0.0
    %324 = vmatpush.msra.mxu0 0.0
    %325 = vmatpush.msra.mxu0 0.0
    %326 = vmatpush.msra.mxu0 0.0
    %327 = vmatpush.msra.mxu0 0.0
    %328 = vmatpush.msra.mxu0 0.0
    %329 = vmatpush.msra.mxu0 0.0
    %330 = vmatpush.msra.mxu0 0.0
    %331 = vmatpush.msra.mxu0 0.0
    %332 = vmatpush.msra.mxu0 0.0
    %333 = vmatpush.msra.mxu0 0.0
    %334 = vmatpush.msra.mxu0 0.0
    %335 = vmatpush.msra.mxu0 0.0
    %336 = vmatpush.msra.mxu0 %v36
    %337 = vmatmul.f32.gmra.mxu0 %v319
    %v338 = vpop.f32.mrf.mxu0
    %v339 = vadd.f32 0.0, %v338
    %340 = vdwg.mxu0
    %343 = vrot.lane.b32.xlu0 %v339, 32
    %v344 = vpop.permute.xlu0 %343
    %v346 = vsel %vm149, %v182, %v344
    %v348 = vsel %vm123, %v346, 0
    %350 = vmatpush.msra.mxu0 0.0
    %351 = vmatpush.msra.mxu0 0.0
    %352 = vmatpush.msra.mxu0 0.0
    %353 = vmatpush.msra.mxu0 0.0
    %354 = vmatpush.msra.mxu0 0.0
    %355 = vmatpush.msra.mxu0 0.0
    %356 = vmatpush.msra.mxu0 0.0
    %357 = vmatpush.msra.mxu0 0.0
    %358 = vmatpush.msra.mxu0 0.0
    %359 = vmatpush.msra.mxu0 0.0
    %360 = vmatpush.msra.mxu0 %v113
    %361 = vmatpush.msra.mxu0 %v112
    %362 = vmatpush.msra.mxu0 %v111
    %363 = vmatpush.msra.mxu0 %v110
    %364 = vmatpush.msra.mxu0 %v109
    %365 = vmatpush.msra.mxu0 %v108
    %366 = vmatmul.f32.gmra.mxu0 %v348
    %v367 = vpop.f32.mrf.mxu0
    %v368 = vadd.f32 %v120, %v367
    %369 = vdwg.mxu0
    %v370 = vxor.u32 %v368, 2147483648
    %v371 = vmul.f32 %v370, 1.442695
    %v372 = vpow.pop %v371
    %v373 = vadd.f32 %v372, 1.0
    %v374 = vrcp.pop %v373
    %v375 = vmul.f32 %v373, %v374
    %v376 = vsub.f32 1.0, %v375
    %v377 = vmul.f32 %v374, %v376
    %v378 = vadd.f32 %v374, %v377
    %vm379 = vweird.f32 %v373
    %vm380 = vweird.f32 %v374
    %vm381 = vmor %vm379, %vm380
    %v382 = vsel %vm381, %v374, %v378
    %v383 = vand.u32 2147483647, %v373
    %vm384 = vcmp.eq.f32.partialorder %v383, 8.507059e+37
    %v385 = vand.u32 %v373, 2147483648
    %v386 = vor.u32 1.1754944e-38, %v385
    %v387 = vsel %vm384, %v386, %v382
    %v388 = vmul.f32 1.0, %v387
    %390 = vrot.lane.b32.xlu0 %v388, 112
    %v391 = vpop.permute.xlu0 %390
    %v393 = vadd.f32 %v388, %v391
    %v394 = vxor.u32 %v393, 2147483648
    %v395 = vmul.f32 %v394, 1.442695
    %v396 = vpow.pop %v395
    %v397 = vadd.f32 %v396, 1.0
    %v398 = vrcp.pop %v397
    %v399 = vmul.f32 %v397, %v398
    %v400 = vsub.f32 1.0, %v399
    %v401 = vmul.f32 %v398, %v400
    %v402 = vadd.f32 %v398, %v401
    %vm403 = vweird.f32 %v397
    %vm404 = vweird.f32 %v398
    %vm405 = vmor %vm403, %vm404
    %v406 = vsel %vm405, %v398, %v402
    %v407 = vand.u32 2147483647, %v397
    %vm408 = vcmp.eq.f32.partialorder %v407, 8.507059e+37
    %v409 = vand.u32 %v397, 2147483648
    %v410 = vor.u32 1.1754944e-38, %v409
    %v411 = vsel %vm408, %v410, %v406
    %v412 = vmul.f32 1.0, %v411
    %413 = vrot.lane.b32.xlu0 %v339, 16
    %v414 = vpop.permute.xlu0 %413
    %416 = vrot.lane.b32.xlu0 %v316, 64
    %v417 = vpop.permute.xlu0 %416
    %v419 = vsel %vm38, %v412, %v414
    %v420 = vsel %vm149, %v419, %v179
    %vm421 = vcmask 523264
    %v422 = vsel %vm421, %v420, %v417
    %vm423 = vcmask 588800
    %v424 = vsel %vm423, %v422, 0.0
    %425 = vst [vmem:[#allocation2] sm:$0x3] %v424
    %426 = vmatpush.msra.mxu0 0.0
    %427 = vmatpush.msra.mxu0 0.0
    %428 = vmatpush.msra.mxu0 0.0
    %429 = vmatpush.msra.mxu0 0.0
    %430 = vmatpush.msra.mxu0 0.0
    %431 = vmatpush.msra.mxu0 0.0
    %432 = vmatpush.msra.mxu0 0.0
    %433 = vmatpush.msra.mxu0 0.0
    %434 = vmatpush.msra.mxu0 0.0
    %435 = vmatpush.msra.mxu0 0.0
    %436 = vmatpush.msra.mxu0 %v96
    %437 = vmatpush.msra.mxu0 %v95
    %438 = vmatpush.msra.mxu0 %v94
    %439 = vmatpush.msra.mxu0 %v93
    %440 = vmatpush.msra.mxu0 %v92
    %441 = vmatpush.msra.mxu0 %v91
    %442 = vmatmul.f32.gmra.mxu0 %v348
    %v443 = vpop.f32.mrf.mxu0
    %v444 = vadd.f32 0.0, %v443
    %445 = vdwg.mxu0
    %v447 = vrot.slane %v444, 6
    %v449 = vadd.f32 %v86, %v447
    %v450 = vtanh.pop %v449
    %v451 = vrot.slane %v339, 6
    %452 = vrot.lane.b32.xlu0 %v451, 32
    %v453 = vpop.permute.xlu0 %452
    %v455 = vsel %vm149, %v450, %v453
    %v457 = vrot.slane %v455, 2
    %v458 = vsel %vm123, %v457, 0
    %460 = vmatpush.msra.mxu0 0.0
    %461 = vmatpush.msra.mxu0 0.0
    %462 = vmatpush.msra.mxu0 0.0
    %463 = vmatpush.msra.mxu0 0.0
    %464 = vmatpush.msra.mxu0 0.0
    %465 = vmatpush.msra.mxu0 0.0
    %466 = vmatpush.msra.mxu0 0.0
    %467 = vmatpush.msra.mxu0 0.0
    %468 = vmatpush.msra.mxu0 0.0
    %469 = vmatpush.msra.mxu0 0.0
    %470 = vmatpush.msra.mxu0 %v103
    %471 = vmatpush.msra.mxu0 %v102
    %472 = vmatpush.msra.mxu0 %v101
    %473 = vmatpush.msra.mxu0 %v100
    %474 = vmatpush.msra.mxu0 %v99
    %475 = vmatpush.msra.mxu0 %v98
    %476 = vmatmul.f32.gmra.mxu0 %v458
    %v477 = vpop.f32.mrf.mxu0
    %v478 = vadd.f32 0.0, %v477
    %479 = vdwg.mxu0
    %v481 = vrot.slane %v478, 6
    %482 = vrot.lane.b32.xlu0 %v481, 32
    %v483 = vpop.permute.xlu0 %482
    %v485 = vadd.f32 %v86, %v483
    %v486 = vtanh.pop %v485
    %v488 = vrot.slane %v486, 2
    %489 = vrot.lane.b32.xlu0 %v488, 96
    %v490 = vpop.permute.xlu0 %489
    %v491 = vsel %vm149, %v490, 0
    %493 = vmatpush.msra.mxu0 0.0
    %494 = vmatpush.msra.mxu0 0.0
    %495 = vmatpush.msra.mxu0 0.0
    %496 = vmatpush.msra.mxu0 0.0
    %497 = vmatpush.msra.mxu0 0.0
    %498 = vmatpush.msra.mxu0 0.0
    %499 = vmatpush.msra.mxu0 0.0
    %500 = vmatpush.msra.mxu0 0.0
    %501 = vmatpush.msra.mxu0 0.0
    %502 = vmatpush.msra.mxu0 0.0
    %503 = vmatpush.msra.mxu0 0.0
    %504 = vmatpush.msra.mxu0 0.0
    %505 = vmatpush.msra.mxu0 %v107
    %506 = vmatpush.msra.mxu0 %v106
    %507 = vmatpush.msra.mxu0 %v105
    %508 = vmatpush.msra.mxu0 %v104
    %509 = vmatmul.f32.gmra.mxu0 %v491
    %v510 = vpop.f32.mrf.mxu0
    %v511 = vadd.f32 %v116, %v510
    %512 = vdwg.mxu0
    %v513 = vmax.f32 %v511, 0.0
    %vm514 = vcmp.ne.f32.partialorder %v511, %v511
    %v515 = vadd.f32 %v511, 0.0
    %v516 = vand.u32 2147483647, %v511
    %v517 = vsub.f32 0.0, %v516
    %v518 = vmul.f32 %v517, 1.442695
    %v519 = vpow.pop %v518
    %v520 = vadd.f32 %v519, 1.0
    %v521 = vlog2.pop %v520
    %v522 = vmul.f32 %v521, 0.6931472
    %v523 = vmul.f32 -0.5, %v519
    %v524 = vadd.f32 %v523, 1.0
    %v525 = vmul.f32 %v524, %v519
    %v526 = vand.u32 2147483647, %v519
    %vm527 = vcmp.lt.f32.partialorder %v526, 0.0004427343
    %v528 = vsel %vm527, %v525, %v522
    %v529 = vadd.f32 %v513, %v528
    %v530 = vsel %vm514, %v515, %v529
    %v531 = vxor.u32 %v511, 2147483648
    %v532 = vmul.f32 %v531, 1.442695
    %v533 = vpow.pop %v532
    %v534 = vadd.f32 %v533, 1.0
    %v535 = vrcp.pop %v534
    %v536 = vmul.f32 %v534, %v535
    %v537 = vsub.f32 1.0, %v536
    %v538 = vmul.f32 %v535, %v537
    %v539 = vadd.f32 %v535, %v538
    %vm540 = vweird.f32 %v534
    %vm541 = vweird.f32 %v535
    %vm542 = vmor %vm540, %vm541
    %v543 = vsel %vm542, %v535, %v539
    %v544 = vand.u32 2147483647, %v534
    %vm545 = vcmp.eq.f32.partialorder %v544, 8.507059e+37
    %v546 = vand.u32 %v534, 2147483648
    %v547 = vor.u32 1.1754944e-38, %v546
    %v548 = vsel %vm545, %v547, %v543
    %v549 = vmul.f32 1.0, %v548
    %v551 = vsel %vm38, %v511, 0
    %553 = vmatpush.xpose.msra.mxu0 0.0
    %554 = vmatpush.xpose.msra.mxu0 0.0
    %555 = vmatpush.xpose.msra.mxu0 0.0
    %556 = vmatpush.xpose.msra.mxu0 0.0
    %557 = vmatpush.xpose.msra.mxu0 0.0
    %558 = vmatpush.xpose.msra.mxu0 0.0
    %559 = vmatpush.xpose.msra.mxu0 0.0
    %560 = vmatpush.xpose.msra.mxu0 0.0
    %561 = vmatpush.xpose.msra.mxu0 0.0
    %562 = vmatpush.xpose.msra.mxu0 0.0
    %563 = vmatpush.xpose.msra.mxu0 0.0
    %564 = vmatpush.xpose.msra.mxu0 0.0
    %565 = vmatpush.xpose.msra.mxu0 0.0
    %566 = vmatpush.xpose.msra.mxu0 0.0
    %567 = vmatpush.xpose.msra.mxu0 0.0
    %568 = vmatpush.xpose.msra.mxu0 %v246
    %569 = vmatmul.f32.gmra.mxu0 %v551
    %v570 = vpop.f32.mrf.mxu0
    %v571 = vadd.f32 0.0, %v570
    %572 = vdwg.mxu0
    %v573 = vmul.f32 %v511, %v511
    %v574 = vsel %vm269, %v573, 0.0
    %575 = vadd.xlane.f32.xlu0 %v574
    %v576 = vpop.xlane.xlu0 %575
    %v577 = vadd.f32 %v576, 1e-12
    %v578 = vrsqrt.pop %v577
    %v579 = vmul.f32 %v578, %v577
    %v580 = vmul.f32 %v579, %v578
    %v581 = vmul.f32 0.5, %v580
    %v582 = vsub.f32 1.5, %v581
    %v583 = vmul.f32 %v578, %v582
    %vm584 = vweird.f32 %v577
    %vm585 = vweird.f32 %v578
    %vm586 = vmor %vm584, %vm585
    %v587 = vsel %vm586, %v578, %v583
    %v588 = vmul.f32 %v530, %v587
    %590 = vset.pattern.permute.xlu0 16
    %591 = vperm.xlu0 %590, %v588
    %v592 = vpop.permute.xlu0 %591
    %v594 = vmul.f32 %v592, %v571
    %v595 = vmul.f32 %v594, 1.442695
    %v596 = vpow.pop %v595
    %v597 = vsel %vm293, %v596, 0.0
    %598 = vadd.xlane.f32.xlu0 %v597
    %v599 = vpop.xlane.xlu0 %598
    %v600 = vrcp.pop %v599
    %v601 = vmul.f32 %v596, %v600
    %603 = vset.pattern.permute.xlu0 17
    %604 = vperm.xlu0 %603, %v549
    %v605 = vpop.permute.xlu0 %604
    %v607 = vmul.f32 %v605, %v601
    %v608 = vsub.f32 1.0, %v549
    %610 = vset.pattern.permute.xlu0 17
    %611 = vperm.xlu0 %610, %v608
    %v612 = vpop.permute.xlu0 %611
    %v614 = vmul.f32 %v612, %v316
    %v615 = vadd.f32 %v607, %v614
    %v617 = vsel %vm317, %v615, 0
    %619 = vmatpush.msra.mxu0 0.0
    %620 = vmatpush.msra.mxu0 0.0
    %621 = vmatpush.msra.mxu0 0.0
    %622 = vmatpush.msra.mxu0 0.0
    %623 = vmatpush.msra.mxu0 0.0
    %624 = vmatpush.msra.mxu0 0.0
    %625 = vmatpush.msra.mxu0 0.0
    %626 = vmatpush.msra.mxu0 0.0
    %627 = vmatpush.msra.mxu0 0.0
    %628 = vmatpush.msra.mxu0 0.0
    %629 = vmatpush.msra.mxu0 0.0
    %630 = vmatpush.msra.mxu0 0.0
    %631 = vmatpush.msra.mxu0 0.0
    %632 = vmatpush.msra.mxu0 0.0
    %633 = vmatpush.msra.mxu0 0.0
    %634 = vmatpush.msra.mxu0 %v36
    %635 = vmatmul.f32.gmra.mxu0 %v617
    %v636 = vpop.f32.mrf.mxu0
    %v637 = vadd.f32 0.0, %v636
    %638 = vdwg.mxu0
    %639 = vrot.lane.b32.xlu0 %v486, 96
    %v640 = vpop.permute.xlu0 %639
    %v643 = vrot.slane %v637, 6
    %644 = vrot.lane.b32.xlu0 %v643, 32
    %v645 = vpop.permute.xlu0 %644
    %v647 = vsel %vm149, %v640, %v645
    %v649 = vrot.slane %v647, 2
    %v650 = vsel %vm123, %v649, 0
    %652 = vmatpush.msra.mxu0 0.0
    %653 = vmatpush.msra.mxu0 0.0
    %654 = vmatpush.msra.mxu0 0.0
    %655 = vmatpush.msra.mxu0 0.0
    %656 = vmatpush.msra.mxu0 0.0
    %657 = vmatpush.msra.mxu0 0.0
    %658 = vmatpush.msra.mxu0 0.0
    %659 = vmatpush.msra.mxu0 0.0
    %660 = vmatpush.msra.mxu0 0.0
    %661 = vmatpush.msra.mxu0 0.0
    %662 = vmatpush.msra.mxu0 %v113
    %663 = vmatpush.msra.mxu0 %v112
    %664 = vmatpush.msra.mxu0 %v111
    %665 = vmatpush.msra.mxu0 %v110
    %666 = vmatpush.msra.mxu0 %v109
    %667 = vmatpush.msra.mxu0 %v108
    %668 = vmatmul.f32.gmra.mxu0 %v650
    %v669 = vpop.f32.mrf.mxu0
    %v670 = vadd.f32 %v120, %v669
    %671 = vdwg.mxu0
    %v672 = vxor.u32 %v670, 2147483648
    %v673 = vmul.f32 %v672, 1.442695
    %v674 = vpow.pop %v673
    %v675 = vadd.f32 %v674, 1.0
    %v676 = vrcp.pop %v675
    %v677 = vmul.f32 %v675, %v676
    %v678 = vsub.f32 1.0, %v677
    %v679 = vmul.f32 %v676, %v678
    %v680 = vadd.f32 %v676, %v679
    %vm681 = vweird.f32 %v675
    %vm682 = vweird.f32 %v676
    %vm683 = vmor %vm681, %vm682
    %v684 = vsel %vm683, %v676, %v680
    %v685 = vand.u32 2147483647, %v675
    %vm686 = vcmp.eq.f32.partialorder %v685, 8.507059e+37
    %v687 = vand.u32 %v675, 2147483648
    %v688 = vor.u32 1.1754944e-38, %v687
    %v689 = vsel %vm686, %v688, %v684
    %v690 = vmul.f32 1.0, %v689
    %692 = vrot.lane.b32.xlu0 %v690, 112
    %v693 = vpop.permute.xlu0 %692
    %v695 = vadd.f32 %v690, %v693
    %v696 = vxor.u32 %v695, 2147483648
    %v697 = vmul.f32 %v696, 1.442695
    %v698 = vpow.pop %v697
    %v699 = vadd.f32 %v698, 1.0
    %v700 = vrcp.pop %v699
    %v701 = vmul.f32 %v699, %v700
    %v702 = vsub.f32 1.0, %v701
    %v703 = vmul.f32 %v700, %v702
    %v704 = vadd.f32 %v700, %v703
    %vm705 = vweird.f32 %v699
    %vm706 = vweird.f32 %v700
    %vm707 = vmor %vm705, %vm706
    %v708 = vsel %vm707, %v700, %v704
    %v709 = vand.u32 2147483647, %v699
    %vm710 = vcmp.eq.f32.partialorder %v709, 8.507059e+37
    %v711 = vand.u32 %v699, 2147483648
    %v712 = vor.u32 1.1754944e-38, %v711
    %v713 = vsel %vm710, %v712, %v708
    %v714 = vmul.f32 1.0, %v713
    %715 = vrot.lane.b32.xlu0 %v637, 16
    %v716 = vpop.permute.xlu0 %715
    %719 = vrot.lane.b32.xlu0 %v615, 64
    %v720 = vpop.permute.xlu0 %719
    %v722 = vsel %vm38, %v714, %v716
    %v723 = vsel %vm149, %v722, %v488
    %v724 = vsel %vm421, %v723, %v720
    %v725 = vsel %vm423, %v724, 0.0
    %s726 = scalar_lea.vmem [#allocation2], 2
    %727 = vst [vmem:[%s726] sm:$0x3] %v725
    %728 = vmatpush.msra.mxu0 0.0
    %729 = vmatpush.msra.mxu0 0.0
    %730 = vmatpush.msra.mxu0 0.0
    %731 = vmatpush.msra.mxu0 0.0
    %732 = vmatpush.msra.mxu0 0.0
    %733 = vmatpush.msra.mxu0 0.0
    %734 = vmatpush.msra.mxu0 0.0
    %735 = vmatpush.msra.mxu0 0.0
    %736 = vmatpush.msra.mxu0 0.0
    %737 = vmatpush.msra.mxu0 0.0
    %738 = vmatpush.msra.mxu0 %v96
    %739 = vmatpush.msra.mxu0 %v95
    %740 = vmatpush.msra.mxu0 %v94
    %741 = vmatpush.msra.mxu0 %v93
    %742 = vmatpush.msra.mxu0 %v92
    %743 = vmatpush.msra.mxu0 %v91
    %744 = vmatmul.f32.gmra.mxu0 %v650
    %v745 = vpop.f32.mrf.mxu0
    %v746 = vadd.f32 0.0, %v745
    %747 = vdwg.mxu0
    %v749 = vrot.slane %v746, 4
    %v751 = vadd.f32 %v86, %v749
    %v752 = vtanh.pop %v751
    %v753 = vrot.slane %v637, 4
    %754 = vrot.lane.b32.xlu0 %v753, 32
    %v755 = vpop.permute.xlu0 %754
    %v757 = vsel %vm149, %v752, %v755
    %v759 = vrot.slane %v757, 4
    %v760 = vsel %vm123, %v759, 0
    %762 = vmatpush.msra.mxu0 0.0
    %763 = vmatpush.msra.mxu0 0.0
    %764 = vmatpush.msra.mxu0 0.0
    %765 = vmatpush.msra.mxu0 0.0
    %766 = vmatpush.msra.mxu0 0.0
    %767 = vmatpush.msra.mxu0 0.0
    %768 = vmatpush.msra.mxu0 0.0
    %769 = vmatpush.msra.mxu0 0.0
    %770 = vmatpush.msra.mxu0 0.0
    %771 = vmatpush.msra.mxu0 0.0
    %772 = vmatpush.msra.mxu0 %v103
    %773 = vmatpush.msra.mxu0 %v102
    %774 = vmatpush.msra.mxu0 %v101
    %775 = vmatpush.msra.mxu0 %v100
    %776 = vmatpush.msra.mxu0 %v99
    %777 = vmatpush.msra.mxu0 %v98
    %778 = vmatmul.f32.gmra.mxu0 %v760
    %v779 = vpop.f32.mrf.mxu0
    %v780 = vadd.f32 0.0, %v779
    %781 = vdwg.mxu0
    %v783 = vrot.slane %v780, 4
    %784 = vrot.lane.b32.xlu0 %v783, 32
    %v785 = vpop.permute.xlu0 %784
    %v787 = vadd.f32 %v86, %v785
    %v788 = vtanh.pop %v787
    %v790 = vrot.slane %v788, 4
    %791 = vrot.lane.b32.xlu0 %v790, 96
    %v792 = vpop.permute.xlu0 %791
    %v793 = vsel %vm149, %v792, 0
    %795 = vmatpush.msra.mxu0 0.0
    %796 = vmatpush.msra.mxu0 0.0
    %797 = vmatpush.msra.mxu0 0.0
    %798 = vmatpush.msra.mxu0 0.0
    %799 = vmatpush.msra.mxu0 0.0
    %800 = vmatpush.msra.mxu0 0.0
    %801 = vmatpush.msra.mxu0 0.0
    %802 = vmatpush.msra.mxu0 0.0
    %803 = vmatpush.msra.mxu0 0.0
    %804 = vmatpush.msra.mxu0 0.0
    %805 = vmatpush.msra.mxu0 0.0
    %806 = vmatpush.msra.mxu0 0.0
    %807 = vmatpush.msra.mxu0 %v107
    %808 = vmatpush.msra.mxu0 %v106
    %809 = vmatpush.msra.mxu0 %v105
    %810 = vmatpush.msra.mxu0 %v104
    %811 = vmatmul.f32.gmra.mxu0 %v793
    %v812 = vpop.f32.mrf.mxu0
    %v813 = vadd.f32 %v116, %v812
    %814 = vdwg.mxu0
    %v815 = vmax.f32 %v813, 0.0
    %vm816 = vcmp.ne.f32.partialorder %v813, %v813
    %v817 = vadd.f32 %v813, 0.0
    %v818 = vand.u32 2147483647, %v813
    %v819 = vsub.f32 0.0, %v818
    %v820 = vmul.f32 %v819, 1.442695
    %v821 = vpow.pop %v820
    %v822 = vadd.f32 %v821, 1.0
    %v823 = vlog2.pop %v822
    %v824 = vmul.f32 %v823, 0.6931472
    %v825 = vmul.f32 -0.5, %v821
    %v826 = vadd.f32 %v825, 1.0
    %v827 = vmul.f32 %v826, %v821
    %v828 = vand.u32 2147483647, %v821
    %vm829 = vcmp.lt.f32.partialorder %v828, 0.0004427343
    %v830 = vsel %vm829, %v827, %v824
    %v831 = vadd.f32 %v815, %v830
    %v832 = vsel %vm816, %v817, %v831
    %v833 = vxor.u32 %v813, 2147483648
    %v834 = vmul.f32 %v833, 1.442695
    %v835 = vpow.pop %v834
    %v836 = vadd.f32 %v835, 1.0
    %v837 = vrcp.pop %v836
    %v838 = vmul.f32 %v836, %v837
    %v839 = vsub.f32 1.0, %v838
    %v840 = vmul.f32 %v837, %v839
    %v841 = vadd.f32 %v837, %v840
    %vm842 = vweird.f32 %v836
    %vm843 = vweird.f32 %v837
    %vm844 = vmor %vm842, %vm843
    %v845 = vsel %vm844, %v837, %v841
    %v846 = vand.u32 2147483647, %v836
    %vm847 = vcmp.eq.f32.partialorder %v846, 8.507059e+37
    %v848 = vand.u32 %v836, 2147483648
    %v849 = vor.u32 1.1754944e-38, %v848
    %v850 = vsel %vm847, %v849, %v845
    %v851 = vmul.f32 1.0, %v850
    %v853 = vsel %vm38, %v813, 0
    %855 = vmatpush.xpose.msra.mxu0 0.0
    %856 = vmatpush.xpose.msra.mxu0 0.0
    %857 = vmatpush.xpose.msra.mxu0 0.0
    %858 = vmatpush.xpose.msra.mxu0 0.0
    %859 = vmatpush.xpose.msra.mxu0 0.0
    %860 = vmatpush.xpose.msra.mxu0 0.0
    %861 = vmatpush.xpose.msra.mxu0 0.0
    %862 = vmatpush.xpose.msra.mxu0 0.0
    %863 = vmatpush.xpose.msra.mxu0 0.0
    %864 = vmatpush.xpose.msra.mxu0 0.0
    %865 = vmatpush.xpose.msra.mxu0 0.0
    %866 = vmatpush.xpose.msra.mxu0 0.0
    %867 = vmatpush.xpose.msra.mxu0 0.0
    %868 = vmatpush.xpose.msra.mxu0 0.0
    %869 = vmatpush.xpose.msra.mxu0 0.0
    %870 = vmatpush.xpose.msra.mxu0 %v246
    %871 = vmatmul.f32.gmra.mxu0 %v853
    %v872 = vpop.f32.mrf.mxu0
    %v873 = vadd.f32 0.0, %v872
    %874 = vdwg.mxu0
    %v875 = vmul.f32 %v813, %v813
    %v876 = vsel %vm269, %v875, 0.0
    %877 = vadd.xlane.f32.xlu0 %v876
    %v878 = vpop.xlane.xlu0 %877
    %v879 = vadd.f32 %v878, 1e-12
    %v880 = vrsqrt.pop %v879
    %v881 = vmul.f32 %v880, %v879
    %v882 = vmul.f32 %v881, %v880
    %v883 = vmul.f32 0.5, %v882
    %v884 = vsub.f32 1.5, %v883
    %v885 = vmul.f32 %v880, %v884
    %vm886 = vweird.f32 %v879
    %vm887 = vweird.f32 %v880
    %vm888 = vmor %vm886, %vm887
    %v889 = vsel %vm888, %v880, %v885
    %v890 = vmul.f32 %v832, %v889
    %892 = vset.pattern.permute.xlu0 16
    %893 = vperm.xlu0 %892, %v890
    %v894 = vpop.permute.xlu0 %893
    %v896 = vmul.f32 %v894, %v873
    %v897 = vmul.f32 %v896, 1.442695
    %v898 = vpow.pop %v897
    %v899 = vsel %vm293, %v898, 0.0
    %900 = vadd.xlane.f32.xlu0 %v899
    %v901 = vpop.xlane.xlu0 %900
    %v902 = vrcp.pop %v901
    %v903 = vmul.f32 %v898, %v902
    %905 = vset.pattern.permute.xlu0 17
    %906 = vperm.xlu0 %905, %v851
    %v907 = vpop.permute.xlu0 %906
    %v909 = vmul.f32 %v907, %v903
    %v910 = vsub.f32 1.0, %v851
    %912 = vset.pattern.permute.xlu0 17
    %913 = vperm.xlu0 %912, %v910
    %v914 = vpop.permute.xlu0 %913
    %v916 = vmul.f32 %v914, %v615
    %v917 = vadd.f32 %v909, %v916
    %v919 = vsel %vm317, %v917, 0
    %921 = vmatpush.msra.mxu0 0.0
    %922 = vmatpush.msra.mxu0 0.0
    %923 = vmatpush.msra.mxu0 0.0
    %924 = vmatpush.msra.mxu0 0.0
    %925 = vmatpush.msra.mxu0 0.0
    %926 = vmatpush.msra.mxu0 0.0
    %927 = vmatpush.msra.mxu0 0.0
    %928 = vmatpush.msra.mxu0 0.0
    %929 = vmatpush.msra.mxu0 0.0
    %930 = vmatpush.msra.mxu0 0.0
    %931 = vmatpush.msra.mxu0 0.0
    %932 = vmatpush.msra.mxu0 0.0
    %933 = vmatpush.msra.mxu0 0.0
    %934 = vmatpush.msra.mxu0 0.0
    %935 = vmatpush.msra.mxu0 0.0
    %936 = vmatpush.msra.mxu0 %v36
    %937 = vmatmul.f32.gmra.mxu0 %v919
    %v938 = vpop.f32.mrf.mxu0
    %v939 = vadd.f32 0.0, %v938
    %940 = vdwg.mxu0
    %941 = vrot.lane.b32.xlu0 %v788, 96
    %v942 = vpop.permute.xlu0 %941
    %v945 = vrot.slane %v939, 4
    %946 = vrot.lane.b32.xlu0 %v945, 32
    %v947 = vpop.permute.xlu0 %946
    %v949 = vsel %vm149, %v942, %v947
    %v951 = vrot.slane %v949, 4
    %v952 = vsel %vm123, %v951, 0
    %954 = vmatpush.msra.mxu0 0.0
    %955 = vmatpush.msra.mxu0 0.0
    %956 = vmatpush.msra.mxu0 0.0
    %957 = vmatpush.msra.mxu0 0.0
    %958 = vmatpush.msra.mxu0 0.0
    %959 = vmatpush.msra.mxu0 0.0
    %960 = vmatpush.msra.mxu0 0.0
    %961 = vmatpush.msra.mxu0 0.0
    %962 = vmatpush.msra.mxu0 0.0
    %963 = vmatpush.msra.mxu0 0.0
    %964 = vmatpush.msra.mxu0 %v113
    %965 = vmatpush.msra.mxu0 %v112
    %966 = vmatpush.msra.mxu0 %v111
    %967 = vmatpush.msra.mxu0 %v110
    %968 = vmatpush.msra.mxu0 %v109
    %969 = vmatpush.msra.mxu0 %v108
    %970 = vmatmul.f32.gmra.mxu0 %v952
    %v971 = vpop.f32.mrf.mxu0
    %v972 = vadd.f32 %v120, %v971
    %973 = vdwg.mxu0
    %v974 = vxor.u32 %v972, 2147483648
    %v975 = vmul.f32 %v974, 1.442695
    %v976 = vpow.pop %v975
    %v977 = vadd.f32 %v976, 1.0
    %v978 = vrcp.pop %v977
    %v979 = vmul.f32 %v977, %v978
    %v980 = vsub.f32 1.0, %v979
    %v981 = vmul.f32 %v978, %v980
    %v982 = vadd.f32 %v978, %v981
    %vm983 = vweird.f32 %v977
    %vm984 = vweird.f32 %v978
    %vm985 = vmor %vm983, %vm984
    %v986 = vsel %vm985, %v978, %v982
    %v987 = vand.u32 2147483647, %v977
    %vm988 = vcmp.eq.f32.partialorder %v987, 8.507059e+37
    %v989 = vand.u32 %v977, 2147483648
    %v990 = vor.u32 1.1754944e-38, %v989
    %v991 = vsel %vm988, %v990, %v986
    %v992 = vmul.f32 1.0, %v991
    %994 = vrot.lane.b32.xlu0 %v992, 112
    %v995 = vpop.permute.xlu0 %994
    %v997 = vadd.f32 %v992, %v995
    %v998 = vxor.u32 %v997, 2147483648
    %v999 = vmul.f32 %v998, 1.442695
    %v1000 = vpow.pop %v999
    %v1001 = vadd.f32 %v1000, 1.0
    %v1002 = vrcp.pop %v1001
    %v1003 = vmul.f32 %v1001, %v1002
    %v1004 = vsub.f32 1.0, %v1003
    %v1005 = vmul.f32 %v1002, %v1004
    %v1006 = vadd.f32 %v1002, %v1005
    %vm1007 = vweird.f32 %v1001
    %vm1008 = vweird.f32 %v1002
    %vm1009 = vmor %vm1007, %vm1008
    %v1010 = vsel %vm1009, %v1002, %v1006
    %v1011 = vand.u32 2147483647, %v1001
    %vm1012 = vcmp.eq.f32.partialorder %v1011, 8.507059e+37
    %v1013 = vand.u32 %v1001, 2147483648
    %v1014 = vor.u32 1.1754944e-38, %v1013
    %v1015 = vsel %vm1012, %v1014, %v1010
    %v1016 = vmul.f32 1.0, %v1015
    %1017 = vrot.lane.b32.xlu0 %v939, 16
    %v1018 = vpop.permute.xlu0 %1017
    %1021 = vrot.lane.b32.xlu0 %v917, 64
    %v1022 = vpop.permute.xlu0 %1021
    %v1024 = vsel %vm38, %v1016, %v1018
    %v1025 = vsel %vm149, %v1024, %v790
    %v1026 = vsel %vm421, %v1025, %v1022
    %v1027 = vsel %vm423, %v1026, 0.0
    %s1028 = scalar_lea.vmem [#allocation2], 4
    %1029 = vst [vmem:[%s1028] sm:$0x3] %v1027
    %1030 = vmatpush.msra.mxu0 0.0
    %1031 = vmatpush.msra.mxu0 0.0
    %1032 = vmatpush.msra.mxu0 0.0
    %1033 = vmatpush.msra.mxu0 0.0
    %1034 = vmatpush.msra.mxu0 0.0
    %1035 = vmatpush.msra.mxu0 0.0
    %1036 = vmatpush.msra.mxu0 0.0
    %1037 = vmatpush.msra.mxu0 0.0
    %1038 = vmatpush.msra.mxu0 0.0
    %1039 = vmatpush.msra.mxu0 0.0
    %1040 = vmatpush.msra.mxu0 %v96
    %1041 = vmatpush.msra.mxu0 %v95
    %1042 = vmatpush.msra.mxu0 %v94
    %1043 = vmatpush.msra.mxu0 %v93
    %1044 = vmatpush.msra.mxu0 %v92
    %1045 = vmatpush.msra.mxu0 %v91
    %1046 = vmatmul.f32.gmra.mxu0 %v952
    %v1047 = vpop.f32.mrf.mxu0
    %v1048 = vadd.f32 0.0, %v1047
    %1049 = vdwg.mxu0
    %v1051 = vrot.slane %v1048, 2
    %v1053 = vadd.f32 %v86, %v1051
    %v1054 = vtanh.pop %v1053
    %v1055 = vrot.slane %v939, 2
    %1056 = vrot.lane.b32.xlu0 %v1055, 32
    %v1057 = vpop.permute.xlu0 %1056
    %v1059 = vsel %vm149, %v1054, %v1057
    %v1061 = vrot.slane %v1059, 6
    %v1062 = vsel %vm123, %v1061, 0
    %1064 = vmatpush.msra.mxu0 0.0
    %1065 = vmatpush.msra.mxu0 0.0
    %1066 = vmatpush.msra.mxu0 0.0
    %1067 = vmatpush.msra.mxu0 0.0
    %1068 = vmatpush.msra.mxu0 0.0
    %1069 = vmatpush.msra.mxu0 0.0
    %1070 = vmatpush.msra.mxu0 0.0
    %1071 = vmatpush.msra.mxu0 0.0
    %1072 = vmatpush.msra.mxu0 0.0
    %1073 = vmatpush.msra.mxu0 0.0
    %1074 = vmatpush.msra.mxu0 %v103
    %1075 = vmatpush.msra.mxu0 %v102
    %1076 = vmatpush.msra.mxu0 %v101
    %1077 = vmatpush.msra.mxu0 %v100
    %1078 = vmatpush.msra.mxu0 %v99
    %1079 = vmatpush.msra.mxu0 %v98
    %1080 = vmatmul.f32.gmra.mxu0 %v1062
    %v1081 = vpop.f32.mrf.mxu0
    %v1082 = vadd.f32 0.0, %v1081
    %1083 = vdwg.mxu0
    %v1085 = vrot.slane %v1082, 2
    %1086 = vrot.lane.b32.xlu0 %v1085, 32
    %v1087 = vpop.permute.xlu0 %1086
    %v1089 = vadd.f32 %v86, %v1087
    %v1090 = vtanh.pop %v1089
    %v1092 = vrot.slane %v1090, 6
    %1093 = vrot.lane.b32.xlu0 %v1092, 96
    %v1094 = vpop.permute.xlu0 %1093
    %v1095 = vsel %vm149, %v1094, 0
    %1097 = vmatpush.msra.mxu0 0.0
    %1098 = vmatpush.msra.mxu0 0.0
    %1099 = vmatpush.msra.mxu0 0.0
    %1100 = vmatpush.msra.mxu0 0.0
    %1101 = vmatpush.msra.mxu0 0.0
    %1102 = vmatpush.msra.mxu0 0.0
    %1103 = vmatpush.msra.mxu0 0.0
    %1104 = vmatpush.msra.mxu0 0.0
    %1105 = vmatpush.msra.mxu0 0.0
    %1106 = vmatpush.msra.mxu0 0.0
    %1107 = vmatpush.msra.mxu0 0.0
    %1108 = vmatpush.msra.mxu0 0.0
    %1109 = vmatpush.msra.mxu0 %v107
    %1110 = vmatpush.msra.mxu0 %v106
    %1111 = vmatpush.msra.mxu0 %v105
    %1112 = vmatpush.msra.mxu0 %v104
    %1113 = vmatmul.f32.gmra.mxu0 %v1095
    %v1114 = vpop.f32.mrf.mxu0
    %v1115 = vadd.f32 %v116, %v1114
    %1116 = vdwg.mxu0
    %v1117 = vmax.f32 %v1115, 0.0
    %vm1118 = vcmp.ne.f32.partialorder %v1115, %v1115
    %v1119 = vadd.f32 %v1115, 0.0
    %v1120 = vand.u32 2147483647, %v1115
    %v1121 = vsub.f32 0.0, %v1120
    %v1122 = vmul.f32 %v1121, 1.442695
    %v1123 = vpow.pop %v1122
    %v1124 = vadd.f32 %v1123, 1.0
    %v1125 = vlog2.pop %v1124
    %v1126 = vmul.f32 %v1125, 0.6931472
    %v1127 = vmul.f32 -0.5, %v1123
    %v1128 = vadd.f32 %v1127, 1.0
    %v1129 = vmul.f32 %v1128, %v1123
    %v1130 = vand.u32 2147483647, %v1123
    %vm1131 = vcmp.lt.f32.partialorder %v1130, 0.0004427343
    %v1132 = vsel %vm1131, %v1129, %v1126
    %v1133 = vadd.f32 %v1117, %v1132
    %v1134 = vsel %vm1118, %v1119, %v1133
    %v1135 = vxor.u32 %v1115, 2147483648
    %v1136 = vmul.f32 %v1135, 1.442695
    %v1137 = vpow.pop %v1136
    %v1138 = vadd.f32 %v1137, 1.0
    %v1139 = vrcp.pop %v1138
    %v1140 = vmul.f32 %v1138, %v1139
    %v1141 = vsub.f32 1.0, %v1140
    %v1142 = vmul.f32 %v1139, %v1141
    %v1143 = vadd.f32 %v1139, %v1142
    %vm1144 = vweird.f32 %v1138
    %vm1145 = vweird.f32 %v1139
    %vm1146 = vmor %vm1144, %vm1145
    %v1147 = vsel %vm1146, %v1139, %v1143
    %v1148 = vand.u32 2147483647, %v1138
    %vm1149 = vcmp.eq.f32.partialorder %v1148, 8.507059e+37
    %v1150 = vand.u32 %v1138, 2147483648
    %v1151 = vor.u32 1.1754944e-38, %v1150
    %v1152 = vsel %vm1149, %v1151, %v1147
    %v1153 = vmul.f32 1.0, %v1152
    %v1155 = vsel %vm38, %v1115, 0
    %1157 = vmatpush.xpose.msra.mxu0 0.0
    %1158 = vmatpush.xpose.msra.mxu0 0.0
    %1159 = vmatpush.xpose.msra.mxu0 0.0
    %1160 = vmatpush.xpose.msra.mxu0 0.0
    %1161 = vmatpush.xpose.msra.mxu0 0.0
    %1162 = vmatpush.xpose.msra.mxu0 0.0
    %1163 = vmatpush.xpose.msra.mxu0 0.0
    %1164 = vmatpush.xpose.msra.mxu0 0.0
    %1165 = vmatpush.xpose.msra.mxu0 0.0
    %1166 = vmatpush.xpose.msra.mxu0 0.0
    %1167 = vmatpush.xpose.msra.mxu0 0.0
    %1168 = vmatpush.xpose.msra.mxu0 0.0
    %1169 = vmatpush.xpose.msra.mxu0 0.0
    %1170 = vmatpush.xpose.msra.mxu0 0.0
    %1171 = vmatpush.xpose.msra.mxu0 0.0
    %1172 = vmatpush.xpose.msra.mxu0 %v246
    %1173 = vmatmul.f32.gmra.mxu0 %v1155
    %v1174 = vpop.f32.mrf.mxu0
    %v1175 = vadd.f32 0.0, %v1174
    %1176 = vdwg.mxu0
    %v1177 = vmul.f32 %v1115, %v1115
    %v1178 = vsel %vm269, %v1177, 0.0
    %1179 = vadd.xlane.f32.xlu0 %v1178
    %v1180 = vpop.xlane.xlu0 %1179
    %v1181 = vadd.f32 %v1180, 1e-12
    %v1182 = vrsqrt.pop %v1181
    %v1183 = vmul.f32 %v1182, %v1181
    %v1184 = vmul.f32 %v1183, %v1182
    %v1185 = vmul.f32 0.5, %v1184
    %v1186 = vsub.f32 1.5, %v1185
    %v1187 = vmul.f32 %v1182, %v1186
    %vm1188 = vweird.f32 %v1181
    %vm1189 = vweird.f32 %v1182
    %vm1190 = vmor %vm1188, %vm1189
    %v1191 = vsel %vm1190, %v1182, %v1187
    %v1192 = vmul.f32 %v1134, %v1191
    %1194 = vset.pattern.permute.xlu0 16
    %1195 = vperm.xlu0 %1194, %v1192
    %v1196 = vpop.permute.xlu0 %1195
    %v1198 = vmul.f32 %v1196, %v1175
    %v1199 = vmul.f32 %v1198, 1.442695
    %v1200 = vpow.pop %v1199
    %v1201 = vsel %vm293, %v1200, 0.0
    %1202 = vadd.xlane.f32.xlu0 %v1201
    %v1203 = vpop.xlane.xlu0 %1202
    %v1204 = vrcp.pop %v1203
    %v1205 = vmul.f32 %v1200, %v1204
    %1207 = vset.pattern.permute.xlu0 17
    %1208 = vperm.xlu0 %1207, %v1153
    %v1209 = vpop.permute.xlu0 %1208
    %v1211 = vmul.f32 %v1209, %v1205
    %v1212 = vsub.f32 1.0, %v1153
    %1214 = vset.pattern.permute.xlu0 17
    %1215 = vperm.xlu0 %1214, %v1212
    %v1216 = vpop.permute.xlu0 %1215
    %v1218 = vmul.f32 %v1216, %v917
    %v1219 = vadd.f32 %v1211, %v1218
    %v1221 = vsel %vm317, %v1219, 0
    %1223 = vmatpush.msra.mxu0 0.0
    %1224 = vmatpush.msra.mxu0 0.0
    %1225 = vmatpush.msra.mxu0 0.0
    %1226 = vmatpush.msra.mxu0 0.0
    %1227 = vmatpush.msra.mxu0 0.0
    %1228 = vmatpush.msra.mxu0 0.0
    %1229 = vmatpush.msra.mxu0 0.0
    %1230 = vmatpush.msra.mxu0 0.0
    %1231 = vmatpush.msra.mxu0 0.0
    %1232 = vmatpush.msra.mxu0 0.0
    %1233 = vmatpush.msra.mxu0 0.0
    %1234 = vmatpush.msra.mxu0 0.0
    %1235 = vmatpush.msra.mxu0 0.0
    %1236 = vmatpush.msra.mxu0 0.0
    %1237 = vmatpush.msra.mxu0 0.0
    %1238 = vmatpush.msra.mxu0 %v36
    %1239 = vmatmul.f32.gmra.mxu0 %v1221
    %v1240 = vpop.f32.mrf.mxu0
    %v1241 = vadd.f32 0.0, %v1240
    %1242 = vdwg.mxu0
    %1243 = vrot.lane.b32.xlu0 %v1090, 96
    %v1244 = vpop.permute.xlu0 %1243
    %v1247 = vrot.slane %v1241, 2
    %1248 = vrot.lane.b32.xlu0 %v1247, 32
    %v1249 = vpop.permute.xlu0 %1248
    %v1251 = vsel %vm149, %v1244, %v1249
    %v1253 = vrot.slane %v1251, 6
    %v1254 = vsel %vm123, %v1253, 0
    %1256 = vmatpush.msra.mxu0 0.0
    %1257 = vmatpush.msra.mxu0 0.0
    %1258 = vmatpush.msra.mxu0 0.0
    %1259 = vmatpush.msra.mxu0 0.0
    %1260 = vmatpush.msra.mxu0 0.0
    %1261 = vmatpush.msra.mxu0 0.0
    %1262 = vmatpush.msra.mxu0 0.0
    %1263 = vmatpush.msra.mxu0 0.0
    %1264 = vmatpush.msra.mxu0 0.0
    %1265 = vmatpush.msra.mxu0 0.0
    %1266 = vmatpush.msra.mxu0 %v113
    %1267 = vmatpush.msra.mxu0 %v112
    %1268 = vmatpush.msra.mxu0 %v111
    %1269 = vmatpush.msra.mxu0 %v110
    %1270 = vmatpush.msra.mxu0 %v109
    %1271 = vmatpush.msra.mxu0 %v108
    %1272 = vmatmul.f32.gmra.mxu0 %v1254
    %v1273 = vpop.f32.mrf.mxu0
    %v1274 = vadd.f32 %v120, %v1273
    %1275 = vdwg.mxu0
    %v1276 = vxor.u32 %v1274, 2147483648
    %v1277 = vmul.f32 %v1276, 1.442695
    %v1278 = vpow.pop %v1277
    %v1279 = vadd.f32 %v1278, 1.0
    %v1280 = vrcp.pop %v1279
    %v1281 = vmul.f32 %v1279, %v1280
    %v1282 = vsub.f32 1.0, %v1281
    %v1283 = vmul.f32 %v1280, %v1282
    %v1284 = vadd.f32 %v1280, %v1283
    %vm1285 = vweird.f32 %v1279
    %vm1286 = vweird.f32 %v1280
    %vm1287 = vmor %vm1285, %vm1286
    %v1288 = vsel %vm1287, %v1280, %v1284
    %v1289 = vand.u32 2147483647, %v1279
    %vm1290 = vcmp.eq.f32.partialorder %v1289, 8.507059e+37
    %v1291 = vand.u32 %v1279, 2147483648
    %v1292 = vor.u32 1.1754944e-38, %v1291
    %v1293 = vsel %vm1290, %v1292, %v1288
    %v1294 = vmul.f32 1.0, %v1293
    %1296 = vrot.lane.b32.xlu0 %v1294, 112
    %v1297 = vpop.permute.xlu0 %1296
    %v1299 = vadd.f32 %v1294, %v1297
    %v1300 = vxor.u32 %v1299, 2147483648
    %v1301 = vmul.f32 %v1300, 1.442695
    %v1302 = vpow.pop %v1301
    %v1303 = vadd.f32 %v1302, 1.0
    %v1304 = vrcp.pop %v1303
    %v1305 = vmul.f32 %v1303, %v1304
    %v1306 = vsub.f32 1.0, %v1305
    %v1307 = vmul.f32 %v1304, %v1306
    %v1308 = vadd.f32 %v1304, %v1307
    %vm1309 = vweird.f32 %v1303
    %vm1310 = vweird.f32 %v1304
    %vm1311 = vmor %vm1309, %vm1310
    %v1312 = vsel %vm1311, %v1304, %v1308
    %v1313 = vand.u32 2147483647, %v1303
    %vm1314 = vcmp.eq.f32.partialorder %v1313, 8.507059e+37
    %v1315 = vand.u32 %v1303, 2147483648
    %v1316 = vor.u32 1.1754944e-38, %v1315
    %v1317 = vsel %vm1314, %v1316, %v1312
    %v1318 = vmul.f32 1.0, %v1317
    %1319 = vrot.lane.b32.xlu0 %v1241, 16
    %v1320 = vpop.permute.xlu0 %1319
    %1323 = vrot.lane.b32.xlu0 %v1219, 64
    %v1324 = vpop.permute.xlu0 %1323
    %v1326 = vsel %vm38, %v1318, %v1320
    %v1327 = vsel %vm149, %v1326, %v1092
    %v1328 = vsel %vm421, %v1327, %v1324
    %v1329 = vsel %vm423, %v1328, 0.0
    %s1330 = scalar_lea.vmem [#allocation2], 6
    %1331 = vst [vmem:[%s1330] sm:$0x3] %v1329
    %1332 = vmatpush.msra.mxu0 0.0
    %1333 = vmatpush.msra.mxu0 0.0
    %1334 = vmatpush.msra.mxu0 0.0
    %1335 = vmatpush.msra.mxu0 0.0
    %1336 = vmatpush.msra.mxu0 0.0
    %1337 = vmatpush.msra.mxu0 0.0
    %1338 = vmatpush.msra.mxu0 0.0
    %1339 = vmatpush.msra.mxu0 0.0
    %1340 = vmatpush.msra.mxu0 0.0
    %1341 = vmatpush.msra.mxu0 0.0
    %1342 = vmatpush.msra.mxu0 %v96
    %1343 = vmatpush.msra.mxu0 %v95
    %1344 = vmatpush.msra.mxu0 %v94
    %1345 = vmatpush.msra.mxu0 %v93
    %1346 = vmatpush.msra.mxu0 %v92
    %1347 = vmatpush.msra.mxu0 %v91
    %1348 = vmatmul.f32.gmra.mxu0 %v1254
    %v1349 = vpop.f32.mrf.mxu0
    %v1350 = vadd.f32 0.0, %v1349
    %1351 = vdwg.mxu0
    %v1352 = vadd.f32 %v89, %v1350
    %v1353 = vtanh.pop %v1352
    %1354 = vrot.lane.b32.xlu0 %v1241, 32
    %v1355 = vpop.permute.xlu0 %1354
    %v1357 = vsel %vm149, %v1353, %v1355
    %v1359 = vsel %vm123, %v1357, 0
    %1361 = vmatpush.msra.mxu0 0.0
    %1362 = vmatpush.msra.mxu0 0.0
    %1363 = vmatpush.msra.mxu0 0.0
    %1364 = vmatpush.msra.mxu0 0.0
    %1365 = vmatpush.msra.mxu0 0.0
    %1366 = vmatpush.msra.mxu0 0.0
    %1367 = vmatpush.msra.mxu0 0.0
    %1368 = vmatpush.msra.mxu0 0.0
    %1369 = vmatpush.msra.mxu0 0.0
    %1370 = vmatpush.msra.mxu0 0.0
    %1371 = vmatpush.msra.mxu0 %v103
    %1372 = vmatpush.msra.mxu0 %v102
    %1373 = vmatpush.msra.mxu0 %v101
    %1374 = vmatpush.msra.mxu0 %v100
    %1375 = vmatpush.msra.mxu0 %v99
    %1376 = vmatpush.msra.mxu0 %v98
    %1377 = vmatmul.f32.gmra.mxu0 %v1359
    %v1378 = vpop.f32.mrf.mxu0
    %v1379 = vadd.f32 0.0, %v1378
    %1380 = vdwg.mxu0
    %1382 = vrot.lane.b32.xlu0 %v1379, 32
    %v1383 = vpop.permute.xlu0 %1382
    %v1385 = vadd.f32 %v89, %v1383
    %v1386 = vtanh.pop %v1385
    %1388 = vrot.lane.b32.xlu0 %v1386, 96
    %v1389 = vpop.permute.xlu0 %1388
    %v1390 = vsel %vm149, %v1389, 0
    %1392 = vmatpush.msra.mxu0 0.0
    %1393 = vmatpush.msra.mxu0 0.0
    %1394 = vmatpush.msra.mxu0 0.0
    %1395 = vmatpush.msra.mxu0 0.0
    %1396 = vmatpush.msra.mxu0 0.0
    %1397 = vmatpush.msra.mxu0 0.0
    %1398 = vmatpush.msra.mxu0 0.0
    %1399 = vmatpush.msra.mxu0 0.0
    %1400 = vmatpush.msra.mxu0 0.0
    %1401 = vmatpush.msra.mxu0 0.0
    %1402 = vmatpush.msra.mxu0 0.0
    %1403 = vmatpush.msra.mxu0 0.0
    %1404 = vmatpush.msra.mxu0 %v107
    %1405 = vmatpush.msra.mxu0 %v106
    %1406 = vmatpush.msra.mxu0 %v105
    %1407 = vmatpush.msra.mxu0 %v104
    %1408 = vmatmul.f32.gmra.mxu0 %v1390
    %v1409 = vpop.f32.mrf.mxu0
    %v1410 = vadd.f32 %v116, %v1409
    %1411 = vdwg.mxu0
    %v1412 = vmax.f32 %v1410, 0.0
    %vm1413 = vcmp.ne.f32.partialorder %v1410, %v1410
    %v1414 = vadd.f32 %v1410, 0.0
    %v1415 = vand.u32 2147483647, %v1410
    %v1416 = vsub.f32 0.0, %v1415
    %v1417 = vmul.f32 %v1416, 1.442695
    %v1418 = vpow.pop %v1417
    %v1419 = vadd.f32 %v1418, 1.0
    %v1420 = vlog2.pop %v1419
    %v1421 = vmul.f32 %v1420, 0.6931472
    %v1422 = vmul.f32 -0.5, %v1418
    %v1423 = vadd.f32 %v1422, 1.0
    %v1424 = vmul.f32 %v1423, %v1418
    %v1425 = vand.u32 2147483647, %v1418
    %vm1426 = vcmp.lt.f32.partialorder %v1425, 0.0004427343
    %v1427 = vsel %vm1426, %v1424, %v1421
    %v1428 = vadd.f32 %v1412, %v1427
    %v1429 = vsel %vm1413, %v1414, %v1428
    %v1430 = vxor.u32 %v1410, 2147483648
    %v1431 = vmul.f32 %v1430, 1.442695
    %v1432 = vpow.pop %v1431
    %v1433 = vadd.f32 %v1432, 1.0
    %v1434 = vrcp.pop %v1433
    %v1435 = vmul.f32 %v1433, %v1434
    %v1436 = vsub.f32 1.0, %v1435
    %v1437 = vmul.f32 %v1434, %v1436
    %v1438 = vadd.f32 %v1434, %v1437
    %vm1439 = vweird.f32 %v1433
    %vm1440 = vweird.f32 %v1434
    %vm1441 = vmor %vm1439, %vm1440
    %v1442 = vsel %vm1441, %v1434, %v1438
    %v1443 = vand.u32 2147483647, %v1433
    %vm1444 = vcmp.eq.f32.partialorder %v1443, 8.507059e+37
    %v1445 = vand.u32 %v1433, 2147483648
    %v1446 = vor.u32 1.1754944e-38, %v1445
    %v1447 = vsel %vm1444, %v1446, %v1442
    %v1448 = vmul.f32 1.0, %v1447
    %v1450 = vsel %vm38, %v1410, 0
    %1452 = vmatpush.xpose.msra.mxu0 0.0
    %1453 = vmatpush.xpose.msra.mxu0 0.0
    %1454 = vmatpush.xpose.msra.mxu0 0.0
    %1455 = vmatpush.xpose.msra.mxu0 0.0
    %1456 = vmatpush.xpose.msra.mxu0 0.0
    %1457 = vmatpush.xpose.msra.mxu0 0.0
    %1458 = vmatpush.xpose.msra.mxu0 0.0
    %1459 = vmatpush.xpose.msra.mxu0 0.0
    %1460 = vmatpush.xpose.msra.mxu0 0.0
    %1461 = vmatpush.xpose.msra.mxu0 0.0
    %1462 = vmatpush.xpose.msra.mxu0 0.0
    %1463 = vmatpush.xpose.msra.mxu0 0.0
    %1464 = vmatpush.xpose.msra.mxu0 0.0
    %1465 = vmatpush.xpose.msra.mxu0 0.0
    %1466 = vmatpush.xpose.msra.mxu0 0.0
    %1467 = vmatpush.xpose.msra.mxu0 %v246
    %1468 = vmatmul.f32.gmra.mxu0 %v1450
    %v1469 = vpop.f32.mrf.mxu0
    %v1470 = vadd.f32 0.0, %v1469
    %1471 = vdwg.mxu0
    %v1472 = vmul.f32 %v1410, %v1410
    %v1473 = vsel %vm269, %v1472, 0.0
    %1474 = vadd.xlane.f32.xlu0 %v1473
    %v1475 = vpop.xlane.xlu0 %1474
    %v1476 = vadd.f32 %v1475, 1e-12
    %v1477 = vrsqrt.pop %v1476
    %v1478 = vmul.f32 %v1477, %v1476
    %v1479 = vmul.f32 %v1478, %v1477
    %v1480 = vmul.f32 0.5, %v1479
    %v1481 = vsub.f32 1.5, %v1480
    %v1482 = vmul.f32 %v1477, %v1481
    %vm1483 = vweird.f32 %v1476
    %vm1484 = vweird.f32 %v1477
    %vm1485 = vmor %vm1483, %vm1484
    %v1486 = vsel %vm1485, %v1477, %v1482
    %v1487 = vmul.f32 %v1429, %v1486
    %1489 = vset.pattern.permute.xlu0 16
    %1490 = vperm.xlu0 %1489, %v1487
    %v1491 = vpop.permute.xlu0 %1490
    %v1493 = vmul.f32 %v1491, %v1470
    %v1494 = vmul.f32 %v1493, 1.442695
    %v1495 = vpow.pop %v1494
    %v1496 = vsel %vm293, %v1495, 0.0
    %1497 = vadd.xlane.f32.xlu0 %v1496
    %v1498 = vpop.xlane.xlu0 %1497
    %v1499 = vrcp.pop %v1498
    %v1500 = vmul.f32 %v1495, %v1499
    %1502 = vset.pattern.permute.xlu0 17
    %1503 = vperm.xlu0 %1502, %v1448
    %v1504 = vpop.permute.xlu0 %1503
    %v1506 = vmul.f32 %v1504, %v1500
    %v1507 = vsub.f32 1.0, %v1448
    %1509 = vset.pattern.permute.xlu0 17
    %1510 = vperm.xlu0 %1509, %v1507
    %v1511 = vpop.permute.xlu0 %1510
    %v1513 = vmul.f32 %v1511, %v1219
    %v1514 = vadd.f32 %v1506, %v1513
    %v1516 = vsel %vm317, %v1514, 0
    %1518 = vmatpush.msra.mxu0 0.0
    %1519 = vmatpush.msra.mxu0 0.0
    %1520 = vmatpush.msra.mxu0 0.0
    %1521 = vmatpush.msra.mxu0 0.0
    %1522 = vmatpush.msra.mxu0 0.0
    %1523 = vmatpush.msra.mxu0 0.0
    %1524 = vmatpush.msra.mxu0 0.0
    %1525 = vmatpush.msra.mxu0 0.0
    %1526 = vmatpush.msra.mxu0 0.0
    %1527 = vmatpush.msra.mxu0 0.0
    %1528 = vmatpush.msra.mxu0 0.0
    %1529 = vmatpush.msra.mxu0 0.0
    %1530 = vmatpush.msra.mxu0 0.0
    %1531 = vmatpush.msra.mxu0 0.0
    %1532 = vmatpush.msra.mxu0 0.0
    %1533 = vmatpush.msra.mxu0 %v36
    %1534 = vmatmul.f32.gmra.mxu0 %v1516
    %v1535 = vpop.f32.mrf.mxu0
    %v1536 = vadd.f32 0.0, %v1535
    %1537 = vdwg.mxu0
    %1540 = vrot.lane.b32.xlu0 %v1536, 32
    %v1541 = vpop.permute.xlu0 %1540
    %v1543 = vsel %vm149, %v1389, %v1541
    %v1545 = vsel %vm123, %v1543, 0
    %1547 = vmatpush.msra.mxu0 0.0
    %1548 = vmatpush.msra.mxu0 0.0
    %1549 = vmatpush.msra.mxu0 0.0
    %1550 = vmatpush.msra.mxu0 0.0
    %1551 = vmatpush.msra.mxu0 0.0
    %1552 = vmatpush.msra.mxu0 0.0
    %1553 = vmatpush.msra.mxu0 0.0
    %1554 = vmatpush.msra.mxu0 0.0
    %1555 = vmatpush.msra.mxu0 0.0
    %1556 = vmatpush.msra.mxu0 0.0
    %1557 = vmatpush.msra.mxu0 %v113
    %1558 = vmatpush.msra.mxu0 %v112
    %1559 = vmatpush.msra.mxu0 %v111
    %1560 = vmatpush.msra.mxu0 %v110
    %1561 = vmatpush.msra.mxu0 %v109
    %1562 = vmatpush.msra.mxu0 %v108
    %1563 = vmatmul.f32.gmra.mxu0 %v1545
    %v1564 = vpop.f32.mrf.mxu0
    %v1565 = vadd.f32 %v120, %v1564
    %1566 = vdwg.mxu0
    %v1567 = vxor.u32 %v1565, 2147483648
    %v1568 = vmul.f32 %v1567, 1.442695
    %v1569 = vpow.pop %v1568
    %v1570 = vadd.f32 %v1569, 1.0
    %v1571 = vrcp.pop %v1570
    %v1572 = vmul.f32 %v1570, %v1571
    %v1573 = vsub.f32 1.0, %v1572
    %v1574 = vmul.f32 %v1571, %v1573
    %v1575 = vadd.f32 %v1571, %v1574
    %vm1576 = vweird.f32 %v1570
    %vm1577 = vweird.f32 %v1571
    %vm1578 = vmor %vm1576, %vm1577
    %v1579 = vsel %vm1578, %v1571, %v1575
    %v1580 = vand.u32 2147483647, %v1570
    %vm1581 = vcmp.eq.f32.partialorder %v1580, 8.507059e+37
    %v1582 = vand.u32 %v1570, 2147483648
    %v1583 = vor.u32 1.1754944e-38, %v1582
    %v1584 = vsel %vm1581, %v1583, %v1579
    %v1585 = vmul.f32 1.0, %v1584
    %1587 = vrot.lane.b32.xlu0 %v1585, 112
    %v1588 = vpop.permute.xlu0 %1587
    %v1590 = vadd.f32 %v1585, %v1588
    %v1591 = vxor.u32 %v1590, 2147483648
    %v1592 = vmul.f32 %v1591, 1.442695
    %v1593 = vpow.pop %v1592
    %v1594 = vadd.f32 %v1593, 1.0
    %v1595 = vrcp.pop %v1594
    %v1596 = vmul.f32 %v1594, %v1595
    %v1597 = vsub.f32 1.0, %v1596
    %v1598 = vmul.f32 %v1595, %v1597
    %v1599 = vadd.f32 %v1595, %v1598
    %vm1600 = vweird.f32 %v1594
    %vm1601 = vweird.f32 %v1595
    %vm1602 = vmor %vm1600, %vm1601
    %v1603 = vsel %vm1602, %v1595, %v1599
    %v1604 = vand.u32 2147483647, %v1594
    %vm1605 = vcmp.eq.f32.partialorder %v1604, 8.507059e+37
    %v1606 = vand.u32 %v1594, 2147483648
    %v1607 = vor.u32 1.1754944e-38, %v1606
    %v1608 = vsel %vm1605, %v1607, %v1603
    %v1609 = vmul.f32 1.0, %v1608
    %1610 = vrot.lane.b32.xlu0 %v1536, 16
    %v1611 = vpop.permute.xlu0 %1610
    %1613 = vrot.lane.b32.xlu0 %v1514, 64
    %v1614 = vpop.permute.xlu0 %1613
    %v1616 = vsel %vm38, %v1609, %v1611
    %v1617 = vsel %vm149, %v1616, %v1386
    %v1618 = vsel %vm421, %v1617, %v1614
    %v1619 = vsel %vm423, %v1618, 0.0
    %s1620 = scalar_lea.vmem [#allocation2], 8
    %1621 = vst [vmem:[%s1620] sm:$0x3] %v1619
    %1622 = vmatpush.msra.mxu0 0.0
    %1623 = vmatpush.msra.mxu0 0.0
    %1624 = vmatpush.msra.mxu0 0.0
    %1625 = vmatpush.msra.mxu0 0.0
    %1626 = vmatpush.msra.mxu0 0.0
    %1627 = vmatpush.msra.mxu0 0.0
    %1628 = vmatpush.msra.mxu0 0.0
    %1629 = vmatpush.msra.mxu0 0.0
    %1630 = vmatpush.msra.mxu0 0.0
    %1631 = vmatpush.msra.mxu0 0.0
    %1632 = vmatpush.msra.mxu0 %v96
    %1633 = vmatpush.msra.mxu0 %v95
    %1634 = vmatpush.msra.mxu0 %v94
    %1635 = vmatpush.msra.mxu0 %v93
    %1636 = vmatpush.msra.mxu0 %v92
    %1637 = vmatpush.msra.mxu0 %v91
    %1638 = vmatmul.f32.gmra.mxu0 %v1545
    %v1639 = vpop.f32.mrf.mxu0
    %v1640 = vadd.f32 0.0, %v1639
    %1641 = vdwg.mxu0
    %v1643 = vrot.slane %v1640, 6
    %v1645 = vadd.f32 %v89, %v1643
    %v1646 = vtanh.pop %v1645
    %v1647 = vrot.slane %v1536, 6
    %1648 = vrot.lane.b32.xlu0 %v1647, 32
    %v1649 = vpop.permute.xlu0 %1648
    %v1651 = vsel %vm149, %v1646, %v1649
    %v1653 = vrot.slane %v1651, 2
    %v1654 = vsel %vm123, %v1653, 0
    %1656 = vmatpush.msra.mxu0 0.0
    %1657 = vmatpush.msra.mxu0 0.0
    %1658 = vmatpush.msra.mxu0 0.0
    %1659 = vmatpush.msra.mxu0 0.0
    %1660 = vmatpush.msra.mxu0 0.0
    %1661 = vmatpush.msra.mxu0 0.0
    %1662 = vmatpush.msra.mxu0 0.0
    %1663 = vmatpush.msra.mxu0 0.0
    %1664 = vmatpush.msra.mxu0 0.0
    %1665 = vmatpush.msra.mxu0 0.0
    %1666 = vmatpush.msra.mxu0 %v103
    %1667 = vmatpush.msra.mxu0 %v102
    %1668 = vmatpush.msra.mxu0 %v101
    %1669 = vmatpush.msra.mxu0 %v100
    %1670 = vmatpush.msra.mxu0 %v99
    %1671 = vmatpush.msra.mxu0 %v98
    %1672 = vmatmul.f32.gmra.mxu0 %v1654
    %v1673 = vpop.f32.mrf.mxu0
    %v1674 = vadd.f32 0.0, %v1673
    %1675 = vdwg.mxu0
    %v1677 = vrot.slane %v1674, 6
    %1678 = vrot.lane.b32.xlu0 %v1677, 32
    %v1679 = vpop.permute.xlu0 %1678
    %v1681 = vadd.f32 %v89, %v1679
    %v1682 = vtanh.pop %v1681
    %v1684 = vrot.slane %v1682, 2
    %1685 = vrot.lane.b32.xlu0 %v1684, 96
    %v1686 = vpop.permute.xlu0 %1685
    %v1687 = vsel %vm149, %v1686, 0
    %1689 = vmatpush.msra.mxu0 0.0
    %1690 = vmatpush.msra.mxu0 0.0
    %1691 = vmatpush.msra.mxu0 0.0
    %1692 = vmatpush.msra.mxu0 0.0
    %1693 = vmatpush.msra.mxu0 0.0
    %1694 = vmatpush.msra.mxu0 0.0
    %1695 = vmatpush.msra.mxu0 0.0
    %1696 = vmatpush.msra.mxu0 0.0
    %1697 = vmatpush.msra.mxu0 0.0
    %1698 = vmatpush.msra.mxu0 0.0
    %1699 = vmatpush.msra.mxu0 0.0
    %1700 = vmatpush.msra.mxu0 0.0
    %1701 = vmatpush.msra.mxu0 %v107
    %1702 = vmatpush.msra.mxu0 %v106
    %1703 = vmatpush.msra.mxu0 %v105
    %1704 = vmatpush.msra.mxu0 %v104
    %1705 = vmatmul.f32.gmra.mxu0 %v1687
    %v1706 = vpop.f32.mrf.mxu0
    %v1707 = vadd.f32 %v116, %v1706
    %1708 = vdwg.mxu0
    %v1709 = vmax.f32 %v1707, 0.0
    %vm1710 = vcmp.ne.f32.partialorder %v1707, %v1707
    %v1711 = vadd.f32 %v1707, 0.0
    %v1712 = vand.u32 2147483647, %v1707
    %v1713 = vsub.f32 0.0, %v1712
    %v1714 = vmul.f32 %v1713, 1.442695
    %v1715 = vpow.pop %v1714
    %v1716 = vadd.f32 %v1715, 1.0
    %v1717 = vlog2.pop %v1716
    %v1718 = vmul.f32 %v1717, 0.6931472
    %v1719 = vmul.f32 -0.5, %v1715
    %v1720 = vadd.f32 %v1719, 1.0
    %v1721 = vmul.f32 %v1720, %v1715
    %v1722 = vand.u32 2147483647, %v1715
    %vm1723 = vcmp.lt.f32.partialorder %v1722, 0.0004427343
    %v1724 = vsel %vm1723, %v1721, %v1718
    %v1725 = vadd.f32 %v1709, %v1724
    %v1726 = vsel %vm1710, %v1711, %v1725
    %v1727 = vxor.u32 %v1707, 2147483648
    %v1728 = vmul.f32 %v1727, 1.442695
    %v1729 = vpow.pop %v1728
    %v1730 = vadd.f32 %v1729, 1.0
    %v1731 = vrcp.pop %v1730
    %v1732 = vmul.f32 %v1730, %v1731
    %v1733 = vsub.f32 1.0, %v1732
    %v1734 = vmul.f32 %v1731, %v1733
    %v1735 = vadd.f32 %v1731, %v1734
    %vm1736 = vweird.f32 %v1730
    %vm1737 = vweird.f32 %v1731
    %vm1738 = vmor %vm1736, %vm1737
    %v1739 = vsel %vm1738, %v1731, %v1735
    %v1740 = vand.u32 2147483647, %v1730
    %vm1741 = vcmp.eq.f32.partialorder %v1740, 8.507059e+37
    %v1742 = vand.u32 %v1730, 2147483648
    %v1743 = vor.u32 1.1754944e-38, %v1742
    %v1744 = vsel %vm1741, %v1743, %v1739
    %v1745 = vmul.f32 1.0, %v1744
    %v1747 = vsel %vm38, %v1707, 0
    %1749 = vmatpush.xpose.msra.mxu0 0.0
    %1750 = vmatpush.xpose.msra.mxu0 0.0
    %1751 = vmatpush.xpose.msra.mxu0 0.0
    %1752 = vmatpush.xpose.msra.mxu0 0.0
    %1753 = vmatpush.xpose.msra.mxu0 0.0
    %1754 = vmatpush.xpose.msra.mxu0 0.0
    %1755 = vmatpush.xpose.msra.mxu0 0.0
    %1756 = vmatpush.xpose.msra.mxu0 0.0
    %1757 = vmatpush.xpose.msra.mxu0 0.0
    %1758 = vmatpush.xpose.msra.mxu0 0.0
    %1759 = vmatpush.xpose.msra.mxu0 0.0
    %1760 = vmatpush.xpose.msra.mxu0 0.0
    %1761 = vmatpush.xpose.msra.mxu0 0.0
    %1762 = vmatpush.xpose.msra.mxu0 0.0
    %1763 = vmatpush.xpose.msra.mxu0 0.0
    %1764 = vmatpush.xpose.msra.mxu0 %v246
    %1765 = vmatmul.f32.gmra.mxu0 %v1747
    %v1766 = vpop.f32.mrf.mxu0
    %v1767 = vadd.f32 0.0, %v1766
    %1768 = vdwg.mxu0
    %v1769 = vmul.f32 %v1707, %v1707
    %v1770 = vsel %vm269, %v1769, 0.0
    %1771 = vadd.xlane.f32.xlu0 %v1770
    %v1772 = vpop.xlane.xlu0 %1771
    %v1773 = vadd.f32 %v1772, 1e-12
    %v1774 = vrsqrt.pop %v1773
    %v1775 = vmul.f32 %v1774, %v1773
    %v1776 = vmul.f32 %v1775, %v1774
    %v1777 = vmul.f32 0.5, %v1776
    %v1778 = vsub.f32 1.5, %v1777
    %v1779 = vmul.f32 %v1774, %v1778
    %vm1780 = vweird.f32 %v1773
    %vm1781 = vweird.f32 %v1774
    %vm1782 = vmor %vm1780, %vm1781
    %v1783 = vsel %vm1782, %v1774, %v1779
    %v1784 = vmul.f32 %v1726, %v1783
    %1786 = vset.pattern.permute.xlu0 16
    %1787 = vperm.xlu0 %1786, %v1784
    %v1788 = vpop.permute.xlu0 %1787
    %v1790 = vmul.f32 %v1788, %v1767
    %v1791 = vmul.f32 %v1790, 1.442695
    %v1792 = vpow.pop %v1791
    %v1793 = vsel %vm293, %v1792, 0.0
    %1794 = vadd.xlane.f32.xlu0 %v1793
    %v1795 = vpop.xlane.xlu0 %1794
    %v1796 = vrcp.pop %v1795
    %v1797 = vmul.f32 %v1792, %v1796
    %1799 = vset.pattern.permute.xlu0 17
    %1800 = vperm.xlu0 %1799, %v1745
    %v1801 = vpop.permute.xlu0 %1800
    %v1803 = vmul.f32 %v1801, %v1797
    %v1804 = vsub.f32 1.0, %v1745
    %1806 = vset.pattern.permute.xlu0 17
    %1807 = vperm.xlu0 %1806, %v1804
    %v1808 = vpop.permute.xlu0 %1807
    %v1810 = vmul.f32 %v1808, %v1514
    %v1811 = vadd.f32 %v1803, %v1810
    %v1813 = vsel %vm317, %v1811, 0
    %1815 = vmatpush.msra.mxu0 0.0
    %1816 = vmatpush.msra.mxu0 0.0
    %1817 = vmatpush.msra.mxu0 0.0
    %1818 = vmatpush.msra.mxu0 0.0
    %1819 = vmatpush.msra.mxu0 0.0
    %1820 = vmatpush.msra.mxu0 0.0
    %1821 = vmatpush.msra.mxu0 0.0
    %1822 = vmatpush.msra.mxu0 0.0
    %1823 = vmatpush.msra.mxu0 0.0
    %1824 = vmatpush.msra.mxu0 0.0
    %1825 = vmatpush.msra.mxu0 0.0
    %1826 = vmatpush.msra.mxu0 0.0
    %1827 = vmatpush.msra.mxu0 0.0
    %1828 = vmatpush.msra.mxu0 0.0
    %1829 = vmatpush.msra.mxu0 0.0
    %1830 = vmatpush.msra.mxu0 %v36
    %1831 = vmatmul.f32.gmra.mxu0 %v1813
    %v1832 = vpop.f32.mrf.mxu0
    %v1833 = vadd.f32 0.0, %v1832
    %1834 = vdwg.mxu0
    %1835 = vrot.lane.b32.xlu0 %v1682, 96
    %v1836 = vpop.permute.xlu0 %1835
    %v1839 = vrot.slane %v1833, 6
    %1840 = vrot.lane.b32.xlu0 %v1839, 32
    %v1841 = vpop.permute.xlu0 %1840
    %v1843 = vsel %vm149, %v1836, %v1841
    %v1845 = vrot.slane %v1843, 2
    %v1846 = vsel %vm123, %v1845, 0
    %1848 = vmatpush.msra.mxu0 0.0
    %1849 = vmatpush.msra.mxu0 0.0
    %1850 = vmatpush.msra.mxu0 0.0
    %1851 = vmatpush.msra.mxu0 0.0
    %1852 = vmatpush.msra.mxu0 0.0
    %1853 = vmatpush.msra.mxu0 0.0
    %1854 = vmatpush.msra.mxu0 0.0
    %1855 = vmatpush.msra.mxu0 0.0
    %1856 = vmatpush.msra.mxu0 0.0
    %1857 = vmatpush.msra.mxu0 0.0
    %1858 = vmatpush.msra.mxu0 %v113
    %1859 = vmatpush.msra.mxu0 %v112
    %1860 = vmatpush.msra.mxu0 %v111
    %1861 = vmatpush.msra.mxu0 %v110
    %1862 = vmatpush.msra.mxu0 %v109
    %1863 = vmatpush.msra.mxu0 %v108
    %1864 = vmatmul.f32.gmra.mxu0 %v1846
    %v1865 = vpop.f32.mrf.mxu0
    %v1866 = vadd.f32 %v120, %v1865
    %1867 = vdwg.mxu0
    %v1868 = vxor.u32 %v1866, 2147483648
    %v1869 = vmul.f32 %v1868, 1.442695
    %v1870 = vpow.pop %v1869
    %v1871 = vadd.f32 %v1870, 1.0
    %v1872 = vrcp.pop %v1871
    %v1873 = vmul.f32 %v1871, %v1872
    %v1874 = vsub.f32 1.0, %v1873
    %v1875 = vmul.f32 %v1872, %v1874
    %v1876 = vadd.f32 %v1872, %v1875
    %vm1877 = vweird.f32 %v1871
    %vm1878 = vweird.f32 %v1872
    %vm1879 = vmor %vm1877, %vm1878
    %v1880 = vsel %vm1879, %v1872, %v1876
    %v1881 = vand.u32 2147483647, %v1871
    %vm1882 = vcmp.eq.f32.partialorder %v1881, 8.507059e+37
    %v1883 = vand.u32 %v1871, 2147483648
    %v1884 = vor.u32 1.1754944e-38, %v1883
    %v1885 = vsel %vm1882, %v1884, %v1880
    %v1886 = vmul.f32 1.0, %v1885
    %1888 = vrot.lane.b32.xlu0 %v1886, 112
    %v1889 = vpop.permute.xlu0 %1888
    %v1891 = vadd.f32 %v1886, %v1889
    %v1892 = vxor.u32 %v1891, 2147483648
    %v1893 = vmul.f32 %v1892, 1.442695
    %v1894 = vpow.pop %v1893
    %v1895 = vadd.f32 %v1894, 1.0
    %v1896 = vrcp.pop %v1895
    %v1897 = vmul.f32 %v1895, %v1896
    %v1898 = vsub.f32 1.0, %v1897
    %v1899 = vmul.f32 %v1896, %v1898
    %v1900 = vadd.f32 %v1896, %v1899
    %vm1901 = vweird.f32 %v1895
    %vm1902 = vweird.f32 %v1896
    %vm1903 = vmor %vm1901, %vm1902
    %v1904 = vsel %vm1903, %v1896, %v1900
    %v1905 = vand.u32 2147483647, %v1895
    %vm1906 = vcmp.eq.f32.partialorder %v1905, 8.507059e+37
    %v1907 = vand.u32 %v1895, 2147483648
    %v1908 = vor.u32 1.1754944e-38, %v1907
    %v1909 = vsel %vm1906, %v1908, %v1904
    %v1910 = vmul.f32 1.0, %v1909
    %1911 = vrot.lane.b32.xlu0 %v1833, 16
    %v1912 = vpop.permute.xlu0 %1911
    %1915 = vrot.lane.b32.xlu0 %v1811, 64
    %v1916 = vpop.permute.xlu0 %1915
    %v1918 = vsel %vm38, %v1910, %v1912
    %v1919 = vsel %vm149, %v1918, %v1684
    %v1920 = vsel %vm421, %v1919, %v1916
    %v1921 = vsel %vm423, %v1920, 0.0
    %s1922 = scalar_lea.vmem [#allocation2], 10
    %1923 = vst [vmem:[%s1922] sm:$0x3] %v1921
    %1924 = vmatpush.msra.mxu0 0.0
    %1925 = vmatpush.msra.mxu0 0.0
    %1926 = vmatpush.msra.mxu0 0.0
    %1927 = vmatpush.msra.mxu0 0.0
    %1928 = vmatpush.msra.mxu0 0.0
    %1929 = vmatpush.msra.mxu0 0.0
    %1930 = vmatpush.msra.mxu0 0.0
    %1931 = vmatpush.msra.mxu0 0.0
    %1932 = vmatpush.msra.mxu0 0.0
    %1933 = vmatpush.msra.mxu0 0.0
    %1934 = vmatpush.msra.mxu0 %v96
    %1935 = vmatpush.msra.mxu0 %v95
    %1936 = vmatpush.msra.mxu0 %v94
    %1937 = vmatpush.msra.mxu0 %v93
    %1938 = vmatpush.msra.mxu0 %v92
    %1939 = vmatpush.msra.mxu0 %v91
    %1940 = vmatmul.f32.gmra.mxu0 %v1846
    %v1941 = vpop.f32.mrf.mxu0
    %v1942 = vadd.f32 0.0, %v1941
    %1943 = vdwg.mxu0
    %v1945 = vrot.slane %v1942, 4
    %v1947 = vadd.f32 %v89, %v1945
    %v1948 = vtanh.pop %v1947
    %v1949 = vrot.slane %v1833, 4
    %1950 = vrot.lane.b32.xlu0 %v1949, 32
    %v1951 = vpop.permute.xlu0 %1950
    %v1953 = vsel %vm149, %v1948, %v1951
    %v1955 = vrot.slane %v1953, 4
    %v1956 = vsel %vm123, %v1955, 0
    %1958 = vmatpush.msra.mxu0 0.0
    %1959 = vmatpush.msra.mxu0 0.0
    %1960 = vmatpush.msra.mxu0 0.0
    %1961 = vmatpush.msra.mxu0 0.0
    %1962 = vmatpush.msra.mxu0 0.0
    %1963 = vmatpush.msra.mxu0 0.0
    %1964 = vmatpush.msra.mxu0 0.0
    %1965 = vmatpush.msra.mxu0 0.0
    %1966 = vmatpush.msra.mxu0 0.0
    %1967 = vmatpush.msra.mxu0 0.0
    %1968 = vmatpush.msra.mxu0 %v103
    %1969 = vmatpush.msra.mxu0 %v102
    %1970 = vmatpush.msra.mxu0 %v101
    %1971 = vmatpush.msra.mxu0 %v100
    %1972 = vmatpush.msra.mxu0 %v99
    %1973 = vmatpush.msra.mxu0 %v98
    %1974 = vmatmul.f32.gmra.mxu0 %v1956
    %v1975 = vpop.f32.mrf.mxu0
    %v1976 = vadd.f32 0.0, %v1975
    %1977 = vdwg.mxu0
    %v1979 = vrot.slane %v1976, 4
    %1980 = vrot.lane.b32.xlu0 %v1979, 32
    %v1981 = vpop.permute.xlu0 %1980
    %v1983 = vadd.f32 %v89, %v1981
    %v1984 = vtanh.pop %v1983
    %v1986 = vrot.slane %v1984, 4
    %1987 = vrot.lane.b32.xlu0 %v1986, 96
    %v1988 = vpop.permute.xlu0 %1987
    %v1989 = vsel %vm149, %v1988, 0
    %1991 = vmatpush.msra.mxu0 0.0
    %1992 = vmatpush.msra.mxu0 0.0
    %1993 = vmatpush.msra.mxu0 0.0
    %1994 = vmatpush.msra.mxu0 0.0
    %1995 = vmatpush.msra.mxu0 0.0
    %1996 = vmatpush.msra.mxu0 0.0
    %1997 = vmatpush.msra.mxu0 0.0
    %1998 = vmatpush.msra.mxu0 0.0
    %1999 = vmatpush.msra.mxu0 0.0
    %2000 = vmatpush.msra.mxu0 0.0
    %2001 = vmatpush.msra.mxu0 0.0
    %2002 = vmatpush.msra.mxu0 0.0
    %2003 = vmatpush.msra.mxu0 %v107
    %2004 = vmatpush.msra.mxu0 %v106
    %2005 = vmatpush.msra.mxu0 %v105
    %2006 = vmatpush.msra.mxu0 %v104
    %2007 = vmatmul.f32.gmra.mxu0 %v1989
    %v2008 = vpop.f32.mrf.mxu0
    %v2009 = vadd.f32 %v116, %v2008
    %2010 = vdwg.mxu0
    %v2011 = vmax.f32 %v2009, 0.0
    %vm2012 = vcmp.ne.f32.partialorder %v2009, %v2009
    %v2013 = vadd.f32 %v2009, 0.0
    %v2014 = vand.u32 2147483647, %v2009
    %v2015 = vsub.f32 0.0, %v2014
    %v2016 = vmul.f32 %v2015, 1.442695
    %v2017 = vpow.pop %v2016
    %v2018 = vadd.f32 %v2017, 1.0
    %v2019 = vlog2.pop %v2018
    %v2020 = vmul.f32 %v2019, 0.6931472
    %v2021 = vmul.f32 -0.5, %v2017
    %v2022 = vadd.f32 %v2021, 1.0
    %v2023 = vmul.f32 %v2022, %v2017
    %v2024 = vand.u32 2147483647, %v2017
    %vm2025 = vcmp.lt.f32.partialorder %v2024, 0.0004427343
    %v2026 = vsel %vm2025, %v2023, %v2020
    %v2027 = vadd.f32 %v2011, %v2026
    %v2028 = vsel %vm2012, %v2013, %v2027
    %v2029 = vxor.u32 %v2009, 2147483648
    %v2030 = vmul.f32 %v2029, 1.442695
    %v2031 = vpow.pop %v2030
    %v2032 = vadd.f32 %v2031, 1.0
    %v2033 = vrcp.pop %v2032
    %v2034 = vmul.f32 %v2032, %v2033
    %v2035 = vsub.f32 1.0, %v2034
    %v2036 = vmul.f32 %v2033, %v2035
    %v2037 = vadd.f32 %v2033, %v2036
    %vm2038 = vweird.f32 %v2032
    %vm2039 = vweird.f32 %v2033
    %vm2040 = vmor %vm2038, %vm2039
    %v2041 = vsel %vm2040, %v2033, %v2037
    %v2042 = vand.u32 2147483647, %v2032
    %vm2043 = vcmp.eq.f32.partialorder %v2042, 8.507059e+37
    %v2044 = vand.u32 %v2032, 2147483648
    %v2045 = vor.u32 1.1754944e-38, %v2044
    %v2046 = vsel %vm2043, %v2045, %v2041
    %v2047 = vmul.f32 1.0, %v2046
    %v2049 = vsel %vm38, %v2009, 0
    %2051 = vmatpush.xpose.msra.mxu0 0.0
    %2052 = vmatpush.xpose.msra.mxu0 0.0
    %2053 = vmatpush.xpose.msra.mxu0 0.0
    %2054 = vmatpush.xpose.msra.mxu0 0.0
    %2055 = vmatpush.xpose.msra.mxu0 0.0
    %2056 = vmatpush.xpose.msra.mxu0 0.0
    %2057 = vmatpush.xpose.msra.mxu0 0.0
    %2058 = vmatpush.xpose.msra.mxu0 0.0
    %2059 = vmatpush.xpose.msra.mxu0 0.0
    %2060 = vmatpush.xpose.msra.mxu0 0.0
    %2061 = vmatpush.xpose.msra.mxu0 0.0
    %2062 = vmatpush.xpose.msra.mxu0 0.0
    %2063 = vmatpush.xpose.msra.mxu0 0.0
    %2064 = vmatpush.xpose.msra.mxu0 0.0
    %2065 = vmatpush.xpose.msra.mxu0 0.0
    %2066 = vmatpush.xpose.msra.mxu0 %v246
    %2067 = vmatmul.f32.gmra.mxu0 %v2049
    %v2068 = vpop.f32.mrf.mxu0
    %v2069 = vadd.f32 0.0, %v2068
    %2070 = vdwg.mxu0
    %v2071 = vmul.f32 %v2009, %v2009
    %v2072 = vsel %vm269, %v2071, 0.0
    %2073 = vadd.xlane.f32.xlu0 %v2072
    %v2074 = vpop.xlane.xlu0 %2073
    %v2075 = vadd.f32 %v2074, 1e-12
    %v2076 = vrsqrt.pop %v2075
    %v2077 = vmul.f32 %v2076, %v2075
    %v2078 = vmul.f32 %v2077, %v2076
    %v2079 = vmul.f32 0.5, %v2078
    %v2080 = vsub.f32 1.5, %v2079
    %v2081 = vmul.f32 %v2076, %v2080
    %vm2082 = vweird.f32 %v2075
    %vm2083 = vweird.f32 %v2076
    %vm2084 = vmor %vm2082, %vm2083
    %v2085 = vsel %vm2084, %v2076, %v2081
    %v2086 = vmul.f32 %v2028, %v2085
    %2088 = vset.pattern.permute.xlu0 16
    %2089 = vperm.xlu0 %2088, %v2086
    %v2090 = vpop.permute.xlu0 %2089
    %v2092 = vmul.f32 %v2090, %v2069
    %v2093 = vmul.f32 %v2092, 1.442695
    %v2094 = vpow.pop %v2093
    %v2095 = vsel %vm293, %v2094, 0.0
    %2096 = vadd.xlane.f32.xlu0 %v2095
    %v2097 = vpop.xlane.xlu0 %2096
    %v2098 = vrcp.pop %v2097
    %v2099 = vmul.f32 %v2094, %v2098
    %2101 = vset.pattern.permute.xlu0 17
    %2102 = vperm.xlu0 %2101, %v2047
    %v2103 = vpop.permute.xlu0 %2102
    %v2105 = vmul.f32 %v2103, %v2099
    %v2106 = vsub.f32 1.0, %v2047
    %2108 = vset.pattern.permute.xlu0 17
    %2109 = vperm.xlu0 %2108, %v2106
    %v2110 = vpop.permute.xlu0 %2109
    %v2112 = vmul.f32 %v2110, %v1811
    %v2113 = vadd.f32 %v2105, %v2112
    %v2115 = vsel %vm317, %v2113, 0
    %2117 = vmatpush.msra.mxu0 0.0
    %2118 = vmatpush.msra.mxu0 0.0
    %2119 = vmatpush.msra.mxu0 0.0
    %2120 = vmatpush.msra.mxu0 0.0
    %2121 = vmatpush.msra.mxu0 0.0
    %2122 = vmatpush.msra.mxu0 0.0
    %2123 = vmatpush.msra.mxu0 0.0
    %2124 = vmatpush.msra.mxu0 0.0
    %2125 = vmatpush.msra.mxu0 0.0
    %2126 = vmatpush.msra.mxu0 0.0
    %2127 = vmatpush.msra.mxu0 0.0
    %2128 = vmatpush.msra.mxu0 0.0
    %2129 = vmatpush.msra.mxu0 0.0
    %2130 = vmatpush.msra.mxu0 0.0
    %2131 = vmatpush.msra.mxu0 0.0
    %2132 = vmatpush.msra.mxu0 %v36
    %2133 = vmatmul.f32.gmra.mxu0 %v2115
    %v2134 = vpop.f32.mrf.mxu0
    %v2135 = vadd.f32 0.0, %v2134
    %2136 = vdwg.mxu0
    %2137 = vrot.lane.b32.xlu0 %v1984, 96
    %v2138 = vpop.permute.xlu0 %2137
    %v2141 = vrot.slane %v2135, 4
    %2142 = vrot.lane.b32.xlu0 %v2141, 32
    %v2143 = vpop.permute.xlu0 %2142
    %v2145 = vsel %vm149, %v2138, %v2143
    %v2147 = vrot.slane %v2145, 4
    %v2148 = vsel %vm123, %v2147, 0
    %2150 = vmatpush.msra.mxu0 0.0
    %2151 = vmatpush.msra.mxu0 0.0
    %2152 = vmatpush.msra.mxu0 0.0
    %2153 = vmatpush.msra.mxu0 0.0
    %2154 = vmatpush.msra.mxu0 0.0
    %2155 = vmatpush.msra.mxu0 0.0
    %2156 = vmatpush.msra.mxu0 0.0
    %2157 = vmatpush.msra.mxu0 0.0
    %2158 = vmatpush.msra.mxu0 0.0
    %2159 = vmatpush.msra.mxu0 0.0
    %2160 = vmatpush.msra.mxu0 %v113
    %2161 = vmatpush.msra.mxu0 %v112
    %2162 = vmatpush.msra.mxu0 %v111
    %2163 = vmatpush.msra.mxu0 %v110
    %2164 = vmatpush.msra.mxu0 %v109
    %2165 = vmatpush.msra.mxu0 %v108
    %2166 = vmatmul.f32.gmra.mxu0 %v2148
    %v2167 = vpop.f32.mrf.mxu0
    %v2168 = vadd.f32 %v120, %v2167
    %2169 = vdwg.mxu0
    %v2170 = vxor.u32 %v2168, 2147483648
    %v2171 = vmul.f32 %v2170, 1.442695
    %v2172 = vpow.pop %v2171
    %v2173 = vadd.f32 %v2172, 1.0
    %v2174 = vrcp.pop %v2173
    %v2175 = vmul.f32 %v2173, %v2174
    %v2176 = vsub.f32 1.0, %v2175
    %v2177 = vmul.f32 %v2174, %v2176
    %v2178 = vadd.f32 %v2174, %v2177
    %vm2179 = vweird.f32 %v2173
    %vm2180 = vweird.f32 %v2174
    %vm2181 = vmor %vm2179, %vm2180
    %v2182 = vsel %vm2181, %v2174, %v2178
    %v2183 = vand.u32 2147483647, %v2173
    %vm2184 = vcmp.eq.f32.partialorder %v2183, 8.507059e+37
    %v2185 = vand.u32 %v2173, 2147483648
    %v2186 = vor.u32 1.1754944e-38, %v2185
    %v2187 = vsel %vm2184, %v2186, %v2182
    %v2188 = vmul.f32 1.0, %v2187
    %2190 = vrot.lane.b32.xlu0 %v2188, 112
    %v2191 = vpop.permute.xlu0 %2190
    %v2193 = vadd.f32 %v2188, %v2191
    %v2194 = vxor.u32 %v2193, 2147483648
    %v2195 = vmul.f32 %v2194, 1.442695
    %v2196 = vpow.pop %v2195
    %v2197 = vadd.f32 %v2196, 1.0
    %v2198 = vrcp.pop %v2197
    %v2199 = vmul.f32 %v2197, %v2198
    %v2200 = vsub.f32 1.0, %v2199
    %v2201 = vmul.f32 %v2198, %v2200
    %v2202 = vadd.f32 %v2198, %v2201
    %vm2203 = vweird.f32 %v2197
    %vm2204 = vweird.f32 %v2198
    %vm2205 = vmor %vm2203, %vm2204
    %v2206 = vsel %vm2205, %v2198, %v2202
    %v2207 = vand.u32 2147483647, %v2197
    %vm2208 = vcmp.eq.f32.partialorder %v2207, 8.507059e+37
    %v2209 = vand.u32 %v2197, 2147483648
    %v2210 = vor.u32 1.1754944e-38, %v2209
    %v2211 = vsel %vm2208, %v2210, %v2206
    %v2212 = vmul.f32 1.0, %v2211
    %2213 = vrot.lane.b32.xlu0 %v2135, 16
    %v2214 = vpop.permute.xlu0 %2213
    %2217 = vrot.lane.b32.xlu0 %v2113, 64
    %v2218 = vpop.permute.xlu0 %2217
    %v2220 = vsel %vm38, %v2212, %v2214
    %v2221 = vsel %vm149, %v2220, %v1986
    %v2222 = vsel %vm421, %v2221, %v2218
    %v2223 = vsel %vm423, %v2222, 0.0
    %s2224 = scalar_lea.vmem [#allocation2], 12
    %2225 = vst [vmem:[%s2224] sm:$0x3] %v2223
    %2226 = vmatpush.msra.mxu0 0.0
    %2227 = vmatpush.msra.mxu0 0.0
    %2228 = vmatpush.msra.mxu0 0.0
    %2229 = vmatpush.msra.mxu0 0.0
    %2230 = vmatpush.msra.mxu0 0.0
    %2231 = vmatpush.msra.mxu0 0.0
    %2232 = vmatpush.msra.mxu0 0.0
    %2233 = vmatpush.msra.mxu0 0.0
    %2234 = vmatpush.msra.mxu0 0.0
    %2235 = vmatpush.msra.mxu0 0.0
    %2236 = vmatpush.msra.mxu0 %v96
    %2237 = vmatpush.msra.mxu0 %v95
    %2238 = vmatpush.msra.mxu0 %v94
    %2239 = vmatpush.msra.mxu0 %v93
    %2240 = vmatpush.msra.mxu0 %v92
    %2241 = vmatpush.msra.mxu0 %v91
    %2242 = vmatmul.f32.gmra.mxu0 %v2148
    %v2243 = vpop.f32.mrf.mxu0
    %v2244 = vadd.f32 0.0, %v2243
    %2245 = vdwg.mxu0
    %v2247 = vrot.slane %v2244, 2
    %v2249 = vadd.f32 %v89, %v2247
    %v2250 = vtanh.pop %v2249
    %v2251 = vrot.slane %v2135, 2
    %2252 = vrot.lane.b32.xlu0 %v2251, 32
    %v2253 = vpop.permute.xlu0 %2252
    %v2255 = vsel %vm149, %v2250, %v2253
    %v2257 = vrot.slane %v2255, 6
    %v2258 = vsel %vm123, %v2257, 0
    %2260 = vmatpush.msra.mxu0 0.0
    %2261 = vmatpush.msra.mxu0 0.0
    %2262 = vmatpush.msra.mxu0 0.0
    %2263 = vmatpush.msra.mxu0 0.0
    %2264 = vmatpush.msra.mxu0 0.0
    %2265 = vmatpush.msra.mxu0 0.0
    %2266 = vmatpush.msra.mxu0 0.0
    %2267 = vmatpush.msra.mxu0 0.0
    %2268 = vmatpush.msra.mxu0 0.0
    %2269 = vmatpush.msra.mxu0 0.0
    %2270 = vmatpush.msra.mxu0 %v103
    %2271 = vmatpush.msra.mxu0 %v102
    %2272 = vmatpush.msra.mxu0 %v101
    %2273 = vmatpush.msra.mxu0 %v100
    %2274 = vmatpush.msra.mxu0 %v99
    %2275 = vmatpush.msra.mxu0 %v98
    %2276 = vmatmul.f32.gmra.mxu0 %v2258
    %v2277 = vpop.f32.mrf.mxu0
    %v2278 = vadd.f32 0.0, %v2277
    %2279 = vdwg.mxu0
    %v2281 = vrot.slane %v2278, 2
    %2282 = vrot.lane.b32.xlu0 %v2281, 32
    %v2283 = vpop.permute.xlu0 %2282
    %v2285 = vadd.f32 %v89, %v2283
    %v2286 = vtanh.pop %v2285
    %v2288 = vrot.slane %v2286, 6
    %2289 = vrot.lane.b32.xlu0 %v2288, 96
    %v2290 = vpop.permute.xlu0 %2289
    %v2291 = vsel %vm149, %v2290, 0
    %2293 = vmatpush.msra.mxu0 0.0
    %2294 = vmatpush.msra.mxu0 0.0
    %2295 = vmatpush.msra.mxu0 0.0
    %2296 = vmatpush.msra.mxu0 0.0
    %2297 = vmatpush.msra.mxu0 0.0
    %2298 = vmatpush.msra.mxu0 0.0
    %2299 = vmatpush.msra.mxu0 0.0
    %2300 = vmatpush.msra.mxu0 0.0
    %2301 = vmatpush.msra.mxu0 0.0
    %2302 = vmatpush.msra.mxu0 0.0
    %2303 = vmatpush.msra.mxu0 0.0
    %2304 = vmatpush.msra.mxu0 0.0
    %2305 = vmatpush.msra.mxu0 %v107
    %2306 = vmatpush.msra.mxu0 %v106
    %2307 = vmatpush.msra.mxu0 %v105
    %2308 = vmatpush.msra.mxu0 %v104
    %2309 = vmatmul.f32.gmra.mxu0 %v2291
    %v2310 = vpop.f32.mrf.mxu0
    %v2311 = vadd.f32 %v116, %v2310
    %2312 = vdwg.mxu0
    %v2313 = vmax.f32 %v2311, 0.0
    %vm2314 = vcmp.ne.f32.partialorder %v2311, %v2311
    %v2315 = vadd.f32 %v2311, 0.0
    %v2316 = vand.u32 2147483647, %v2311
    %v2317 = vsub.f32 0.0, %v2316
    %v2318 = vmul.f32 %v2317, 1.442695
    %v2319 = vpow.pop %v2318
    %v2320 = vadd.f32 %v2319, 1.0
    %v2321 = vlog2.pop %v2320
    %v2322 = vmul.f32 %v2321, 0.6931472
    %v2323 = vmul.f32 -0.5, %v2319
    %v2324 = vadd.f32 %v2323, 1.0
    %v2325 = vmul.f32 %v2324, %v2319
    %v2326 = vand.u32 2147483647, %v2319
    %vm2327 = vcmp.lt.f32.partialorder %v2326, 0.0004427343
    %v2328 = vsel %vm2327, %v2325, %v2322
    %v2329 = vadd.f32 %v2313, %v2328
    %v2330 = vsel %vm2314, %v2315, %v2329
    %v2331 = vxor.u32 %v2311, 2147483648
    %v2332 = vmul.f32 %v2331, 1.442695
    %v2333 = vpow.pop %v2332
    %v2334 = vadd.f32 %v2333, 1.0
    %v2335 = vrcp.pop %v2334
    %v2336 = vmul.f32 %v2334, %v2335
    %v2337 = vsub.f32 1.0, %v2336
    %v2338 = vmul.f32 %v2335, %v2337
    %v2339 = vadd.f32 %v2335, %v2338
    %vm2340 = vweird.f32 %v2334
    %vm2341 = vweird.f32 %v2335
    %vm2342 = vmor %vm2340, %vm2341
    %v2343 = vsel %vm2342, %v2335, %v2339
    %v2344 = vand.u32 2147483647, %v2334
    %vm2345 = vcmp.eq.f32.partialorder %v2344, 8.507059e+37
    %v2346 = vand.u32 %v2334, 2147483648
    %v2347 = vor.u32 1.1754944e-38, %v2346
    %v2348 = vsel %vm2345, %v2347, %v2343
    %v2349 = vmul.f32 1.0, %v2348
    %v2351 = vsel %vm38, %v2311, 0
    %2353 = vmatpush.xpose.msra.mxu0 0.0
    %2354 = vmatpush.xpose.msra.mxu0 0.0
    %2355 = vmatpush.xpose.msra.mxu0 0.0
    %2356 = vmatpush.xpose.msra.mxu0 0.0
    %2357 = vmatpush.xpose.msra.mxu0 0.0
    %2358 = vmatpush.xpose.msra.mxu0 0.0
    %2359 = vmatpush.xpose.msra.mxu0 0.0
    %2360 = vmatpush.xpose.msra.mxu0 0.0
    %2361 = vmatpush.xpose.msra.mxu0 0.0
    %2362 = vmatpush.xpose.msra.mxu0 0.0
    %2363 = vmatpush.xpose.msra.mxu0 0.0
    %2364 = vmatpush.xpose.msra.mxu0 0.0
    %2365 = vmatpush.xpose.msra.mxu0 0.0
    %2366 = vmatpush.xpose.msra.mxu0 0.0
    %2367 = vmatpush.xpose.msra.mxu0 0.0
    %2368 = vmatpush.xpose.msra.mxu0 %v246
    %2369 = vmatmul.f32.gmra.mxu0 %v2351
    %v2370 = vpop.f32.mrf.mxu0
    %v2371 = vadd.f32 0.0, %v2370
    %2372 = vdwg.mxu0
    %v2373 = vmul.f32 %v2311, %v2311
    %v2374 = vsel %vm269, %v2373, 0.0
    %2375 = vadd.xlane.f32.xlu0 %v2374
    %v2376 = vpop.xlane.xlu0 %2375
    %v2377 = vadd.f32 %v2376, 1e-12
    %v2378 = vrsqrt.pop %v2377
    %v2379 = vmul.f32 %v2378, %v2377
    %v2380 = vmul.f32 %v2379, %v2378
    %v2381 = vmul.f32 0.5, %v2380
    %v2382 = vsub.f32 1.5, %v2381
    %v2383 = vmul.f32 %v2378, %v2382
    %vm2384 = vweird.f32 %v2377
    %vm2385 = vweird.f32 %v2378
    %vm2386 = vmor %vm2384, %vm2385
    %v2387 = vsel %vm2386, %v2378, %v2383
    %v2388 = vmul.f32 %v2330, %v2387
    %2390 = vset.pattern.permute.xlu0 16
    %2391 = vperm.xlu0 %2390, %v2388
    %v2392 = vpop.permute.xlu0 %2391
    %v2394 = vmul.f32 %v2392, %v2371
    %v2395 = vmul.f32 %v2394, 1.442695
    %v2396 = vpow.pop %v2395
    %v2397 = vsel %vm293, %v2396, 0.0
    %2398 = vadd.xlane.f32.xlu0 %v2397
    %v2399 = vpop.xlane.xlu0 %2398
    %v2400 = vrcp.pop %v2399
    %v2401 = vmul.f32 %v2396, %v2400
    %2403 = vset.pattern.permute.xlu0 17
    %2404 = vperm.xlu0 %2403, %v2349
    %v2405 = vpop.permute.xlu0 %2404
    %v2407 = vmul.f32 %v2405, %v2401
    %v2408 = vsub.f32 1.0, %v2349
    %2410 = vset.pattern.permute.xlu0 17
    %2411 = vperm.xlu0 %2410, %v2408
    %v2412 = vpop.permute.xlu0 %2411
    %v2414 = vmul.f32 %v2412, %v2113
    %v2415 = vadd.f32 %v2407, %v2414
    %v2417 = vsel %vm317, %v2415, 0
    %2419 = vmatpush.msra.mxu0 0.0
    %2420 = vmatpush.msra.mxu0 0.0
    %2421 = vmatpush.msra.mxu0 0.0
    %2422 = vmatpush.msra.mxu0 0.0
    %2423 = vmatpush.msra.mxu0 0.0
    %2424 = vmatpush.msra.mxu0 0.0
    %2425 = vmatpush.msra.mxu0 0.0
    %2426 = vmatpush.msra.mxu0 0.0
    %2427 = vmatpush.msra.mxu0 0.0
    %2428 = vmatpush.msra.mxu0 0.0
    %2429 = vmatpush.msra.mxu0 0.0
    %2430 = vmatpush.msra.mxu0 0.0
    %2431 = vmatpush.msra.mxu0 0.0
    %2432 = vmatpush.msra.mxu0 0.0
    %2433 = vmatpush.msra.mxu0 0.0
    %2434 = vmatpush.msra.mxu0 %v36
    %2435 = vmatmul.f32.gmra.mxu0 %v2417
    %v2436 = vpop.f32.mrf.mxu0
    %v2437 = vadd.f32 0.0, %v2436
    %2438 = vdwg.mxu0
    %2439 = vrot.lane.b32.xlu0 %v2286, 96
    %v2440 = vpop.permute.xlu0 %2439
    %v2443 = vrot.slane %v2437, 2
    %2444 = vrot.lane.b32.xlu0 %v2443, 32
    %v2445 = vpop.permute.xlu0 %2444
    %v2447 = vsel %vm149, %v2440, %v2445
    %v2449 = vrot.slane %v2447, 6
    %v2450 = vsel %vm123, %v2449, 0
    %2452 = vmatpush.msra.mxu0 0.0
    %2453 = vmatpush.msra.mxu0 0.0
    %2454 = vmatpush.msra.mxu0 0.0
    %2455 = vmatpush.msra.mxu0 0.0
    %2456 = vmatpush.msra.mxu0 0.0
    %2457 = vmatpush.msra.mxu0 0.0
    %2458 = vmatpush.msra.mxu0 0.0
    %2459 = vmatpush.msra.mxu0 0.0
    %2460 = vmatpush.msra.mxu0 0.0
    %2461 = vmatpush.msra.mxu0 0.0
    %2462 = vmatpush.msra.mxu0 %v113
    %2463 = vmatpush.msra.mxu0 %v112
    %2464 = vmatpush.msra.mxu0 %v111
    %2465 = vmatpush.msra.mxu0 %v110
    %2466 = vmatpush.msra.mxu0 %v109
    %2467 = vmatpush.msra.mxu0 %v108
    %2468 = vmatmul.f32.gmra.mxu0 %v2450
    %v2469 = vpop.f32.mrf.mxu0
    %v2470 = vadd.f32 %v120, %v2469
    %2471 = vdwg.mxu0
    %v2472 = vxor.u32 %v2470, 2147483648
    %v2473 = vmul.f32 %v2472, 1.442695
    %v2474 = vpow.pop %v2473
    %v2475 = vadd.f32 %v2474, 1.0
    %v2476 = vrcp.pop %v2475
    %v2477 = vmul.f32 %v2475, %v2476
    %v2478 = vsub.f32 1.0, %v2477
    %v2479 = vmul.f32 %v2476, %v2478
    %v2480 = vadd.f32 %v2476, %v2479
    %vm2481 = vweird.f32 %v2475
    %vm2482 = vweird.f32 %v2476
    %vm2483 = vmor %vm2481, %vm2482
    %v2484 = vsel %vm2483, %v2476, %v2480
    %v2485 = vand.u32 2147483647, %v2475
    %vm2486 = vcmp.eq.f32.partialorder %v2485, 8.507059e+37
    %v2487 = vand.u32 %v2475, 2147483648
    %v2488 = vor.u32 1.1754944e-38, %v2487
    %v2489 = vsel %vm2486, %v2488, %v2484
    %v2490 = vmul.f32 1.0, %v2489
    %2492 = vrot.lane.b32.xlu0 %v2490, 112
    %v2493 = vpop.permute.xlu0 %2492
    %v2495 = vadd.f32 %v2490, %v2493
    %v2496 = vxor.u32 %v2495, 2147483648
    %v2497 = vmul.f32 %v2496, 1.442695
    %v2498 = vpow.pop %v2497
    %v2499 = vadd.f32 %v2498, 1.0
    %v2500 = vrcp.pop %v2499
    %v2501 = vmul.f32 %v2499, %v2500
    %v2502 = vsub.f32 1.0, %v2501
    %v2503 = vmul.f32 %v2500, %v2502
    %v2504 = vadd.f32 %v2500, %v2503
    %vm2505 = vweird.f32 %v2499
    %vm2506 = vweird.f32 %v2500
    %vm2507 = vmor %vm2505, %vm2506
    %v2508 = vsel %vm2507, %v2500, %v2504
    %v2509 = vand.u32 2147483647, %v2499
    %vm2510 = vcmp.eq.f32.partialorder %v2509, 8.507059e+37
    %v2511 = vand.u32 %v2499, 2147483648
    %v2512 = vor.u32 1.1754944e-38, %v2511
    %v2513 = vsel %vm2510, %v2512, %v2508
    %v2514 = vmul.f32 1.0, %v2513
    %2515 = vrot.lane.b32.xlu0 %v2437, 16
    %v2516 = vpop.permute.xlu0 %2515
    %2519 = vrot.lane.b32.xlu0 %v2415, 64
    %v2520 = vpop.permute.xlu0 %2519
    %v2522 = vsel %vm38, %v2514, %v2516
    %v2523 = vsel %vm149, %v2522, %v2288
    %v2524 = vsel %vm421, %v2523, %v2520
    %v2525 = vsel %vm423, %v2524, 0.0
    %s2526 = scalar_lea.vmem [#allocation2], 14
    %2527 = vst [vmem:[%s2526] sm:$0x3] %v2525
    // Predicated region
    $region42: #{tpu_custom_call.1} parent=1 // pred_check
      _
    $region43: #{tpu_custom_call.1} parent=1 // pred_check_branch
      %2529 = sbr.rel (0) target = $region45
    $region44: #{tpu_custom_call.1} parent=1 // pred_region
      %2531 = vsyncadd [#allocation3], 0
      %s2532 = sshll.u32 [#allocation2], 4
      %s2533 = int_to_ptr.vmem [resolvable:$true] %s2532
      %s2534 = sshll.u32 %s10, 4
      %s2535 = int_to_ptr.hbm [resolvable:$true] %s2534
      %2540 = dma.vmem_to_hbm [thread:$0]  %s2533, 256, %s2535, [#allocation3], 32, 32, 2
    $region45: #{tpu_custom_call.1} parent=1 // pred_fallthru
      _
    // Predicated region
    $region46: #{tpu_custom_call.1} parent=1 // pred_check
      _
    $region47: #{tpu_custom_call.1} parent=1 // pred_check_branch
      %2542 = sbr.rel (0) target = $region49
    $region48: #{tpu_custom_call.1} parent=1 // pred_region
      %2544 = dma.done [#allocation3], 256
    $region49: #{tpu_custom_call.1} parent=1 // pred_fallthru
      _
    %2545 = vsyncpa [#allocation3], 1

</llo_original>
